<compile_context>
chip_gen: v5e
topology: v5e:2x2
jax: 0.10.0
libtpu: 0.0.40
codegen_flags: <defaults>
</compile_context>

<pallas_src>
import jax
import jax.numpy as jnp
from jax.experimental import pallas as pl
from jax.experimental.pallas import tpu as pltpu

NEG_SLOPE = 0.01  # F.leaky_relu default negative_slope


def _leaky_relu(x):
    # mul + max is one VPU op cheaper than cmp + select.
    return jnp.maximum(x, NEG_SLOPE * x)


def _round_up(x, m):
    return (x + m - 1) // m * m


# -----------------------------------------------------------------------------
# Kernel: one tile of G_TILE graphs per grid step (block-diagonal adjacency).
# -----------------------------------------------------------------------------
def cen_gnn_kernel(x_ref, a_ref, p_ref, inv_ref,
                   w1_ref, b1_ref, w2_ref, b2_ref, w3_ref, b3_ref,
                   out_ref):
    a = a_ref[...]          # [R, R]      bf16 block-diag normalized adjacency
    x = x_ref[...]          # [R, f_pad]  bf16 stacked node features

    # ---- GCNConv1: (A @ X) @ W1 + b1 -> leaky_relu (contract f_pad first) ----
    ax = jnp.dot(a, x, preferred_element_type=jnp.float32)
    z = jnp.dot(ax.astype(jnp.bfloat16), w1_ref[...],
                preferred_element_type=jnp.float32) + b1_ref[...]
    h = _leaky_relu(z)

    # ---- GCNConv2: (A @ H1) @ W2 + b2 -> leaky_relu ----
    ah = jnp.dot(a, h.astype(jnp.bfloat16), preferred_element_type=jnp.float32)
    z = jnp.dot(ah.astype(jnp.bfloat16), w2_ref[...],
                preferred_element_type=jnp.float32) + b2_ref[...]
    h = _leaky_relu(z)

    # ---- fc_output: H2 @ W3 + b3 -> leaky_relu ----
    z = jnp.dot(h.astype(jnp.bfloat16), w3_ref[...],
                preferred_element_type=jnp.float32) + b3_ref[...]
    h = _leaky_relu(z)

    # ---- global_mean_pool: MXU matmul with 0/1 node mask, then f32 1/count scale.
    pooled = jnp.dot(p_ref[...], h.astype(jnp.bfloat16),
                     preferred_element_type=jnp.float32)        # [G_TILE, hid_pad]
    out_ref[...] = pooled * inv_ref[...]                         # dense unmasked store


# -----------------------------------------------------------------------------
# One-time parameter preprocessing (hoisted out of the per-call hot path).
# -----------------------------------------------------------------------------
def preprocess_params(params, f_in, f_pad, hid_pad):
    w1, b1, w2, b2, w3, b3 = params
    hid = w3.shape[1]
    w1p = jnp.pad(w1, ((0, f_pad - f_in), (0, 0))).astype(jnp.bfloat16)
    w2p = w2.astype(jnp.bfloat16)
    w3p = jnp.pad(w3, ((0, 0), (0, hid_pad - hid))).astype(jnp.bfloat16)
    b1p = b1.reshape(1, -1).astype(jnp.float32)
    b2p = b2.reshape(1, -1).astype(jnp.float32)
    b3p = jnp.pad(b3.reshape(1, -1), ((0, 0), (0, hid_pad - hid))).astype(jnp.float32)
    return w1p, b1p, w2p, b2p, w3p, b3p


def _choose_g_tile(num_graphs, np_pad):
    # Prefer 256-row MXU tiles (v6e/v7x 2x256x256) but keep >= 2 grid steps so
    # both v7x TensorCores get work; 128-row tiles always saturate v5e's 4x128x128.
    for target_rows in (256, 128):
        if target_rows % np_pad:
            continue
        g_tile = target_rows // np_pad
        if pl.cdiv(num_graphs, g_tile) >= 2:
            return g_tile
    return max(1, 128 // np_pad)


def _blockdiag_gcn_adjacency(edge_index, batch_vec, nodes_per_graph,
                             np_pad, g_tile, n_tiles):
    """Per-tile block-diagonal D^-1/2 (A + I) D^-1/2 in bf16: [n_tiles, R, R].

    Built with scatter-add directly in the padded block-diagonal layout (no
    O(E*G*Np^2) one-hot einsum).  Padded node rows / padded graph slots carry
    only a self-loop, which is inert (zero features, zero pool weight).
    """
    r = g_tile * np_pad
    src, dst = edge_index[0], edge_index[1]
    g_edge = batch_vec[src]                               # graph id of each edge
    ls = src - g_edge * nodes_per_graph                   # local source index
    ld = dst - g_edge * nodes_per_graph                   # local destination index
    tile = g_edge // g_tile
    slot = g_edge % g_tile
    row = slot * np_pad + ld                              # message flows src -> dst
    col = slot * np_pad + ls
    a = jnp.zeros((n_tiles, r, r), jnp.float32).at[tile, row, col].add(1.0)
    a = jnp.minimum(a + jnp.swapaxes(a, 1, 2), 1.0)       # symmetrize + dedupe
    a = a + jnp.eye(r, dtype=jnp.float32)[None]           # self loops
    deg = a.sum(axis=-1)                                  # padded rows: deg = 1
    dinv = jax.lax.rsqrt(deg)
    a = a * dinv[:, :, None] * dinv[:, None, :]
    return a.astype(jnp.bfloat16)


# -----------------------------------------------------------------------------
# Encoder wrapper.
# -----------------------------------------------------------------------------
def _encoder_impl(graph_x, action, temp_img, edge_index, batch_vec,
                  num_graphs, padded_params, hidden_dim, single_buffer_weights):
    w1p, b1p, w2p, b2p, w3p, b3p = padded_params
    f_pad, h1 = w1p.shape
    h2 = w2p.shape[1]
    hid_pad = w3p.shape[1]

    x = jnp.concatenate([graph_x.astype(jnp.float32),
                         action.astype(jnp.float32),
                         temp_img.astype(jnp.float32)], axis=1)       # [N, f_in]
    n_nodes, f_in = x.shape
    nodes_per_graph = n_nodes // num_graphs

    np_pad = _round_up(max(nodes_per_graph, 16), 8)   # >=16: bf16 sublane packing
    g_tile = _choose_g_tile(num_graphs, np_pad)
    n_tiles = pl.cdiv(num_graphs, g_tile)
    g_pad = n_tiles * g_tile
    r = g_tile * np_pad

    # Stacked node-feature tiles [n_tiles, R, f_pad] (bf16).
    # TODO(synk): allow_input_fusion on xg / a_blocks would let XLA fuse the
    # pad/cast producers into the input DMA instead of a separate HBM round trip.
    x = jnp.pad(x, ((0, 0), (0, f_pad - f_in)))
    xg = x.reshape(num_graphs, nodes_per_graph, f_pad)
    xg = jnp.pad(xg, ((0, g_pad - num_graphs), (0, np_pad - nodes_per_graph), (0, 0)))
    xg = xg.reshape(n_tiles, r, f_pad).astype(jnp.bfloat16)

    # Block-diagonal normalized adjacency tiles [n_tiles, R, R] (bf16).
    a_blocks = _blockdiag_gcn_adjacency(edge_index, batch_vec, nodes_per_graph,
                                        np_pad, g_tile, n_tiles)

    # Mean-pool operands: 0/1 mask P [g_tile, R] (constant across tiles, exact in
    # bf16) and per-graph 1/count scale [g_pad, 1] (f32; 0 for padded graph slots).
    row_ids = jnp.arange(r)
    pmask = ((row_ids[None, :] // np_pad == jnp.arange(g_tile)[:, None]) &
             (row_ids[None, :] % np_pad < nodes_per_graph)).astype(jnp.bfloat16)
    counts = jnp.zeros((g_pad,), jnp.float32).at[batch_vec].add(1.0)
    inv_counts = jnp.where(counts > 0, 1.0 / jnp.maximum(counts, 1.0), 0.0)[:, None]

    # Constant-index weight specs; single-buffered when supported (at production
    # 1024-dim weights, default double-buffering wastes ~6 MB of v7x VMEM).
    wkwargs = dict(pipeline_mode=pl.Buffered(1)) if single_buffer_weights else {}

    def wspec(shape):
        return pl.BlockSpec(shape, lambda t: (0, 0), **wkwargs)

    flops = int(2 * n_tiles * (r * r * f_pad + r * f_pad * h1 + r * r * h1 +
                               r * h1 * h2 + r * h2 * hid_pad + g_tile * r * hid_pad))
    bytes_accessed = int(xg.size * 2 + a_blocks.size * 2 + pmask.size * 2 +
                         inv_counts.size * 4 +
                         (w1p.size + w2p.size + w3p.size) * 2 +
                         (b1p.size + b2p.size + b3p.size) * 4 +
                         g_pad * hid_pad * 4)

    weight_bufs = 1 if single_buffer_weights else 2
    vmem_est = int(2 * (r * f_pad * 2 + r * r * 2 + g_tile * hid_pad * 4)   # tiled x/A/out
                   + 2 * (pmask.size * 2 + g_tile * 4)                      # P / 1-count
                   + weight_bufs * (w1p.size + w2p.size + w3p.size) * 2
                   + weight_bufs * (b1p.size + b2p.size + b3p.size) * 4
                   + 6 * r * max(h1, h2, hid_pad) * 4)                      # f32 temporaries
    vmem_limit = int(min(100 * 1024 * 1024, max(16 * 1024 * 1024, 2 * vmem_est)))

    out = pl.pallas_call(
        cen_gnn_kernel,
        out_shape=jax.ShapeDtypeStruct((g_pad, hid_pad), jnp.float32),
        grid=(n_tiles,),
        in_specs=[
            pl.BlockSpec((None, r, f_pad), lambda t: (t, 0, 0)),    # X tile
            pl.BlockSpec((None, r, r), lambda t: (t, 0, 0)),        # A tile
            pl.BlockSpec((g_tile, r), lambda t: (0, 0)),            # pool mask (constant)
            pl.BlockSpec((g_tile, 1), lambda t: (t, 0)),            # 1/count per graph
            wspec((f_pad, h1)), wspec((1, h1)),                     # W1, b1
            wspec((h1, h2)), wspec((1, h2)),                        # W2, b2
            wspec((h2, hid_pad)), wspec((1, hid_pad)),              # W3, b3
        ],
        out_specs=pl.BlockSpec((g_tile, hid_pad), lambda t: (t, 0)),
        compiler_params=pltpu.CompilerParams(
            dimension_semantics=("parallel",),
            vmem_limit_bytes=vmem_limit),
        cost_estimate=pl.CostEstimate(flops=flops, transcendentals=0,
                                      bytes_accessed=bytes_accessed),
    )(xg, a_blocks, pmask, inv_counts, w1p, b1p, w2p, b2p, w3p, b3p)

    return out[:num_graphs, :hidden_dim]


def cen_gnn_encoder(graph_x, action, temp_img, edge_index, batch_vec,
                    num_graphs, padded_params, hidden_dim):
    try:
        out = _encoder_impl(graph_x, action, temp_img, edge_index, batch_vec,
                            num_graphs, padded_params, hidden_dim,
                            single_buffer_weights=True)
        return jax.block_until_ready(out)
    except Exception:
        # TODO(synk): pipeline_mode=pl.Buffered(1) (single-buffered constant
        # weights; a v7x VMEM saving at production dims) not supported by this
        # jax version -- fall back to default double-buffered weight BlockSpecs.
        out = _encoder_impl(graph_x, action, temp_img, edge_index, batch_vec,
                            num_graphs, padded_params, hidden_dim,
                            single_buffer_weights=False)
        return jax.block_until_ready(out)


# -----------------------------------------------------------------------------
# Pure-JAX reference (dense full-graph matmuls, same matmul order / bf16 casts).
# -----------------------------------------------------------------------------
def _reference(graph_x, action, temp_img, edge_index, batch_vec, num_graphs, params):
    x = jnp.concatenate([graph_x, action, temp_img], axis=1).astype(jnp.float32)
    n = x.shape[0]
    src, dst = edge_index[0], edge_index[1]
    es = (src[:, None] == jnp.arange(n)[None, :]).astype(jnp.float32)
    ed = (dst[:, None] == jnp.arange(n)[None, :]).astype(jnp.float32)
    a = ed.T @ es
    a = jnp.minimum(a + a.T, 1.0) + jnp.eye(n, dtype=jnp.float32)
    deg = a.sum(axis=1)
    dinv = jax.lax.rsqrt(deg)
    a = (a * dinv[:, None] * dinv[None, :]).astype(jnp.bfloat16)

    w1, b1, w2, b2, w3, b3 = params
    w1b, w2b, w3b = (w.astype(jnp.bfloat16) for w in (w1, w2, w3))

    ax = jnp.dot(a, x.astype(jnp.bfloat16), preferred_element_type=jnp.float32)
    h = _leaky_relu(jnp.dot(ax.astype(jnp.bfloat16), w1b,
                            preferred_element_type=jnp.float32) + b1)
    ah = jnp.dot(a, h.astype(jnp.bfloat16), preferred_element_type=jnp.float32)
    h = _leaky_relu(jnp.dot(ah.astype(jnp.bfloat16), w2b,
                            preferred_element_type=jnp.float32) + b2)
    h = _leaky_relu(jnp.dot(h.astype(jnp.bfloat16), w3b,
                            preferred_element_type=jnp.float32) + b3)

    onehot = (batch_vec[None, :] == jnp.arange(num_graphs)[:, None])
    counts = onehot.sum(axis=1, keepdims=True).astype(jnp.float32)
    pooled = jnp.dot(onehot.astype(jnp.bfloat16), h.astype(jnp.bfloat16),
                     preferred_element_type=jnp.float32)
    return pooled / jnp.maximum(counts, 1.0)


if __name__ == "__main__":
    key = jax.random.PRNGKey(0)
    ks = jax.random.split(key, 8)

    # Small shapes scaled down from the 512/1024 originals.
    NUM_GRAPHS = 32            # -> 2 grid steps of 16 graphs (256-row MXU tiles)
    NODES_PER_GRAPH = 6
    N = NUM_GRAPHS * NODES_PER_GRAPH
    F_GRAPH, F_ACT, F_IMG = 32, 16, 16     # concat -> 64 node input features
    F_IN = F_GRAPH + F_ACT + F_IMG
    H1, H2 = 128, 128                      # conv1 / conv2 out (1024 in production)
    HIDDEN = 32                            # hidden_feature_dim
    F_PAD = _round_up(F_IN, 128)
    HID_PAD = _round_up(HIDDEN, 128)

    graph_x = jax.random.normal(ks[0], (N, F_GRAPH), jnp.float32)
    action = jax.random.normal(ks[1], (N, F_ACT), jnp.float32)
    temp_img = jax.random.normal(ks[2], (N, F_IMG), jnp.float32)

    # One-direction ring edges inside each graph (symmetrized in preprocessing).
    src, dst = [], []
    for g in range(NUM_GRAPHS):
        base = g * NODES_PER_GRAPH
        for i in range(NODES_PER_GRAPH):
            src.append(base + i)
            dst.append(base + (i + 1) % NODES_PER_GRAPH)
    edge_index = jnp.array([src, dst], dtype=jnp.int32)
    batch_vec = jnp.repeat(jnp.arange(NUM_GRAPHS, dtype=jnp.int32), NODES_PER_GRAPH)

    # Deterministic parameter init (Glorot-ish scaling), logical (unpadded) dims.
    def init_linear(k, fin, fout):
        kw, kb = jax.random.split(k)
        w = jax.random.normal(kw, (fin, fout), jnp.float32) * (1.0 / jnp.sqrt(fin))
        b = jax.random.normal(kb, (1, fout), jnp.float32) * 0.01
        return w, b

    w1, b1 = init_linear(ks[3], F_IN, H1)
    w2, b2 = init_linear(ks[4], H1, H2)
    w3, b3 = init_linear(ks[5], H2, HIDDEN)
    params = (w1, b1, w2, b2, w3, b3)

    # One-time parameter padding / bf16 cast (hoisted out of the per-call path).
    padded_params = preprocess_params(params, F_IN, F_PAD, HID_PAD)

    out = cen_gnn_encoder(graph_x, action, temp_img, edge_index, batch_vec,
                          NUM_GRAPHS, padded_params, HIDDEN)
    out = jax.block_until_ready(out)

    ref = _reference(graph_x, action, temp_img, edge_index, batch_vec,
                     NUM_GRAPHS, params)
    assert out.shape == (NUM_GRAPHS, HIDDEN)
    assert jnp.allclose(out, ref, rtol=1e-2, atol=1e-2), "mismatch vs JAX reference"

    print("KERNEL_OK")
</pallas_src>

<mosaic_0001>
module attributes {stable_mosaic.version = 11 : i64} {
  func.func @cen_gnn_kernel(%arg0: i32, %arg1: memref<1x256x128xbf16, #tpu.memory_space<vmem>>, %arg2: memref<1x256x256xbf16, #tpu.memory_space<vmem>>, %arg3: memref<16x256xbf16, #tpu.memory_space<vmem>>, %arg4: memref<16x1xf32, #tpu.memory_space<vmem>>, %arg5: memref<128x128xbf16, #tpu.memory_space<vmem>>, %arg6: memref<1x128xf32, #tpu.memory_space<vmem>>, %arg7: memref<128x128xbf16, #tpu.memory_space<vmem>>, %arg8: memref<1x128xf32, #tpu.memory_space<vmem>>, %arg9: memref<128x128xbf16, #tpu.memory_space<vmem>>, %arg10: memref<1x128xf32, #tpu.memory_space<vmem>>, %arg11: memref<16x128xf32, #tpu.memory_space<vmem>>) attributes {dimension_semantics = [#tpu.dimension_semantics<parallel>], iteration_bounds = array<i64: 2>, scalar_prefetch = 0 : i64, scratch_operands = 0 : i64, tpu.core_type = #tpu.core_type<tc>, window_params = [{transform_indices = @transform_0, window_bounds = array<i64: 1, 256, 128>}, {transform_indices = @transform_1, window_bounds = array<i64: 1, 256, 256>}, {pipeline_mode = #tpu.pipeline_mode<synchronous>, transform_indices = @transform_2, window_bounds = array<i64: 16, 256>}, {transform_indices = @transform_3, window_bounds = array<i64: 16, 1>}, {pipeline_mode = #tpu.pipeline_mode<synchronous>, transform_indices = @transform_4, window_bounds = array<i64: 128, 128>}, {pipeline_mode = #tpu.pipeline_mode<synchronous>, transform_indices = @transform_5, window_bounds = array<i64: 1, 128>}, {pipeline_mode = #tpu.pipeline_mode<synchronous>, transform_indices = @transform_6, window_bounds = array<i64: 128, 128>}, {pipeline_mode = #tpu.pipeline_mode<synchronous>, transform_indices = @transform_7, window_bounds = array<i64: 1, 128>}, {pipeline_mode = #tpu.pipeline_mode<synchronous>, transform_indices = @transform_8, window_bounds = array<i64: 128, 128>}, {pipeline_mode = #tpu.pipeline_mode<synchronous>, transform_indices = @transform_9, window_bounds = array<i64: 1, 128>}, {transform_indices = @transform_10, window_bounds = array<i64: 16, 128>}]} {
    %c0 = arith.constant 0 : index
    %c0_0 = arith.constant 0 : index
    %c0_1 = arith.constant 0 : index
    %0 = vector.load %arg2[%c0, %c0_0, %c0_1] : memref<1x256x256xbf16, #tpu.memory_space<vmem>>, vector<1x256x256xbf16>
    %1 = vector.shape_cast %0 : vector<1x256x256xbf16> to vector<256x256xbf16>
    %c0_2 = arith.constant 0 : index
    %c0_3 = arith.constant 0 : index
    %c0_4 = arith.constant 0 : index
    %2 = vector.load %arg1[%c0_2, %c0_3, %c0_4] : memref<1x256x128xbf16, #tpu.memory_space<vmem>>, vector<1x256x128xbf16>
    %3 = vector.shape_cast %2 : vector<1x256x128xbf16> to vector<256x128xbf16>
    %cst = arith.constant dense<0.000000e+00> : vector<256x128xf32>
    %4 = tpu.matmul %1, %3, %cst {dimension_numbers = #tpu.dot_dimension_numbers<[1], [0], [0], [1], [0, 0, 1, 1], [], []>} : vector<256x256xbf16>, vector<256x128xbf16>, vector<256x128xf32> -> vector<256x128xf32>
    %5 = arith.truncf %4 : vector<256x128xf32> to vector<256x128xbf16>
    %c0_5 = arith.constant 0 : index
    %c0_6 = arith.constant 0 : index
    %6 = vector.load %arg5[%c0_5, %c0_6] : memref<128x128xbf16, #tpu.memory_space<vmem>>, vector<128x128xbf16>
    %cst_7 = arith.constant dense<0.000000e+00> : vector<256x128xf32>
    %7 = tpu.matmul %5, %6, %cst_7 {dimension_numbers = #tpu.dot_dimension_numbers<[1], [0], [0], [1], [0, 0, 1, 1], [], []>} : vector<256x128xbf16>, vector<128x128xbf16>, vector<256x128xf32> -> vector<256x128xf32>
    %c0_8 = arith.constant 0 : index
    %c0_9 = arith.constant 0 : index
    %8 = vector.load %arg6[%c0_8, %c0_9] : memref<1x128xf32, #tpu.memory_space<vmem>>, vector<1x128xf32>
    %9 = vector.broadcast %8 : vector<1x128xf32> to vector<256x128xf32>
    %10 = arith.addf %7, %9 : vector<256x128xf32>
    %cst_10 = arith.constant 0.00999999977 : f32
    %11 = vector.broadcast %cst_10 : f32 to vector<256x128xf32>
    %12 = arith.mulf %11, %10 : vector<256x128xf32>
    %13 = arith.maximumf %10, %12 : vector<256x128xf32>
    %14 = arith.truncf %13 : vector<256x128xf32> to vector<256x128xbf16>
    %cst_11 = arith.constant dense<0.000000e+00> : vector<256x128xf32>
    %15 = tpu.matmul %1, %14, %cst_11 {dimension_numbers = #tpu.dot_dimension_numbers<[1], [0], [0], [1], [0, 0, 1, 1], [], []>} : vector<256x256xbf16>, vector<256x128xbf16>, vector<256x128xf32> -> vector<256x128xf32>
    %16 = arith.truncf %15 : vector<256x128xf32> to vector<256x128xbf16>
    %c0_12 = arith.constant 0 : index
    %c0_13 = arith.constant 0 : index
    %17 = vector.load %arg7[%c0_12, %c0_13] : memref<128x128xbf16, #tpu.memory_space<vmem>>, vector<128x128xbf16>
    %cst_14 = arith.constant dense<0.000000e+00> : vector<256x128xf32>
    %18 = tpu.matmul %16, %17, %cst_14 {dimension_numbers = #tpu.dot_dimension_numbers<[1], [0], [0], [1], [0, 0, 1, 1], [], []>} : vector<256x128xbf16>, vector<128x128xbf16>, vector<256x128xf32> -> vector<256x128xf32>
    %c0_15 = arith.constant 0 : index
    %c0_16 = arith.constant 0 : index
    %19 = vector.load %arg8[%c0_15, %c0_16] : memref<1x128xf32, #tpu.memory_space<vmem>>, vector<1x128xf32>
    %20 = vector.broadcast %19 : vector<1x128xf32> to vector<256x128xf32>
    %21 = arith.addf %18, %20 : vector<256x128xf32>
    %cst_17 = arith.constant 0.00999999977 : f32
    %22 = vector.broadcast %cst_17 : f32 to vector<256x128xf32>
    %23 = arith.mulf %22, %21 : vector<256x128xf32>
    %24 = arith.maximumf %21, %23 : vector<256x128xf32>
    %25 = arith.truncf %24 : vector<256x128xf32> to vector<256x128xbf16>
    %c0_18 = arith.constant 0 : index
    %c0_19 = arith.constant 0 : index
    %26 = vector.load %arg9[%c0_18, %c0_19] : memref<128x128xbf16, #tpu.memory_space<vmem>>, vector<128x128xbf16>
    %cst_20 = arith.constant dense<0.000000e+00> : vector<256x128xf32>
    %27 = tpu.matmul %25, %26, %cst_20 {dimension_numbers = #tpu.dot_dimension_numbers<[1], [0], [0], [1], [0, 0, 1, 1], [], []>} : vector<256x128xbf16>, vector<128x128xbf16>, vector<256x128xf32> -> vector<256x128xf32>
    %c0_21 = arith.constant 0 : index
    %c0_22 = arith.constant 0 : index
    %28 = vector.load %arg10[%c0_21, %c0_22] : memref<1x128xf32, #tpu.memory_space<vmem>>, vector<1x128xf32>
    %29 = vector.broadcast %28 : vector<1x128xf32> to vector<256x128xf32>
    %30 = arith.addf %27, %29 : vector<256x128xf32>
    %cst_23 = arith.constant 0.00999999977 : f32
    %31 = vector.broadcast %cst_23 : f32 to vector<256x128xf32>
    %32 = arith.mulf %31, %30 : vector<256x128xf32>
    %33 = arith.maximumf %30, %32 : vector<256x128xf32>
    %c0_24 = arith.constant 0 : index
    %c0_25 = arith.constant 0 : index
    %34 = vector.load %arg3[%c0_24, %c0_25] : memref<16x256xbf16, #tpu.memory_space<vmem>>, vector<16x256xbf16>
    %35 = arith.truncf %33 : vector<256x128xf32> to vector<256x128xbf16>
    %cst_26 = arith.constant dense<0.000000e+00> : vector<16x128xf32>
    %36 = tpu.matmul %34, %35, %cst_26 {dimension_numbers = #tpu.dot_dimension_numbers<[1], [0], [0], [1], [0, 0, 1, 1], [], []>} : vector<16x256xbf16>, vector<256x128xbf16>, vector<16x128xf32> -> vector<16x128xf32>
    %c0_27 = arith.constant 0 : index
    %c0_28 = arith.constant 0 : index
    %37 = vector.load %arg4[%c0_27, %c0_28] : memref<16x1xf32, #tpu.memory_space<vmem>>, vector<16x1xf32>
    %38 = vector.broadcast %37 : vector<16x1xf32> to vector<16x128xf32>
    %39 = arith.mulf %36, %38 : vector<16x128xf32>
    %c0_29 = arith.constant 0 : index
    %c0_30 = arith.constant 0 : index
    %40 = vector.load %arg11[%c0_29, %c0_30] : memref<16x128xf32, #tpu.memory_space<vmem>>, vector<16x128xf32>
    tpu.vector_store %arg11[%c0_29, %c0_30], %39 {strides = array<i32>} : memref<16x128xf32, #tpu.memory_space<vmem>>, vector<16x128xf32>,
    return
  }
  func.func @transform_0(%arg0: i32) -> (i32, i32, i32) {
    %c0_i32 = arith.constant 0 : i32
    %c0_i32_0 = arith.constant 0 : i32
    %c0_i32_1 = arith.constant 0 : i32
    return %arg0, %c0_i32, %c0_i32_0 : i32, i32, i32
  }
  func.func @transform_1(%arg0: i32) -> (i32, i32, i32) {
    %c0_i32 = arith.constant 0 : i32
    %c0_i32_0 = arith.constant 0 : i32
    %c0_i32_1 = arith.constant 0 : i32
    return %arg0, %c0_i32, %c0_i32_0 : i32, i32, i32
  }
  func.func @transform_2(%arg0: i32) -> (i32, i32) {
    %c0_i32 = arith.constant 0 : i32
    %c0_i32_0 = arith.constant 0 : i32
    %c0_i32_1 = arith.constant 0 : i32
    return %c0_i32, %c0_i32_0 : i32, i32
  }
  func.func @transform_3(%arg0: i32) -> (i32, i32) {
    %c0_i32 = arith.constant 0 : i32
    %c0_i32_0 = arith.constant 0 : i32
    return %arg0, %c0_i32 : i32, i32
  }
  func.func @transform_4(%arg0: i32) -> (i32, i32) {
    %c0_i32 = arith.constant 0 : i32
    %c0_i32_0 = arith.constant 0 : i32
    %c0_i32_1 = arith.constant 0 : i32
    return %c0_i32, %c0_i32_0 : i32, i32
  }
  func.func @transform_5(%arg0: i32) -> (i32, i32) {
    %c0_i32 = arith.constant 0 : i32
    %c0_i32_0 = arith.constant 0 : i32
    %c0_i32_1 = arith.constant 0 : i32
    return %c0_i32, %c0_i32_0 : i32, i32
  }
  func.func @transform_6(%arg0: i32) -> (i32, i32) {
    %c0_i32 = arith.constant 0 : i32
    %c0_i32_0 = arith.constant 0 : i32
    %c0_i32_1 = arith.constant 0 : i32
    return %c0_i32, %c0_i32_0 : i32, i32
  }
  func.func @transform_7(%arg0: i32) -> (i32, i32) {
    %c0_i32 = arith.constant 0 : i32
    %c0_i32_0 = arith.constant 0 : i32
    %c0_i32_1 = arith.constant 0 : i32
    return %c0_i32, %c0_i32_0 : i32, i32
  }
  func.func @transform_8(%arg0: i32) -> (i32, i32) {
    %c0_i32 = arith.constant 0 : i32
    %c0_i32_0 = arith.constant 0 : i32
    %c0_i32_1 = arith.constant 0 : i32
    return %c0_i32, %c0_i32_0 : i32, i32
  }
  func.func @transform_9(%arg0: i32) -> (i32, i32) {
    %c0_i32 = arith.constant 0 : i32
    %c0_i32_0 = arith.constant 0 : i32
    %c0_i32_1 = arith.constant 0 : i32
    return %c0_i32, %c0_i32_0 : i32, i32
  }
  func.func @transform_10(%arg0: i32) -> (i32, i32) {
    %c0_i32 = arith.constant 0 : i32
    %c0_i32_0 = arith.constant 0 : i32
    return %arg0, %c0_i32 : i32, i32
  }
}

module attributes {stable_mosaic.version = 11 : i64} {
  func.func @cen_gnn_kernel(%arg0: i32, %arg1: memref<1x256x128xbf16, #tpu.memory_space<vmem>>, %arg2: memref<1x256x256xbf16, #tpu.memory_space<vmem>>, %arg3: memref<16x256xbf16, #tpu.memory_space<vmem>>, %arg4: memref<16x1xf32, #tpu.memory_space<vmem>>, %arg5: memref<128x128xbf16, #tpu.memory_space<vmem>>, %arg6: memref<1x128xf32, #tpu.memory_space<vmem>>, %arg7: memref<128x128xbf16, #tpu.memory_space<vmem>>, %arg8: memref<1x128xf32, #tpu.memory_space<vmem>>, %arg9: memref<128x128xbf16, #tpu.memory_space<vmem>>, %arg10: memref<1x128xf32, #tpu.memory_space<vmem>>, %arg11: memref<16x128xf32, #tpu.memory_space<vmem>>) attributes {dimension_semantics = [#tpu.dimension_semantics<parallel>], iteration_bounds = array<i64: 2>, scalar_prefetch = 0 : i64, scratch_operands = 0 : i64, tpu.core_type = #tpu.core_type<tc>, window_params = [{transform_indices = @transform_0, window_bounds = array<i64: 1, 256, 128>}, {transform_indices = @transform_1, window_bounds = array<i64: 1, 256, 256>}, {pipeline_mode = #tpu.pipeline_mode<synchronous>, transform_indices = @transform_2, window_bounds = array<i64: 16, 256>}, {transform_indices = @transform_3, window_bounds = array<i64: 16, 1>}, {pipeline_mode = #tpu.pipeline_mode<synchronous>, transform_indices = @transform_4, window_bounds = array<i64: 128, 128>}, {pipeline_mode = #tpu.pipeline_mode<synchronous>, transform_indices = @transform_5, window_bounds = array<i64: 1, 128>}, {pipeline_mode = #tpu.pipeline_mode<synchronous>, transform_indices = @transform_6, window_bounds = array<i64: 128, 128>}, {pipeline_mode = #tpu.pipeline_mode<synchronous>, transform_indices = @transform_7, window_bounds = array<i64: 1, 128>}, {pipeline_mode = #tpu.pipeline_mode<synchronous>, transform_indices = @transform_8, window_bounds = array<i64: 128, 128>}, {pipeline_mode = #tpu.pipeline_mode<synchronous>, transform_indices = @transform_9, window_bounds = array<i64: 1, 128>}, {transform_indices = @transform_10, window_bounds = array<i64: 16, 128>}]} {
    %c0 = arith.constant 0 : index
    %c0_0 = arith.constant 0 : index
    %c0_1 = arith.constant 0 : index
    %0 = vector.load %arg2[%c0, %c0_0, %c0_1] : memref<1x256x256xbf16, #tpu.memory_space<vmem>>, vector<1x256x256xbf16>
    %1 = vector.shape_cast %0 : vector<1x256x256xbf16> to vector<256x256xbf16>
    %c0_2 = arith.constant 0 : index
    %c0_3 = arith.constant 0 : index
    %c0_4 = arith.constant 0 : index
    %2 = vector.load %arg1[%c0_2, %c0_3, %c0_4] : memref<1x256x128xbf16, #tpu.memory_space<vmem>>, vector<1x256x128xbf16>
    %3 = vector.shape_cast %2 : vector<1x256x128xbf16> to vector<256x128xbf16>
    %cst = arith.constant dense<0.000000e+00> : vector<256x128xf32>
    %4 = tpu.matmul %1, %3, %cst {dimension_numbers = #tpu.dot_dimension_numbers<[1], [0], [0], [1], [0, 0, 1, 1], [], []>} : vector<256x256xbf16>, vector<256x128xbf16>, vector<256x128xf32> -> vector<256x128xf32>
    %5 = arith.truncf %4 : vector<256x128xf32> to vector<256x128xbf16>
    %c0_5 = arith.constant 0 : index
    %c0_6 = arith.constant 0 : index
    %6 = vector.load %arg5[%c0_5, %c0_6] : memref<128x128xbf16, #tpu.memory_space<vmem>>, vector<128x128xbf16>
    %cst_7 = arith.constant dense<0.000000e+00> : vector<256x128xf32>
    %7 = tpu.matmul %5, %6, %cst_7 {dimension_numbers = #tpu.dot_dimension_numbers<[1], [0], [0], [1], [0, 0, 1, 1], [], []>} : vector<256x128xbf16>, vector<128x128xbf16>, vector<256x128xf32> -> vector<256x128xf32>
    %c0_8 = arith.constant 0 : index
    %c0_9 = arith.constant 0 : index
    %8 = vector.load %arg6[%c0_8, %c0_9] : memref<1x128xf32, #tpu.memory_space<vmem>>, vector<1x128xf32>
    %9 = vector.broadcast %8 : vector<1x128xf32> to vector<256x128xf32>
    %10 = arith.addf %7, %9 : vector<256x128xf32>
    %cst_10 = arith.constant 0.00999999977 : f32
    %11 = vector.broadcast %cst_10 : f32 to vector<256x128xf32>
    %12 = arith.mulf %11, %10 : vector<256x128xf32>
    %13 = arith.maximumf %10, %12 : vector<256x128xf32>
    %14 = arith.truncf %13 : vector<256x128xf32> to vector<256x128xbf16>
    %cst_11 = arith.constant dense<0.000000e+00> : vector<256x128xf32>
    %15 = tpu.matmul %1, %14, %cst_11 {dimension_numbers = #tpu.dot_dimension_numbers<[1], [0], [0], [1], [0, 0, 1, 1], [], []>} : vector<256x256xbf16>, vector<256x128xbf16>, vector<256x128xf32> -> vector<256x128xf32>
    %16 = arith.truncf %15 : vector<256x128xf32> to vector<256x128xbf16>
    %c0_12 = arith.constant 0 : index
    %c0_13 = arith.constant 0 : index
    %17 = vector.load %arg7[%c0_12, %c0_13] : memref<128x128xbf16, #tpu.memory_space<vmem>>, vector<128x128xbf16>
    %cst_14 = arith.constant dense<0.000000e+00> : vector<256x128xf32>
    %18 = tpu.matmul %16, %17, %cst_14 {dimension_numbers = #tpu.dot_dimension_numbers<[1], [0], [0], [1], [0, 0, 1, 1], [], []>} : vector<256x128xbf16>, vector<128x128xbf16>, vector<256x128xf32> -> vector<256x128xf32>
    %c0_15 = arith.constant 0 : index
    %c0_16 = arith.constant 0 : index
    %19 = vector.load %arg8[%c0_15, %c0_16] : memref<1x128xf32, #tpu.memory_space<vmem>>, vector<1x128xf32>
    %20 = vector.broadcast %19 : vector<1x128xf32> to vector<256x128xf32>
    %21 = arith.addf %18, %20 : vector<256x128xf32>
    %cst_17 = arith.constant 0.00999999977 : f32
    %22 = vector.broadcast %cst_17 : f32 to vector<256x128xf32>
    %23 = arith.mulf %22, %21 : vector<256x128xf32>
    %24 = arith.maximumf %21, %23 : vector<256x128xf32>
    %25 = arith.truncf %24 : vector<256x128xf32> to vector<256x128xbf16>
    %c0_18 = arith.constant 0 : index
    %c0_19 = arith.constant 0 : index
    %26 = vector.load %arg9[%c0_18, %c0_19] : memref<128x128xbf16, #tpu.memory_space<vmem>>, vector<128x128xbf16>
    %cst_20 = arith.constant dense<0.000000e+00> : vector<256x128xf32>
    %27 = tpu.matmul %25, %26, %cst_20 {dimension_numbers = #tpu.dot_dimension_numbers<[1], [0], [0], [1], [0, 0, 1, 1], [], []>} : vector<256x128xbf16>, vector<128x128xbf16>, vector<256x128xf32> -> vector<256x128xf32>
    %c0_21 = arith.constant 0 : index
    %c0_22 = arith.constant 0 : index
    %28 = vector.load %arg10[%c0_21, %c0_22] : memref<1x128xf32, #tpu.memory_space<vmem>>, vector<1x128xf32>
    %29 = vector.broadcast %28 : vector<1x128xf32> to vector<256x128xf32>
    %30 = arith.addf %27, %29 : vector<256x128xf32>
    %cst_23 = arith.constant 0.00999999977 : f32
    %31 = vector.broadcast %cst_23 : f32 to vector<256x128xf32>
    %32 = arith.mulf %31, %30 : vector<256x128xf32>
    %33 = arith.maximumf %30, %32 : vector<256x128xf32>
    %c0_24 = arith.constant 0 : index
    %c0_25 = arith.constant 0 : index
    %34 = vector.load %arg3[%c0_24, %c0_25] : memref<16x256xbf16, #tpu.memory_space<vmem>>, vector<16x256xbf16>
    %35 = arith.truncf %33 : vector<256x128xf32> to vector<256x128xbf16>
    %cst_26 = arith.constant dense<0.000000e+00> : vector<16x128xf32>
    %36 = tpu.matmul %34, %35, %cst_26 {dimension_numbers = #tpu.dot_dimension_numbers<[1], [0], [0], [1], [0, 0, 1, 1], [], []>} : vector<16x256xbf16>, vector<256x128xbf16>, vector<16x128xf32> -> vector<16x128xf32>
    %c0_27 = arith.constant 0 : index
    %c0_28 = arith.constant 0 : index
    %37 = vector.load %arg4[%c0_27, %c0_28] : memref<16x1xf32, #tpu.memory_space<vmem>>, vector<16x1xf32>
    %38 = vector.broadcast %37 : vector<16x1xf32> to vector<16x128xf32>
    %39 = arith.mulf %36, %38 : vector<16x128xf32>
    %c0_29 = arith.constant 0 : index
    %c0_30 = arith.constant 0 : index
    %40 = vector.load %arg11[%c0_29, %c0_30] : memref<16x128xf32, #tpu.memory_space<vmem>>, vector<16x128xf32>
    tpu.vector_store %arg11[%c0_29, %c0_30], %39 {strides = array<i32>} : memref<16x128xf32, #tpu.memory_space<vmem>>, vector<16x128xf32>,
    return
  }
  func.func @transform_0(%arg0: i32) -> (i32, i32, i32) {
    %c0_i32 = arith.constant 0 : i32
    %c0_i32_0 = arith.constant 0 : i32
    %c0_i32_1 = arith.constant 0 : i32
    return %arg0, %c0_i32, %c0_i32_0 : i32, i32, i32
  }
  func.func @transform_1(%arg0: i32) -> (i32, i32, i32) {
    %c0_i32 = arith.constant 0 : i32
    %c0_i32_0 = arith.constant 0 : i32
    %c0_i32_1 = arith.constant 0 : i32
    return %arg0, %c0_i32, %c0_i32_0 : i32, i32, i32
  }
  func.func @transform_2(%arg0: i32) -> (i32, i32) {
    %c0_i32 = arith.constant 0 : i32
    %c0_i32_0 = arith.constant 0 : i32
    %c0_i32_1 = arith.constant 0 : i32
    return %c0_i32, %c0_i32_0 : i32, i32
  }
  func.func @transform_3(%arg0: i32) -> (i32, i32) {
    %c0_i32 = arith.constant 0 : i32
    %c0_i32_0 = arith.constant 0 : i32
    return %arg0, %c0_i32 : i32, i32
  }
  func.func @transform_4(%arg0: i32) -> (i32, i32) {
    %c0_i32 = arith.constant 0 : i32
    %c0_i32_0 = arith.constant 0 : i32
    %c0_i32_1 = arith.constant 0 : i32
    return %c0_i32, %c0_i32_0 : i32, i32
  }
  func.func @transform_5(%arg0: i32) -> (i32, i32) {
    %c0_i32 = arith.constant 0 : i32
    %c0_i32_0 = arith.constant 0 : i32
    %c0_i32_1 = arith.constant 0 : i32
    return %c0_i32, %c0_i32_0 : i32, i32
  }
  func.func @transform_6(%arg0: i32) -> (i32, i32) {
    %c0_i32 = arith.constant 0 : i32
    %c0_i32_0 = arith.constant 0 : i32
    %c0_i32_1 = arith.constant 0 : i32
    return %c0_i32, %c0_i32_0 : i32, i32
  }
  func.func @transform_7(%arg0: i32) -> (i32, i32) {
    %c0_i32 = arith.constant 0 : i32
    %c0_i32_0 = arith.constant 0 : i32
    %c0_i32_1 = arith.constant 0 : i32
    return %c0_i32, %c0_i32_0 : i32, i32
  }
  func.func @transform_8(%arg0: i32) -> (i32, i32) {
    %c0_i32 = arith.constant 0 : i32
    %c0_i32_0 = arith.constant 0 : i32
    %c0_i32_1 = arith.constant 0 : i32
    return %c0_i32, %c0_i32_0 : i32, i32
  }
  func.func @transform_9(%arg0: i32) -> (i32, i32) {
    %c0_i32 = arith.constant 0 : i32
    %c0_i32_0 = arith.constant 0 : i32
    %c0_i32_1 = arith.constant 0 : i32
    return %c0_i32, %c0_i32_0 : i32, i32
  }
  func.func @transform_10(%arg0: i32) -> (i32, i32) {
    %c0_i32 = arith.constant 0 : i32
    %c0_i32_0 = arith.constant 0 : i32
    return %arg0, %c0_i32 : i32, i32
  }
}

</mosaic_0001>

<llo_original>
// kernel: tpu_custom_call.1
$region0: #{tpu_custom_call.1}
  #allocation0 [shape = 'u32[]', space=smem, size = 0x4, offset = 0x4, fixed_abs, tag = 'smem constant byte address 0x4 - core index']
  #allocation1 [shape = 'u32[72,128]{1,0:T(1,128)}', space=vmem, size = 0x9000, scoped, tag = 'internal scratch']
  %s0 = inlined_call_operand.hbm [shape: bf16[2,256,128], index: 0, kind: input, shape index: {}]
  %s1 = inlined_call_operand.hbm [shape: bf16[2,256,256], index: 1, kind: input, shape index: {}]
  %s2 = inlined_call_operand.vmem [shape: bf16[16,256], index: 2, kind: input, shape index: {}]
  %s3 = inlined_call_operand.vmem [shape: f32[32,1], index: 3, kind: input, shape index: {}]
  %s4 = inlined_call_operand.hbm [shape: bf16[128,128], index: 4, kind: input, shape index: {}]
  %s5 = inlined_call_operand.vmem [shape: f32[1,128], index: 5, kind: input, shape index: {}]
  %s6 = inlined_call_operand.hbm [shape: bf16[128,128], index: 6, kind: input, shape index: {}]
  %s7 = inlined_call_operand.vmem [shape: f32[1,128], index: 7, kind: input, shape index: {}]
  %s8 = inlined_call_operand.hbm [shape: bf16[128,128], index: 8, kind: input, shape index: {}]
  %s9 = inlined_call_operand.vmem [shape: f32[1,128], index: 9, kind: input, shape index: {}]
  %s10 = inlined_call_operand.hbm [shape: f32[32,128], index: 10, kind: output, shape index: {}]
  %s11 = sld [smem:[#allocation0]]
  $region93: #{tpu_custom_call.1} parent=0
    _
  %s13 = ssub.s32 1, %s11
  %s14 = scalar_select 0, %s13, %s11
  $region1: #{tpu_custom_call.1} parent=0
    #allocation2 [shape = 'u8[131072]{0}', space=vmem, size = 0x20000, scoped, tag = 'input window, operand 0']
    #allocation3 [shape = 's32[2]{0}', space=sflag, size = 0x8, scoped, tag = 'scoped memory for tpu_custom_call.1']
    #allocation4 [shape = 's32[2]{0}', space=sflag, size = 0x8, scoped, tag = 'scoped memory for tpu_custom_call.1']
    #allocation5 [shape = 'u8[262144]{0}', space=vmem, size = 0x40000, scoped, tag = 'input window, operand 1']
    #allocation6 [shape = 's32[2]{0}', space=sflag, size = 0x8, scoped, tag = 'scoped memory for tpu_custom_call.1']
    #allocation7 [shape = 'u8[32768]{0}', space=vmem, size = 0x8000, scoped, tag = 'input window, operand 4, single buffered']
    #allocation8 [shape = 'u8[32768]{0}', space=vmem, size = 0x8000, scoped, tag = 'input window, operand 6, single buffered']
    #allocation9 [shape = 's32[1]{0}', space=sflag, size = 0x4, scoped, tag = 'scoped memory for tpu_custom_call.1']
    #allocation10 [shape = 'u8[32768]{0}', space=vmem, size = 0x8000, scoped, tag = 'input window, operand 8, single buffered']
    #allocation11 [shape = 'u8[16384]{0}', space=vmem, size = 0x4000, scoped, tag = 'output window, operand 0']
    %15 = vsyncpa [#allocation3], 0
    %s16 = scalar_lea.sflag [#allocation3], 1
    %17 = vsyncpa %s16, 0
    %18 = vsyncpa [#allocation6], 0
    %s19 = scalar_lea.sflag [#allocation6], 1
    %20 = vsyncpa %s19, 0
    %21 = vsyncpa [#allocation9], 0
    %22 = vsyncpa [#allocation4], 0
    %s23 = scalar_lea.sflag [#allocation4], 1
    %24 = vsyncpa %s23, 0
    loop: start=0, step=1, limit=4
    $region2: #{tpu_custom_call.1} parent=1 // loop_pre_header
      _
    $region3: #{tpu_custom_call.1} parent=1 // loop_header
      %s26 = sphi 0, %s30
      %p27 = scmp.ge.s32.totalorder %s26, 4
      %s36 = sphi 0, %s38
      %s39 = sphi 0, %s36
      %s40 = sphi 0, %s39
      %s56 = sphi 0, %s40
      %s62 = sphi 0, %s64
      %s65 = sphi 0, %s62
      %s66 = sphi 0, %s65
      %s82 = sphi 0, %s66
      %s86 = sphi 0, %s86
      %s88 = sphi 0, %s86
      %s89 = sphi 0, %s88
      %s103 = sphi 0, %s89
      %s109 = sphi 0, %s111
      %s112 = sphi 0, %s109
      %s113 = sphi 0, %s112
      %s129 = sphi 0, %s113
      %s133 = sphi 0, %s133
      %s135 = sphi 0, %s133
      %s136 = sphi 0, %s135
      %s150 = sphi 0, %s136
      %s154 = sphi 0, %s154
      %s156 = sphi 0, %s154
      %s157 = sphi 0, %s156
      %s171 = sphi 0, %s157
      %s175 = sphi 0, %s175
      %s177 = sphi 0, %s175
      %s178 = sphi 0, %s177
      %s192 = sphi 0, %s178
      %s196 = sphi 0, %s196
      %s198 = sphi 0, %s196
      %s199 = sphi 0, %s198
      %s213 = sphi 0, %s199
      %s217 = sphi 0, %s217
      %s219 = sphi 0, %s217
      %s220 = sphi 0, %s219
      %s234 = sphi 0, %s220
      %s238 = sphi 0, %s238
      %s240 = sphi 0, %s238
      %s241 = sphi 0, %s240
      %s255 = sphi 0, %s241
      %s261 = sphi 0, %s263
      %s264 = sphi 0, %s261
      %s265 = sphi 0, %s264
      %s281 = sphi 0, %s265
    $region4: #{tpu_custom_call.1} parent=1 // loop_header_branch
      %29 = sbr.rel (%p27) target = $region8
    $region5: #{tpu_custom_call.1} parent=1 // loop_body
      %s31 = ssub.s32 %s26, 1
      %s32 = ssub.s32 %s26, 2
      %s33 = sadd.s32 %s26, 1
      %s34 = ssub.s32 %s26, %s33
      %p35 = scmp.eq.s32.totalorder %s34, 0
      %s37 = sadd.s32 %s36, 1
      %s38 = scalar_select %p35, %s36, %s37
      %p41 = pneg %p35
      %p42 = scmp.eq.s32.totalorder %s26, 1
      %p43 = por %p41, %p42
      %p44 = scmp.ne.s32.totalorder %s36, %s39
      %p45 = scmp.eq.s32.totalorder %s26, 0
      %p46 = por %p44, %p45
      %p47 = scmp.ne.s32.totalorder %s36, %s39
      %p48 = scmp.eq.s32.totalorder %s31, 1
      %p49 = por %p47, %p48
      %p50 = scmp.ne.s32.totalorder %s39, %s40
      %p51 = scmp.eq.s32.totalorder %s31, 0
      %p52 = por %p50, %p51
      %p53 = scmp.ne.s32.totalorder %s39, %s40
      %p54 = scmp.eq.s32.totalorder %s32, 1
      %p55 = por %p53, %p54
      %p57 = scmp.ne.s32.totalorder %s40, %s56
      %p58 = scmp.eq.s32.totalorder %s32, 0
      %p59 = por %p57, %p58
      %s60 = ssub.s32 %s26, %s33
      %p61 = scmp.eq.s32.totalorder %s60, 0
      %s63 = sadd.s32 %s62, 1
      %s64 = scalar_select %p61, %s62, %s63
      %p67 = pneg %p61
      %p68 = scmp.eq.s32.totalorder %s26, 1
      %p69 = por %p67, %p68
      %p70 = scmp.ne.s32.totalorder %s62, %s65
      %p71 = scmp.eq.s32.totalorder %s26, 0
      %p72 = por %p70, %p71
      %p73 = scmp.ne.s32.totalorder %s62, %s65
      %p74 = scmp.eq.s32.totalorder %s31, 1
      %p75 = por %p73, %p74
      %p76 = scmp.ne.s32.totalorder %s65, %s66
      %p77 = scmp.eq.s32.totalorder %s31, 0
      %p78 = por %p76, %p77
      %p79 = scmp.ne.s32.totalorder %s65, %s66
      %p80 = scmp.eq.s32.totalorder %s32, 1
      %p81 = por %p79, %p80
      %p83 = scmp.ne.s32.totalorder %s66, %s82
      %p84 = scmp.eq.s32.totalorder %s32, 0
      %p85 = por %p83, %p84
      %s87 = sadd.s32 %s86, 1
      %p90 = scmp.eq.s32.totalorder %s26, 1
      %p91 = scmp.ne.s32.totalorder %s86, %s88
      %p92 = scmp.eq.s32.totalorder %s26, 0
      %p93 = por %p91, %p92
      %p94 = scmp.ne.s32.totalorder %s86, %s88
      %p95 = scmp.eq.s32.totalorder %s31, 1
      %p96 = por %p94, %p95
      %p97 = scmp.ne.s32.totalorder %s88, %s89
      %p98 = scmp.eq.s32.totalorder %s31, 0
      %p99 = por %p97, %p98
      %p100 = scmp.ne.s32.totalorder %s88, %s89
      %p101 = scmp.eq.s32.totalorder %s32, 1
      %p102 = por %p100, %p101
      %p104 = scmp.ne.s32.totalorder %s89, %s103
      %p105 = scmp.eq.s32.totalorder %s32, 0
      %p106 = por %p104, %p105
      %s107 = ssub.s32 %s26, %s33
      %p108 = scmp.eq.s32.totalorder %s107, 0
      %s110 = sadd.s32 %s109, 1
      %s111 = scalar_select %p108, %s109, %s110
      %p114 = pneg %p108
      %p115 = scmp.eq.s32.totalorder %s26, 1
      %p116 = por %p114, %p115
      %p117 = scmp.ne.s32.totalorder %s109, %s112
      %p118 = scmp.eq.s32.totalorder %s26, 0
      %p119 = por %p117, %p118
      %p120 = scmp.ne.s32.totalorder %s109, %s112
      %p121 = scmp.eq.s32.totalorder %s31, 1
      %p122 = por %p120, %p121
      %p123 = scmp.ne.s32.totalorder %s112, %s113
      %p124 = scmp.eq.s32.totalorder %s31, 0
      %p125 = por %p123, %p124
      %p126 = scmp.ne.s32.totalorder %s112, %s113
      %p127 = scmp.eq.s32.totalorder %s32, 1
      %p128 = por %p126, %p127
      %p130 = scmp.ne.s32.totalorder %s113, %s129
      %p131 = scmp.eq.s32.totalorder %s32, 0
      %p132 = por %p130, %p131
      %s134 = sadd.s32 %s133, 1
      %p137 = scmp.eq.s32.totalorder %s26, 1
      %p138 = scmp.ne.s32.totalorder %s133, %s135
      %p139 = scmp.eq.s32.totalorder %s26, 0
      %p140 = por %p138, %p139
      %p141 = scmp.ne.s32.totalorder %s133, %s135
      %p142 = scmp.eq.s32.totalorder %s31, 1
      %p143 = por %p141, %p142
      %p144 = scmp.ne.s32.totalorder %s135, %s136
      %p145 = scmp.eq.s32.totalorder %s31, 0
      %p146 = por %p144, %p145
      %p147 = scmp.ne.s32.totalorder %s135, %s136
      %p148 = scmp.eq.s32.totalorder %s32, 1
      %p149 = por %p147, %p148
      %p151 = scmp.ne.s32.totalorder %s136, %s150
      %p152 = scmp.eq.s32.totalorder %s32, 0
      %p153 = por %p151, %p152
      %s155 = sadd.s32 %s154, 1
      %p158 = scmp.eq.s32.totalorder %s26, 1
      %p159 = scmp.ne.s32.totalorder %s154, %s156
      %p160 = scmp.eq.s32.totalorder %s26, 0
      %p161 = por %p159, %p160
      %p162 = scmp.ne.s32.totalorder %s154, %s156
      %p163 = scmp.eq.s32.totalorder %s31, 1
      %p164 = por %p162, %p163
      %p165 = scmp.ne.s32.totalorder %s156, %s157
      %p166 = scmp.eq.s32.totalorder %s31, 0
      %p167 = por %p165, %p166
      %p168 = scmp.ne.s32.totalorder %s156, %s157
      %p169 = scmp.eq.s32.totalorder %s32, 1
      %p170 = por %p168, %p169
      %p172 = scmp.ne.s32.totalorder %s157, %s171
      %p173 = scmp.eq.s32.totalorder %s32, 0
      %p174 = por %p172, %p173
      %s176 = sadd.s32 %s175, 1
      %p179 = scmp.eq.s32.totalorder %s26, 1
      %p180 = scmp.ne.s32.totalorder %s175, %s177
      %p181 = scmp.eq.s32.totalorder %s26, 0
      %p182 = por %p180, %p181
      %p183 = scmp.ne.s32.totalorder %s175, %s177
      %p184 = scmp.eq.s32.totalorder %s31, 1
      %p185 = por %p183, %p184
      %p186 = scmp.ne.s32.totalorder %s177, %s178
      %p187 = scmp.eq.s32.totalorder %s31, 0
      %p188 = por %p186, %p187
      %p189 = scmp.ne.s32.totalorder %s177, %s178
      %p190 = scmp.eq.s32.totalorder %s32, 1
      %p191 = por %p189, %p190
      %p193 = scmp.ne.s32.totalorder %s178, %s192
      %p194 = scmp.eq.s32.totalorder %s32, 0
      %p195 = por %p193, %p194
      %s197 = sadd.s32 %s196, 1
      %p200 = scmp.eq.s32.totalorder %s26, 1
      %p201 = scmp.ne.s32.totalorder %s196, %s198
      %p202 = scmp.eq.s32.totalorder %s26, 0
      %p203 = por %p201, %p202
      %p204 = scmp.ne.s32.totalorder %s196, %s198
      %p205 = scmp.eq.s32.totalorder %s31, 1
      %p206 = por %p204, %p205
      %p207 = scmp.ne.s32.totalorder %s198, %s199
      %p208 = scmp.eq.s32.totalorder %s31, 0
      %p209 = por %p207, %p208
      %p210 = scmp.ne.s32.totalorder %s198, %s199
      %p211 = scmp.eq.s32.totalorder %s32, 1
      %p212 = por %p210, %p211
      %p214 = scmp.ne.s32.totalorder %s199, %s213
      %p215 = scmp.eq.s32.totalorder %s32, 0
      %p216 = por %p214, %p215
      %s218 = sadd.s32 %s217, 1
      %p221 = scmp.eq.s32.totalorder %s26, 1
      %p222 = scmp.ne.s32.totalorder %s217, %s219
      %p223 = scmp.eq.s32.totalorder %s26, 0
      %p224 = por %p222, %p223
      %p225 = scmp.ne.s32.totalorder %s217, %s219
      %p226 = scmp.eq.s32.totalorder %s31, 1
      %p227 = por %p225, %p226
      %p228 = scmp.ne.s32.totalorder %s219, %s220
      %p229 = scmp.eq.s32.totalorder %s31, 0
      %p230 = por %p228, %p229
      %p231 = scmp.ne.s32.totalorder %s219, %s220
      %p232 = scmp.eq.s32.totalorder %s32, 1
      %p233 = por %p231, %p232
      %p235 = scmp.ne.s32.totalorder %s220, %s234
      %p236 = scmp.eq.s32.totalorder %s32, 0
      %p237 = por %p235, %p236
      %s239 = sadd.s32 %s238, 1
      %p242 = scmp.eq.s32.totalorder %s26, 1
      %p243 = scmp.ne.s32.totalorder %s238, %s240
      %p244 = scmp.eq.s32.totalorder %s26, 0
      %p245 = por %p243, %p244
      %p246 = scmp.ne.s32.totalorder %s238, %s240
      %p247 = scmp.eq.s32.totalorder %s31, 1
      %p248 = por %p246, %p247
      %p249 = scmp.ne.s32.totalorder %s240, %s241
      %p250 = scmp.eq.s32.totalorder %s31, 0
      %p251 = por %p249, %p250
      %p252 = scmp.ne.s32.totalorder %s240, %s241
      %p253 = scmp.eq.s32.totalorder %s32, 1
      %p254 = por %p252, %p253
      %p256 = scmp.ne.s32.totalorder %s241, %s255
      %p257 = scmp.eq.s32.totalorder %s32, 0
      %p258 = por %p256, %p257
      %s259 = ssub.s32 %s26, %s33
      %p260 = scmp.eq.s32.totalorder %s259, 0
      %s262 = sadd.s32 %s261, 1
      %s263 = scalar_select %p260, %s261, %s262
      %p266 = pneg %p260
      %p267 = scmp.eq.s32.totalorder %s26, 1
      %p268 = por %p266, %p267
      %p269 = scmp.ne.s32.totalorder %s261, %s264
      %p270 = scmp.eq.s32.totalorder %s26, 0
      %p271 = por %p269, %p270
      %p272 = scmp.ne.s32.totalorder %s261, %s264
      %p273 = scmp.eq.s32.totalorder %s31, 1
      %p274 = por %p272, %p273
      %p275 = scmp.ne.s32.totalorder %s264, %s265
      %p276 = scmp.eq.s32.totalorder %s31, 0
      %p277 = por %p275, %p276
      %p278 = scmp.ne.s32.totalorder %s264, %s265
      %p279 = scmp.eq.s32.totalorder %s32, 1
      %p280 = por %p278, %p279
      %p282 = scmp.ne.s32.totalorder %s265, %s281
      %p283 = scmp.eq.s32.totalorder %s32, 0
      %p284 = por %p282, %p283
      %p285 = scmp.le.s32.totalorder 1, %s26
      %p286 = scmp.lt.s32.totalorder %s26, 3
      %p287 = pnand %p285, %p286
      %p288 = pneg %p287
      // Predicated region
      $region9: #{tpu_custom_call.1} parent=5 // pred_check
        _
      $region10: #{tpu_custom_call.1} parent=5 // pred_check_branch
        %290 = sbr.rel (%p287) target = $region12
      $region11: #{tpu_custom_call.1} parent=5 // pred_region
        %s291 = ssub.s32 %s26, 1
        // Predicated region
        $region13: #{tpu_custom_call.1} parent=11 // pred_check
          %p292 = pneg %p99
        $region14: #{tpu_custom_call.1} parent=11 // pred_check_branch
          %294 = sbr.rel (%p292) target = $region16
        $region15: #{tpu_custom_call.1} parent=11 // pred_region
          _
        $region16: #{tpu_custom_call.1} parent=11 // pred_fallthru
          _
        // Predicated region
        $region17: #{tpu_custom_call.1} parent=11 // pred_check
          %p295 = pneg %p146
        $region18: #{tpu_custom_call.1} parent=11 // pred_check_branch
          %297 = sbr.rel (%p295) target = $region20
        $region19: #{tpu_custom_call.1} parent=11 // pred_region
          %299 = vsyncadd [#allocation6], 0
          %s300 = sshll.u32 %s4, 4
          %s301 = int_to_ptr.hbm [resolvable:$true] %s300
          %s302 = sshll.u32 [#allocation7], 4
          %s303 = int_to_ptr.vmem [resolvable:$true] %s302
          %308 = dma.hbm_to_vmem [thread:$0]  %s301, 1024, %s303, [#allocation6], 64, 64, 4
        $region20: #{tpu_custom_call.1} parent=11 // pred_fallthru
          _
        // Predicated region
        $region21: #{tpu_custom_call.1} parent=11 // pred_check
          %p309 = pneg %p167
        $region22: #{tpu_custom_call.1} parent=11 // pred_check_branch
          %311 = sbr.rel (%p309) target = $region24
        $region23: #{tpu_custom_call.1} parent=11 // pred_region
          _
        $region24: #{tpu_custom_call.1} parent=11 // pred_fallthru
          _
        // Predicated region
        $region25: #{tpu_custom_call.1} parent=11 // pred_check
          %p312 = pneg %p188
        $region26: #{tpu_custom_call.1} parent=11 // pred_check_branch
          %314 = sbr.rel (%p312) target = $region28
        $region27: #{tpu_custom_call.1} parent=11 // pred_region
          %316 = vsyncadd [#allocation9], 0
          %s317 = sshll.u32 %s6, 4
          %s318 = int_to_ptr.hbm [resolvable:$true] %s317
          %s319 = sshll.u32 [#allocation8], 4
          %s320 = int_to_ptr.vmem [resolvable:$true] %s319
          %325 = dma.hbm_to_vmem [thread:$0]  %s318, 1024, %s320, [#allocation9], 64, 64, 4
        $region28: #{tpu_custom_call.1} parent=11 // pred_fallthru
          _
        // Predicated region
        $region29: #{tpu_custom_call.1} parent=11 // pred_check
          %p326 = pneg %p209
        $region30: #{tpu_custom_call.1} parent=11 // pred_check_branch
          %328 = sbr.rel (%p326) target = $region32
        $region31: #{tpu_custom_call.1} parent=11 // pred_region
          _
        $region32: #{tpu_custom_call.1} parent=11 // pred_fallthru
          _
        // Predicated region
        $region33: #{tpu_custom_call.1} parent=11 // pred_check
          %p329 = pneg %p230
        $region34: #{tpu_custom_call.1} parent=11 // pred_check_branch
          %331 = sbr.rel (%p329) target = $region36
        $region35: #{tpu_custom_call.1} parent=11 // pred_region
          %333 = vsyncadd [#allocation9], 0
          %s334 = sshll.u32 %s8, 4
          %s335 = int_to_ptr.hbm [resolvable:$true] %s334
          %s336 = sshll.u32 [#allocation10], 4
          %s337 = int_to_ptr.vmem [resolvable:$true] %s336
          %342 = dma.hbm_to_vmem [thread:$0]  %s335, 1024, %s337, [#allocation9], 64, 64, 4
        $region36: #{tpu_custom_call.1} parent=11 // pred_fallthru
          _
        // Predicated region
        $region37: #{tpu_custom_call.1} parent=11 // pred_check
          %p343 = pneg %p251
        $region38: #{tpu_custom_call.1} parent=11 // pred_check_branch
          %345 = sbr.rel (%p343) target = $region40
        $region39: #{tpu_custom_call.1} parent=11 // pred_region
          _
        $region40: #{tpu_custom_call.1} parent=11 // pred_fallthru
          _
      $region12: #{tpu_custom_call.1} parent=5 // pred_fallthru
        _
      %p346 = scmp.lt.s32.totalorder %s26, 2
      // Predicated region
      $region41: #{tpu_custom_call.1} parent=5 // pred_check
        %p347 = pneg %p346
      $region42: #{tpu_custom_call.1} parent=5 // pred_check_branch
        %349 = sbr.rel (%p347) target = $region44
      $region43: #{tpu_custom_call.1} parent=5 // pred_region
        // Predicated region
        $region45: #{tpu_custom_call.1} parent=43 // pred_check
          %p350 = pneg %p46
        $region46: #{tpu_custom_call.1} parent=43 // pred_check_branch
          %352 = sbr.rel (%p350) target = $region48
        $region47: #{tpu_custom_call.1} parent=43 // pred_region
          %s353 = sand.u32 %s36, 1
          %s354 = scalar_lea.sflag [#allocation3], %s353
          %s355 = sand.u32 %s36, 1
          %s356 = smul.addr %s355, 128
          %s357 = scalar_lea.vmem [#allocation2], %s356
          %359 = vsyncadd %s354, 0
          %s360 = smul.addr %s26, 32
          %s361 = smul.addr %s360, 4
          %s362 = scalar_lea.hbm %s0, %s361
          %s363 = sshll.u32 %s362, 4
          %s364 = int_to_ptr.hbm [resolvable:$true] %s363
          %s365 = sshll.u32 %s357, 4
          %s366 = int_to_ptr.vmem [resolvable:$true] %s365
          %371 = dma.hbm_to_vmem [thread:$0]  %s364, 2048, %s366, %s354, 64, 64, 4
        $region48: #{tpu_custom_call.1} parent=43 // pred_fallthru
          _
        // Predicated region
        $region49: #{tpu_custom_call.1} parent=43 // pred_check
          %p372 = pneg %p72
        $region50: #{tpu_custom_call.1} parent=43 // pred_check_branch
          %374 = sbr.rel (%p372) target = $region52
        $region51: #{tpu_custom_call.1} parent=43 // pred_region
          %s375 = sand.u32 %s26, 1
          %s376 = scalar_lea.sflag [#allocation6], %s375
          %s377 = sand.u32 %s62, 1
          %s378 = smul.addr %s377, 256
          %s379 = scalar_lea.vmem [#allocation5], %s378
          %381 = vsyncadd %s376, 0
          %s382 = smul.addr %s26, 64
          %s383 = smul.addr %s382, 4
          %s384 = scalar_lea.hbm %s1, %s383
          %s385 = sshll.u32 %s384, 4
          %s386 = int_to_ptr.hbm [resolvable:$true] %s385
          %s387 = sshll.u32 %s379, 4
          %s388 = int_to_ptr.vmem [resolvable:$true] %s387
          %393 = dma.hbm_to_vmem [thread:$0]  %s386, 4096, %s388, %s376, 128, 128, 8
        $region52: #{tpu_custom_call.1} parent=43 // pred_fallthru
          _
        // Predicated region
        $region53: #{tpu_custom_call.1} parent=43 // pred_check
          %p394 = pneg %p119
        $region54: #{tpu_custom_call.1} parent=43 // pred_check_branch
          %396 = sbr.rel (%p394) target = $region56
        $region55: #{tpu_custom_call.1} parent=43 // pred_region
          %s397 = smul.u32 2, %s26
          %p398 = scmp.lt.s32.totalorder %s397, 3
          %s399 = scalar_select %p398, %s397, 3
          %s400 = smul.addr %s399, 8
          %s401 = scalar_lea.vmem %s3, %s400
          %s402 = smul.u32 2, %s26
        $region56: #{tpu_custom_call.1} parent=43 // pred_fallthru
          _
      $region44: #{tpu_custom_call.1} parent=5 // pred_fallthru
        _
      %p403 = scmp.le.s32.totalorder 1, %s26
      %p404 = scmp.lt.s32.totalorder %s26, 3
      %p405 = pnand %p403, %p404
      %p406 = pneg %p405
      // Predicated region
      $region57: #{tpu_custom_call.1} parent=5 // pred_check
        _
      $region58: #{tpu_custom_call.1} parent=5 // pred_check_branch
        %408 = sbr.rel (%p405) target = $region60
      $region59: #{tpu_custom_call.1} parent=5 // pred_region
        %s409 = ssub.s32 %s26, 1
        %s410 = sand.u32 %s39, 1
        %s411 = scalar_lea.sflag [#allocation3], %s410
        %s412 = sand.u32 %s39, 1
        %s413 = smul.addr %s412, 128
        %s414 = scalar_lea.vmem [#allocation2], %s413
        // Predicated region
        $region61: #{tpu_custom_call.1} parent=59 // pred_check
          %p415 = pneg %p52
        $region62: #{tpu_custom_call.1} parent=59 // pred_check_branch
          %417 = sbr.rel (%p415) target = $region64
        $region63: #{tpu_custom_call.1} parent=59 // pred_region
          %419 = dma.done %s411, 2048
        $region64: #{tpu_custom_call.1} parent=59 // pred_fallthru
          _
        %s420 = sand.u32 %s31, 1
        %s421 = scalar_lea.sflag [#allocation6], %s420
        %s422 = sand.u32 %s65, 1
        %s423 = smul.addr %s422, 256
        %s424 = scalar_lea.vmem [#allocation5], %s423
        // Predicated region
        $region65: #{tpu_custom_call.1} parent=59 // pred_check
          %p425 = pneg %p78
        $region66: #{tpu_custom_call.1} parent=59 // pred_check_branch
          %427 = sbr.rel (%p425) target = $region68
        $region67: #{tpu_custom_call.1} parent=59 // pred_region
          %429 = dma.done %s421, 4096
        $region68: #{tpu_custom_call.1} parent=59 // pred_fallthru
          _
        // Predicated region
        $region69: #{tpu_custom_call.1} parent=59 // pred_check
          %p430 = pneg %p146
        $region70: #{tpu_custom_call.1} parent=59 // pred_check_branch
          %432 = sbr.rel (%p430) target = $region72
        $region71: #{tpu_custom_call.1} parent=59 // pred_region
          %434 = dma.done [#allocation6], 1024
        $region72: #{tpu_custom_call.1} parent=59 // pred_fallthru
          _
        // Predicated region
        $region73: #{tpu_custom_call.1} parent=59 // pred_check
          %p435 = pneg %p188
        $region74: #{tpu_custom_call.1} parent=59 // pred_check_branch
          %437 = sbr.rel (%p435) target = $region76
        $region75: #{tpu_custom_call.1} parent=59 // pred_region
          %439 = dma.done [#allocation9], 1024
        $region76: #{tpu_custom_call.1} parent=59 // pred_fallthru
          _
        // Predicated region
        $region77: #{tpu_custom_call.1} parent=59 // pred_check
          %p440 = pneg %p230
        $region78: #{tpu_custom_call.1} parent=59 // pred_check_branch
          %442 = sbr.rel (%p440) target = $region80
        $region79: #{tpu_custom_call.1} parent=59 // pred_region
          %444 = dma.done [#allocation9], 1024
        $region80: #{tpu_custom_call.1} parent=59 // pred_fallthru
          _
        %s445 = sand.u32 %s39, 1
        %s446 = scalar_lea.sflag [#allocation3], %s445
        %s447 = sand.u32 %s39, 1
        %s448 = smul.addr %s447, 128
        %s449 = scalar_lea.vmem [#allocation2], %s448
        %p450 = pneg %p52
        %p451 = pneg %p49
        %s452 = sand.u32 %s31, 1
        %s453 = scalar_lea.sflag [#allocation6], %s452
        %s454 = sand.u32 %s65, 1
        %s455 = smul.addr %s454, 256
        %s456 = scalar_lea.vmem [#allocation5], %s455
        %p457 = pneg %p78
        %p458 = pneg %p75
        %p459 = pneg %p99
        %p460 = pneg %p96
        %s461 = smul.u32 2, %s31
        %p462 = scmp.lt.s32.totalorder %s461, 3
        %s463 = scalar_select %p462, %s461, 3
        %s464 = smul.addr %s463, 8
        %s465 = scalar_lea.vmem %s3, %s464
        %p466 = pneg %p125
        %p467 = pneg %p122
        %p468 = pneg %p146
        %p469 = pneg %p143
        %p470 = pneg %p167
        %p471 = pneg %p164
        %p472 = pneg %p188
        %p473 = pneg %p185
        %p474 = pneg %p209
        %p475 = pneg %p206
        %p476 = pneg %p230
        %p477 = pneg %p227
        %p478 = pneg %p251
        %p479 = pneg %p248
        %p480 = pneg %p277
        %p481 = pneg %p274
        %s482 = sand.u32 %s264, 1
        %s483 = scalar_lea.sflag [#allocation4], %s482
        %s484 = sand.u32 %s264, 1
        %s485 = smul.addr %s484, 16
        %s486 = scalar_lea.vmem [#allocation11], %s485
        %s487 = smul.u32 2, %s31
        %p488 = scmp.lt.s32.totalorder %s487, 3
        %s489 = scalar_select %p488, %s487, 3
        %s490 = smul.addr %s489, 8
        %s491 = scalar_lea.vmem %s3, %s490
        %s492 = smul.u32 2, %s31
        %s493 = smul.u32 2, %s31
        %v494 = vld [vmem:[%s424] sm:$0xff]
        %v495 = vld [vmem:[%s424 + $0x8] sm:$0xff]
        %v496 = vld [vmem:[%s424 + $0x10] sm:$0xff]
        %v497 = vld [vmem:[%s424 + $0x18] sm:$0xff]
        %v498 = vld [vmem:[%s424 + $0x20] sm:$0xff]
        %v499 = vld [vmem:[%s424 + $0x28] sm:$0xff]
        %v500 = vld [vmem:[%s424 + $0x30] sm:$0xff]
        %v501 = vld [vmem:[%s424 + $0x38] sm:$0xff]
        %v502 = vld [vmem:[%s424 + $0x40] sm:$0xff]
        %v503 = vld [vmem:[%s424 + $0x48] sm:$0xff]
        %v504 = vld [vmem:[%s424 + $0x50] sm:$0xff]
        %v505 = vld [vmem:[%s424 + $0x58] sm:$0xff]
        %v506 = vld [vmem:[%s424 + $0x60] sm:$0xff]
        %v507 = vld [vmem:[%s424 + $0x68] sm:$0xff]
        %v508 = vld [vmem:[%s424 + $0x70] sm:$0xff]
        %v509 = vld [vmem:[%s424 + $0x78] sm:$0xff]
        %v510 = vld [vmem:[%s424 + $0x80] sm:$0xff]
        %v511 = vld [vmem:[%s424 + $0x88] sm:$0xff]
        %v512 = vld [vmem:[%s424 + $0x90] sm:$0xff]
        %v513 = vld [vmem:[%s424 + $0x98] sm:$0xff]
        %v514 = vld [vmem:[%s424 + $0xa0] sm:$0xff]
        %v515 = vld [vmem:[%s424 + $0xa8] sm:$0xff]
        %v516 = vld [vmem:[%s424 + $0xb0] sm:$0xff]
        %v517 = vld [vmem:[%s424 + $0xb8] sm:$0xff]
        %v518 = vld [vmem:[%s424 + $0xc0] sm:$0xff]
        %v519 = vld [vmem:[%s424 + $0xc8] sm:$0xff]
        %v520 = vld [vmem:[%s424 + $0xd0] sm:$0xff]
        %v521 = vld [vmem:[%s424 + $0xd8] sm:$0xff]
        %v522 = vld [vmem:[%s424 + $0xe0] sm:$0xff]
        %v523 = vld [vmem:[%s424 + $0xe8] sm:$0xff]
        %v524 = vld [vmem:[%s424 + $0xf0] sm:$0xff]
        %v525 = vld [vmem:[%s424 + $0xf8] sm:$0xff]
        %v526 = vld [vmem:[%s414] sm:$0xf]
        %v527 = vld [vmem:[%s414 + $0x4] sm:$0xf]
        %v528 = vld [vmem:[%s414 + $0x8] sm:$0xf]
        %v529 = vld [vmem:[%s414 + $0xc] sm:$0xf]
        %v530 = vld [vmem:[%s414 + $0x10] sm:$0xf]
        %v531 = vld [vmem:[%s414 + $0x14] sm:$0xf]
        %v532 = vld [vmem:[%s414 + $0x18] sm:$0xf]
        %v533 = vld [vmem:[%s414 + $0x1c] sm:$0xf]
        %v534 = vld [vmem:[%s414 + $0x20] sm:$0xf]
        %v535 = vld [vmem:[%s414 + $0x24] sm:$0xf]
        %v536 = vld [vmem:[%s414 + $0x28] sm:$0xf]
        %v537 = vld [vmem:[%s414 + $0x2c] sm:$0xf]
        %v538 = vld [vmem:[%s414 + $0x30] sm:$0xf]
        %v539 = vld [vmem:[%s414 + $0x34] sm:$0xf]
        %v540 = vld [vmem:[%s414 + $0x38] sm:$0xf]
        %v541 = vld [vmem:[%s414 + $0x3c] sm:$0xf]
        %v542 = vld [vmem:[%s414 + $0x40] sm:$0xf]
        %v543 = vld [vmem:[%s414 + $0x44] sm:$0xf]
        %v544 = vld [vmem:[%s414 + $0x48] sm:$0xf]
        %v545 = vld [vmem:[%s414 + $0x4c] sm:$0xf]
        %v546 = vld [vmem:[%s414 + $0x50] sm:$0xf]
        %v547 = vld [vmem:[%s414 + $0x54] sm:$0xf]
        %v548 = vld [vmem:[%s414 + $0x58] sm:$0xf]
        %v549 = vld [vmem:[%s414 + $0x5c] sm:$0xf]
        %v550 = vld [vmem:[%s414 + $0x60] sm:$0xf]
        %v551 = vld [vmem:[%s414 + $0x64] sm:$0xf]
        %v552 = vld [vmem:[%s414 + $0x68] sm:$0xf]
        %v553 = vld [vmem:[%s414 + $0x6c] sm:$0xf]
        %v554 = vld [vmem:[%s414 + $0x70] sm:$0xf]
        %v555 = vld [vmem:[%s414 + $0x74] sm:$0xf]
        %v556 = vld [vmem:[%s414 + $0x78] sm:$0xf]
        %v557 = vld [vmem:[%s414 + $0x7c] sm:$0xf]
        %v590 = vunpack.c.l.b16 %v494
        %v591 = vunpack.c.h.b16 %v494
        %v592 = vunpack.c.l.b16 %v495
        %v593 = vunpack.c.h.b16 %v495
        %v594 = vunpack.c.l.b16 %v496
        %v595 = vunpack.c.h.b16 %v496
        %v596 = vunpack.c.l.b16 %v497
        %v597 = vunpack.c.h.b16 %v497
        %v598 = vunpack.c.l.b16 %v498
        %v599 = vunpack.c.h.b16 %v498
        %v600 = vunpack.c.l.b16 %v499
        %v601 = vunpack.c.h.b16 %v499
        %v602 = vunpack.c.l.b16 %v500
        %v603 = vunpack.c.h.b16 %v500
        %v604 = vunpack.c.l.b16 %v501
        %v605 = vunpack.c.h.b16 %v501
        %v606 = vunpack.c.l.b16 %v502
        %v607 = vunpack.c.h.b16 %v502
        %v608 = vunpack.c.l.b16 %v503
        %v609 = vunpack.c.h.b16 %v503
        %v610 = vunpack.c.l.b16 %v504
        %v611 = vunpack.c.h.b16 %v504
        %v612 = vunpack.c.l.b16 %v505
        %v613 = vunpack.c.h.b16 %v505
        %v614 = vunpack.c.l.b16 %v506
        %v615 = vunpack.c.h.b16 %v506
        %v616 = vunpack.c.l.b16 %v507
        %v617 = vunpack.c.h.b16 %v507
        %v618 = vunpack.c.l.b16 %v508
        %v619 = vunpack.c.h.b16 %v508
        %v620 = vunpack.c.l.b16 %v509
        %v621 = vunpack.c.h.b16 %v509
        %v622 = vunpack.c.l.b16 %v510
        %v623 = vunpack.c.h.b16 %v510
        %v624 = vunpack.c.l.b16 %v511
        %v625 = vunpack.c.h.b16 %v511
        %v626 = vunpack.c.l.b16 %v512
        %v627 = vunpack.c.h.b16 %v512
        %v628 = vunpack.c.l.b16 %v513
        %v629 = vunpack.c.h.b16 %v513
        %v630 = vunpack.c.l.b16 %v514
        %v631 = vunpack.c.h.b16 %v514
        %v632 = vunpack.c.l.b16 %v515
        %v633 = vunpack.c.h.b16 %v515
        %v634 = vunpack.c.l.b16 %v516
        %v635 = vunpack.c.h.b16 %v516
        %v636 = vunpack.c.l.b16 %v517
        %v637 = vunpack.c.h.b16 %v517
        %v638 = vunpack.c.l.b16 %v518
        %v639 = vunpack.c.h.b16 %v518
        %v640 = vunpack.c.l.b16 %v519
        %v641 = vunpack.c.h.b16 %v519
        %v642 = vunpack.c.l.b16 %v520
        %v643 = vunpack.c.h.b16 %v520
        %v644 = vunpack.c.l.b16 %v521
        %v645 = vunpack.c.h.b16 %v521
        %v646 = vunpack.c.l.b16 %v522
        %v647 = vunpack.c.h.b16 %v522
        %v648 = vunpack.c.l.b16 %v523
        %v649 = vunpack.c.h.b16 %v523
        %v650 = vunpack.c.l.b16 %v524
        %v651 = vunpack.c.h.b16 %v524
        %v652 = vunpack.c.l.b16 %v525
        %v653 = vunpack.c.h.b16 %v525
        %v654 = vpack.c.b16 %v592, %v590
        %v655 = vpack.c.b16 %v593, %v591
        %v656 = vpack.c.b16 %v596, %v594
        %v657 = vpack.c.b16 %v597, %v595
        %v658 = vpack.c.b16 %v600, %v598
        %v659 = vpack.c.b16 %v601, %v599
        %v660 = vpack.c.b16 %v604, %v602
        %v661 = vpack.c.b16 %v605, %v603
        %v662 = vpack.c.b16 %v608, %v606
        %v663 = vpack.c.b16 %v609, %v607
        %v664 = vpack.c.b16 %v612, %v610
        %v665 = vpack.c.b16 %v613, %v611
        %v666 = vpack.c.b16 %v616, %v614
        %v667 = vpack.c.b16 %v617, %v615
        %v668 = vpack.c.b16 %v620, %v618
        %v669 = vpack.c.b16 %v621, %v619
        %v670 = vpack.c.b16 %v624, %v622
        %v671 = vpack.c.b16 %v625, %v623
        %v672 = vpack.c.b16 %v628, %v626
        %v673 = vpack.c.b16 %v629, %v627
        %v674 = vpack.c.b16 %v632, %v630
        %v675 = vpack.c.b16 %v633, %v631
        %v676 = vpack.c.b16 %v636, %v634
        %v677 = vpack.c.b16 %v637, %v635
        %v678 = vpack.c.b16 %v640, %v638
        %v679 = vpack.c.b16 %v641, %v639
        %v680 = vpack.c.b16 %v644, %v642
        %v681 = vpack.c.b16 %v645, %v643
        %v682 = vpack.c.b16 %v648, %v646
        %v683 = vpack.c.b16 %v649, %v647
        %v684 = vpack.c.b16 %v652, %v650
        %v685 = vpack.c.b16 %v653, %v651
        %v750 = vunpack.c.l.b16 %v526
        %v751 = vunpack.c.l.b16 %v527
        %v752 = vunpack.c.l.b16 %v528
        %v753 = vunpack.c.l.b16 %v529
        %v754 = vunpack.c.l.b16 %v530
        %v755 = vunpack.c.l.b16 %v531
        %v756 = vunpack.c.l.b16 %v532
        %v757 = vunpack.c.l.b16 %v533
        %v758 = vunpack.c.l.b16 %v534
        %v759 = vunpack.c.l.b16 %v535
        %v760 = vunpack.c.l.b16 %v536
        %v761 = vunpack.c.l.b16 %v537
        %v762 = vunpack.c.l.b16 %v538
        %v763 = vunpack.c.l.b16 %v539
        %v764 = vunpack.c.l.b16 %v540
        %v765 = vunpack.c.l.b16 %v541
        %v766 = vunpack.c.l.b16 %v542
        %v767 = vunpack.c.l.b16 %v543
        %v768 = vunpack.c.l.b16 %v544
        %v769 = vunpack.c.l.b16 %v545
        %v770 = vunpack.c.l.b16 %v546
        %v771 = vunpack.c.l.b16 %v547
        %v772 = vunpack.c.l.b16 %v548
        %v773 = vunpack.c.l.b16 %v549
        %v774 = vunpack.c.l.b16 %v550
        %v775 = vunpack.c.l.b16 %v551
        %v776 = vunpack.c.l.b16 %v552
        %v777 = vunpack.c.l.b16 %v553
        %v778 = vunpack.c.l.b16 %v554
        %v779 = vunpack.c.l.b16 %v555
        %v780 = vunpack.c.l.b16 %v556
        %v781 = vunpack.c.l.b16 %v557
        %v782 = vpack.c.b16 %v751, %v750
        %v783 = vpack.c.b16 %v753, %v752
        %v784 = vpack.c.b16 %v755, %v754
        %v785 = vpack.c.b16 %v757, %v756
        %v786 = vpack.c.b16 %v759, %v758
        %v787 = vpack.c.b16 %v761, %v760
        %v788 = vpack.c.b16 %v763, %v762
        %v789 = vpack.c.b16 %v765, %v764
        %v790 = vpack.c.b16 %v767, %v766
        %v791 = vpack.c.b16 %v769, %v768
        %v792 = vpack.c.b16 %v771, %v770
        %v793 = vpack.c.b16 %v773, %v772
        %v794 = vpack.c.b16 %v775, %v774
        %v795 = vpack.c.b16 %v777, %v776
        %v796 = vpack.c.b16 %v779, %v778
        %v797 = vpack.c.b16 %v781, %v780
        %814 = vmatpush.bf16.msra.mxu0 %v789
        %815 = vmatpush.bf16.msra.mxu0 %v788
        %816 = vmatpush.bf16.msra.mxu0 %v787
        %817 = vmatpush.bf16.msra.mxu0 %v786
        %818 = vmatpush.bf16.msra.mxu0 %v785
        %819 = vmatpush.bf16.msra.mxu0 %v784
        %820 = vmatpush.bf16.msra.mxu0 %v783
        %821 = vmatpush.bf16.msra.mxu0 %v782
        %822 = vmatmul.bf16.gmra.mxu0 %v654
        %v823 = vpop.f32.mrf.mxu0
        %v824 = vadd.f32 0.0, %v823
        %v825 = vpop.f32.mrf.mxu0
        %v826 = vadd.f32 0.0, %v825
        %827 = vmatmul.bf16.gmra.mxu0 %v656
        %v828 = vpop.f32.mrf.mxu0
        %v829 = vadd.f32 0.0, %v828
        %v830 = vpop.f32.mrf.mxu0
        %v831 = vadd.f32 0.0, %v830
        %832 = vmatmul.bf16.gmra.mxu0 %v658
        %v833 = vpop.f32.mrf.mxu0
        %v834 = vadd.f32 0.0, %v833
        %v835 = vpop.f32.mrf.mxu0
        %v836 = vadd.f32 0.0, %v835
        %837 = vmatmul.bf16.gmra.mxu0 %v660
        %v838 = vpop.f32.mrf.mxu0
        %v839 = vadd.f32 0.0, %v838
        %v840 = vpop.f32.mrf.mxu0
        %v841 = vadd.f32 0.0, %v840
        %842 = vmatmul.bf16.gmra.mxu0 %v662
        %v843 = vpop.f32.mrf.mxu0
        %v844 = vadd.f32 0.0, %v843
        %v845 = vpop.f32.mrf.mxu0
        %v846 = vadd.f32 0.0, %v845
        %847 = vmatmul.bf16.gmra.mxu0 %v664
        %v848 = vpop.f32.mrf.mxu0
        %v849 = vadd.f32 0.0, %v848
        %v850 = vpop.f32.mrf.mxu0
        %v851 = vadd.f32 0.0, %v850
        %852 = vmatmul.bf16.gmra.mxu0 %v666
        %v853 = vpop.f32.mrf.mxu0
        %v854 = vadd.f32 0.0, %v853
        %v855 = vpop.f32.mrf.mxu0
        %v856 = vadd.f32 0.0, %v855
        %857 = vmatmul.bf16.gmra.mxu0 %v668
        %v858 = vpop.f32.mrf.mxu0
        %v859 = vadd.f32 0.0, %v858
        %v860 = vpop.f32.mrf.mxu0
        %v861 = vadd.f32 0.0, %v860
        %862 = vmatmul.bf16.gmra.mxu0 %v670
        %v863 = vpop.f32.mrf.mxu0
        %v864 = vadd.f32 0.0, %v863
        %v865 = vpop.f32.mrf.mxu0
        %v866 = vadd.f32 0.0, %v865
        %867 = vmatmul.bf16.gmra.mxu0 %v672
        %v868 = vpop.f32.mrf.mxu0
        %v869 = vadd.f32 0.0, %v868
        %v870 = vpop.f32.mrf.mxu0
        %v871 = vadd.f32 0.0, %v870
        %872 = vmatmul.bf16.gmra.mxu0 %v674
        %v873 = vpop.f32.mrf.mxu0
        %v874 = vadd.f32 0.0, %v873
        %v875 = vpop.f32.mrf.mxu0
        %v876 = vadd.f32 0.0, %v875
        %877 = vmatmul.bf16.gmra.mxu0 %v676
        %v878 = vpop.f32.mrf.mxu0
        %v879 = vadd.f32 0.0, %v878
        %v880 = vpop.f32.mrf.mxu0
        %v881 = vadd.f32 0.0, %v880
        %882 = vmatmul.bf16.gmra.mxu0 %v678
        %v883 = vpop.f32.mrf.mxu0
        %v884 = vadd.f32 0.0, %v883
        %v885 = vpop.f32.mrf.mxu0
        %v886 = vadd.f32 0.0, %v885
        %887 = vmatmul.bf16.gmra.mxu0 %v680
        %v888 = vpop.f32.mrf.mxu0
        %v889 = vadd.f32 0.0, %v888
        %v890 = vpop.f32.mrf.mxu0
        %v891 = vadd.f32 0.0, %v890
        %892 = vmatmul.bf16.gmra.mxu0 %v682
        %v893 = vpop.f32.mrf.mxu0
        %v894 = vadd.f32 0.0, %v893
        %v895 = vpop.f32.mrf.mxu0
        %v896 = vadd.f32 0.0, %v895
        %897 = vmatmul.bf16.gmra.mxu0 %v684
        %v898 = vpop.f32.mrf.mxu0
        %v899 = vadd.f32 0.0, %v898
        %v900 = vpop.f32.mrf.mxu0
        %v901 = vadd.f32 0.0, %v900
        %902 = vdwg.mxu0
        %903 = vmatpush.bf16.msra.mxu0 %v797
        %904 = vmatpush.bf16.msra.mxu0 %v796
        %905 = vmatpush.bf16.msra.mxu0 %v795
        %906 = vmatpush.bf16.msra.mxu0 %v794
        %907 = vmatpush.bf16.msra.mxu0 %v793
        %908 = vmatpush.bf16.msra.mxu0 %v792
        %909 = vmatpush.bf16.msra.mxu0 %v791
        %910 = vmatpush.bf16.msra.mxu0 %v790
        %911 = vmatmul.bf16.gmra.mxu0 %v655
        %v912 = vpop.f32.mrf.mxu0
        %v913 = vadd.f32 %v824, %v912
        %v914 = vpop.f32.mrf.mxu0
        %v915 = vadd.f32 %v826, %v914
        %916 = vmatmul.bf16.gmra.mxu0 %v657
        %v917 = vpop.f32.mrf.mxu0
        %v918 = vadd.f32 %v829, %v917
        %v919 = vpop.f32.mrf.mxu0
        %v920 = vadd.f32 %v831, %v919
        %921 = vmatmul.bf16.gmra.mxu0 %v659
        %v922 = vpop.f32.mrf.mxu0
        %v923 = vadd.f32 %v834, %v922
        %v924 = vpop.f32.mrf.mxu0
        %v925 = vadd.f32 %v836, %v924
        %926 = vmatmul.bf16.gmra.mxu0 %v661
        %v927 = vpop.f32.mrf.mxu0
        %v928 = vadd.f32 %v839, %v927
        %v929 = vpop.f32.mrf.mxu0
        %v930 = vadd.f32 %v841, %v929
        %931 = vmatmul.bf16.gmra.mxu0 %v663
        %v932 = vpop.f32.mrf.mxu0
        %v933 = vadd.f32 %v844, %v932
        %v934 = vpop.f32.mrf.mxu0
        %v935 = vadd.f32 %v846, %v934
        %936 = vmatmul.bf16.gmra.mxu0 %v665
        %v937 = vpop.f32.mrf.mxu0
        %v938 = vadd.f32 %v849, %v937
        %v939 = vpop.f32.mrf.mxu0
        %v940 = vadd.f32 %v851, %v939
        %941 = vmatmul.bf16.gmra.mxu0 %v667
        %v942 = vpop.f32.mrf.mxu0
        %v943 = vadd.f32 %v854, %v942
        %v944 = vpop.f32.mrf.mxu0
        %v945 = vadd.f32 %v856, %v944
        %946 = vmatmul.bf16.gmra.mxu0 %v669
        %v947 = vpop.f32.mrf.mxu0
        %v948 = vadd.f32 %v859, %v947
        %v949 = vpop.f32.mrf.mxu0
        %v950 = vadd.f32 %v861, %v949
        %951 = vmatmul.bf16.gmra.mxu0 %v671
        %v952 = vpop.f32.mrf.mxu0
        %v953 = vadd.f32 %v864, %v952
        %v954 = vpop.f32.mrf.mxu0
        %v955 = vadd.f32 %v866, %v954
        %956 = vmatmul.bf16.gmra.mxu0 %v673
        %v957 = vpop.f32.mrf.mxu0
        %v958 = vadd.f32 %v869, %v957
        %v959 = vpop.f32.mrf.mxu0
        %v960 = vadd.f32 %v871, %v959
        %961 = vmatmul.bf16.gmra.mxu0 %v675
        %v962 = vpop.f32.mrf.mxu0
        %v963 = vadd.f32 %v874, %v962
        %v964 = vpop.f32.mrf.mxu0
        %v965 = vadd.f32 %v876, %v964
        %966 = vmatmul.bf16.gmra.mxu0 %v677
        %v967 = vpop.f32.mrf.mxu0
        %v968 = vadd.f32 %v879, %v967
        %v969 = vpop.f32.mrf.mxu0
        %v970 = vadd.f32 %v881, %v969
        %971 = vmatmul.bf16.gmra.mxu0 %v679
        %v972 = vpop.f32.mrf.mxu0
        %v973 = vadd.f32 %v884, %v972
        %v974 = vpop.f32.mrf.mxu0
        %v975 = vadd.f32 %v886, %v974
        %976 = vmatmul.bf16.gmra.mxu0 %v681
        %v977 = vpop.f32.mrf.mxu0
        %v978 = vadd.f32 %v889, %v977
        %v979 = vpop.f32.mrf.mxu0
        %v980 = vadd.f32 %v891, %v979
        %981 = vmatmul.bf16.gmra.mxu0 %v683
        %v982 = vpop.f32.mrf.mxu0
        %v983 = vadd.f32 %v894, %v982
        %v984 = vpop.f32.mrf.mxu0
        %v985 = vadd.f32 %v896, %v984
        %986 = vmatmul.bf16.gmra.mxu0 %v685
        %v987 = vpop.f32.mrf.mxu0
        %v988 = vadd.f32 %v899, %v987
        %v989 = vpop.f32.mrf.mxu0
        %v990 = vadd.f32 %v901, %v989
        %991 = vdwg.mxu0
        %v992 = vpack.c.bf16 %v915, %v913
        %v993 = vpack.c.bf16 %v920, %v918
        %v994 = vpack.c.bf16 %v925, %v923
        %v995 = vpack.c.bf16 %v930, %v928
        %v996 = vpack.c.bf16 %v935, %v933
        %v997 = vpack.c.bf16 %v940, %v938
        %v998 = vpack.c.bf16 %v945, %v943
        %v999 = vpack.c.bf16 %v950, %v948
        %v1000 = vpack.c.bf16 %v955, %v953
        %v1001 = vpack.c.bf16 %v960, %v958
        %v1002 = vpack.c.bf16 %v965, %v963
        %v1003 = vpack.c.bf16 %v970, %v968
        %v1004 = vpack.c.bf16 %v975, %v973
        %v1005 = vpack.c.bf16 %v980, %v978
        %v1006 = vpack.c.bf16 %v985, %v983
        %v1007 = vpack.c.bf16 %v990, %v988
        %v1008 = vld [vmem:[#allocation7] sm:$0xf]
        %v1009 = vld [vmem:[#allocation7 + $0x4] sm:$0xf]
        %v1010 = vld [vmem:[#allocation7 + $0x8] sm:$0xf]
        %v1011 = vld [vmem:[#allocation7 + $0xc] sm:$0xf]
        %v1012 = vld [vmem:[#allocation7 + $0x10] sm:$0xf]
        %v1013 = vld [vmem:[#allocation7 + $0x14] sm:$0xf]
        %v1014 = vld [vmem:[#allocation7 + $0x18] sm:$0xf]
        %v1015 = vld [vmem:[#allocation7 + $0x1c] sm:$0xf]
        %v1016 = vld [vmem:[#allocation7 + $0x20] sm:$0xf]
        %v1017 = vld [vmem:[#allocation7 + $0x24] sm:$0xf]
        %v1018 = vld [vmem:[#allocation7 + $0x28] sm:$0xf]
        %v1019 = vld [vmem:[#allocation7 + $0x2c] sm:$0xf]
        %v1020 = vld [vmem:[#allocation7 + $0x30] sm:$0xf]
        %v1021 = vld [vmem:[#allocation7 + $0x34] sm:$0xf]
        %v1022 = vld [vmem:[#allocation7 + $0x38] sm:$0xf]
        %v1023 = vld [vmem:[#allocation7 + $0x3c] sm:$0xf]
        %v1024 = vld [vmem:[%s5] sm:$0x1]
        %v1026 = vperm.slane %v1024, 0
        %v1044 = vunpack.c.l.b16 %v1008
        %v1045 = vunpack.c.l.b16 %v1009
        %v1046 = vunpack.c.l.b16 %v1010
        %v1047 = vunpack.c.l.b16 %v1011
        %v1048 = vunpack.c.l.b16 %v1012
        %v1049 = vunpack.c.l.b16 %v1013
        %v1050 = vunpack.c.l.b16 %v1014
        %v1051 = vunpack.c.l.b16 %v1015
        %v1052 = vunpack.c.l.b16 %v1016
        %v1053 = vunpack.c.l.b16 %v1017
        %v1054 = vunpack.c.l.b16 %v1018
        %v1055 = vunpack.c.l.b16 %v1019
        %v1056 = vunpack.c.l.b16 %v1020
        %v1057 = vunpack.c.l.b16 %v1021
        %v1058 = vunpack.c.l.b16 %v1022
        %v1059 = vunpack.c.l.b16 %v1023
        %v1060 = vpack.c.b16 %v1045, %v1044
        %v1061 = vpack.c.b16 %v1047, %v1046
        %v1062 = vpack.c.b16 %v1049, %v1048
        %v1063 = vpack.c.b16 %v1051, %v1050
        %v1064 = vpack.c.b16 %v1053, %v1052
        %v1065 = vpack.c.b16 %v1055, %v1054
        %v1066 = vpack.c.b16 %v1057, %v1056
        %v1067 = vpack.c.b16 %v1059, %v1058
        %1076 = vmatpush.bf16.msra.mxu0 %v1067
        %1077 = vmatpush.bf16.msra.mxu0 %v1066
        %1078 = vmatpush.bf16.msra.mxu0 %v1065
        %1079 = vmatpush.bf16.msra.mxu0 %v1064
        %1080 = vmatpush.bf16.msra.mxu0 %v1063
        %1081 = vmatpush.bf16.msra.mxu0 %v1062
        %1082 = vmatpush.bf16.msra.mxu0 %v1061
        %1083 = vmatpush.bf16.msra.mxu0 %v1060
        %1084 = vmatmul.bf16.gmra.mxu0 %v992
        %v1085 = vpop.f32.mrf.mxu0
        %v1086 = vadd.f32 %v1026, %v1085
        %v1087 = vpop.f32.mrf.mxu0
        %v1088 = vadd.f32 %v1026, %v1087
        %1089 = vmatmul.bf16.gmra.mxu0 %v993
        %v1090 = vpop.f32.mrf.mxu0
        %v1091 = vadd.f32 %v1026, %v1090
        %v1092 = vpop.f32.mrf.mxu0
        %v1093 = vadd.f32 %v1026, %v1092
        %1094 = vmatmul.bf16.gmra.mxu0 %v994
        %v1095 = vpop.f32.mrf.mxu0
        %v1096 = vadd.f32 %v1026, %v1095
        %v1097 = vpop.f32.mrf.mxu0
        %v1098 = vadd.f32 %v1026, %v1097
        %1099 = vmatmul.bf16.gmra.mxu0 %v995
        %v1100 = vpop.f32.mrf.mxu0
        %v1101 = vadd.f32 %v1026, %v1100
        %v1102 = vpop.f32.mrf.mxu0
        %v1103 = vadd.f32 %v1026, %v1102
        %1104 = vmatmul.bf16.gmra.mxu0 %v996
        %v1105 = vpop.f32.mrf.mxu0
        %v1106 = vadd.f32 %v1026, %v1105
        %v1107 = vpop.f32.mrf.mxu0
        %v1108 = vadd.f32 %v1026, %v1107
        %1109 = vmatmul.bf16.gmra.mxu0 %v997
        %v1110 = vpop.f32.mrf.mxu0
        %v1111 = vadd.f32 %v1026, %v1110
        %v1112 = vpop.f32.mrf.mxu0
        %v1113 = vadd.f32 %v1026, %v1112
        %1114 = vmatmul.bf16.gmra.mxu0 %v998
        %v1115 = vpop.f32.mrf.mxu0
        %v1116 = vadd.f32 %v1026, %v1115
        %v1117 = vpop.f32.mrf.mxu0
        %v1118 = vadd.f32 %v1026, %v1117
        %1119 = vmatmul.bf16.gmra.mxu0 %v999
        %v1120 = vpop.f32.mrf.mxu0
        %v1121 = vadd.f32 %v1026, %v1120
        %v1122 = vpop.f32.mrf.mxu0
        %v1123 = vadd.f32 %v1026, %v1122
        %1124 = vmatmul.bf16.gmra.mxu0 %v1000
        %v1125 = vpop.f32.mrf.mxu0
        %v1126 = vadd.f32 %v1026, %v1125
        %v1127 = vpop.f32.mrf.mxu0
        %v1128 = vadd.f32 %v1026, %v1127
        %1129 = vmatmul.bf16.gmra.mxu0 %v1001
        %v1130 = vpop.f32.mrf.mxu0
        %v1131 = vadd.f32 %v1026, %v1130
        %v1132 = vpop.f32.mrf.mxu0
        %v1133 = vadd.f32 %v1026, %v1132
        %1134 = vmatmul.bf16.gmra.mxu0 %v1002
        %v1135 = vpop.f32.mrf.mxu0
        %v1136 = vadd.f32 %v1026, %v1135
        %v1137 = vpop.f32.mrf.mxu0
        %v1138 = vadd.f32 %v1026, %v1137
        %1139 = vmatmul.bf16.gmra.mxu0 %v1003
        %v1140 = vpop.f32.mrf.mxu0
        %v1141 = vadd.f32 %v1026, %v1140
        %v1142 = vpop.f32.mrf.mxu0
        %v1143 = vadd.f32 %v1026, %v1142
        %1144 = vmatmul.bf16.gmra.mxu0 %v1004
        %v1145 = vpop.f32.mrf.mxu0
        %v1146 = vadd.f32 %v1026, %v1145
        %v1147 = vpop.f32.mrf.mxu0
        %v1148 = vadd.f32 %v1026, %v1147
        %1149 = vmatmul.bf16.gmra.mxu0 %v1005
        %v1150 = vpop.f32.mrf.mxu0
        %v1151 = vadd.f32 %v1026, %v1150
        %v1152 = vpop.f32.mrf.mxu0
        %v1153 = vadd.f32 %v1026, %v1152
        %1154 = vmatmul.bf16.gmra.mxu0 %v1006
        %v1155 = vpop.f32.mrf.mxu0
        %v1156 = vadd.f32 %v1026, %v1155
        %v1157 = vpop.f32.mrf.mxu0
        %v1158 = vadd.f32 %v1026, %v1157
        %1159 = vmatmul.bf16.gmra.mxu0 %v1007
        %v1160 = vpop.f32.mrf.mxu0
        %v1161 = vadd.f32 %v1026, %v1160
        %v1162 = vpop.f32.mrf.mxu0
        %v1163 = vadd.f32 %v1026, %v1162
        %1164 = vdwg.mxu0
        %v1165 = vmul.f32 %v1086, 0.01
        %v1166 = vmul.f32 %v1088, 0.01
        %v1167 = vmul.f32 %v1091, 0.01
        %v1168 = vmul.f32 %v1093, 0.01
        %v1169 = vmul.f32 %v1096, 0.01
        %v1170 = vmul.f32 %v1098, 0.01
        %v1171 = vmul.f32 %v1101, 0.01
        %v1172 = vmul.f32 %v1103, 0.01
        %v1173 = vmul.f32 %v1106, 0.01
        %v1174 = vmul.f32 %v1108, 0.01
        %v1175 = vmul.f32 %v1111, 0.01
        %v1176 = vmul.f32 %v1113, 0.01
        %v1177 = vmul.f32 %v1116, 0.01
        %v1178 = vmul.f32 %v1118, 0.01
        %v1179 = vmul.f32 %v1121, 0.01
        %v1180 = vmul.f32 %v1123, 0.01
        %v1181 = vmul.f32 %v1126, 0.01
        %v1182 = vmul.f32 %v1128, 0.01
        %v1183 = vmul.f32 %v1131, 0.01
        %v1184 = vmul.f32 %v1133, 0.01
        %v1185 = vmul.f32 %v1136, 0.01
        %v1186 = vmul.f32 %v1138, 0.01
        %v1187 = vmul.f32 %v1141, 0.01
        %v1188 = vmul.f32 %v1143, 0.01
        %v1189 = vmul.f32 %v1146, 0.01
        %v1190 = vmul.f32 %v1148, 0.01
        %v1191 = vmul.f32 %v1151, 0.01
        %v1192 = vmul.f32 %v1153, 0.01
        %v1193 = vmul.f32 %v1156, 0.01
        %v1194 = vmul.f32 %v1158, 0.01
        %v1195 = vmul.f32 %v1161, 0.01
        %v1196 = vmul.f32 %v1163, 0.01
        %v1197 = vmax.f32 %v1086, %v1165
        %v1198 = vmax.f32 %v1088, %v1166
        %v1199 = vmax.f32 %v1091, %v1167
        %v1200 = vmax.f32 %v1093, %v1168
        %v1201 = vmax.f32 %v1096, %v1169
        %v1202 = vmax.f32 %v1098, %v1170
        %v1203 = vmax.f32 %v1101, %v1171
        %v1204 = vmax.f32 %v1103, %v1172
        %v1205 = vmax.f32 %v1106, %v1173
        %v1206 = vmax.f32 %v1108, %v1174
        %v1207 = vmax.f32 %v1111, %v1175
        %v1208 = vmax.f32 %v1113, %v1176
        %v1209 = vmax.f32 %v1116, %v1177
        %v1210 = vmax.f32 %v1118, %v1178
        %v1211 = vmax.f32 %v1121, %v1179
        %v1212 = vmax.f32 %v1123, %v1180
        %v1213 = vmax.f32 %v1126, %v1181
        %v1214 = vmax.f32 %v1128, %v1182
        %v1215 = vmax.f32 %v1131, %v1183
        %v1216 = vmax.f32 %v1133, %v1184
        %v1217 = vmax.f32 %v1136, %v1185
        %v1218 = vmax.f32 %v1138, %v1186
        %v1219 = vmax.f32 %v1141, %v1187
        %v1220 = vmax.f32 %v1143, %v1188
        %v1221 = vmax.f32 %v1146, %v1189
        %v1222 = vmax.f32 %v1148, %v1190
        %v1223 = vmax.f32 %v1151, %v1191
        %v1224 = vmax.f32 %v1153, %v1192
        %v1225 = vmax.f32 %v1156, %v1193
        %v1226 = vmax.f32 %v1158, %v1194
        %v1227 = vmax.f32 %v1161, %v1195
        %v1228 = vmax.f32 %v1163, %v1196
        %v1229 = vpack.c.bf16 %v1198, %v1197
        %v1230 = vpack.c.bf16 %v1200, %v1199
        %v1231 = vpack.c.bf16 %v1202, %v1201
        %v1232 = vpack.c.bf16 %v1204, %v1203
        %v1233 = vpack.c.bf16 %v1206, %v1205
        %v1234 = vpack.c.bf16 %v1208, %v1207
        %v1235 = vpack.c.bf16 %v1210, %v1209
        %v1236 = vpack.c.bf16 %v1212, %v1211
        %v1237 = vpack.c.bf16 %v1214, %v1213
        %v1238 = vpack.c.bf16 %v1216, %v1215
        %v1239 = vpack.c.bf16 %v1218, %v1217
        %v1240 = vpack.c.bf16 %v1220, %v1219
        %v1241 = vpack.c.bf16 %v1222, %v1221
        %v1242 = vpack.c.bf16 %v1224, %v1223
        %v1243 = vpack.c.bf16 %v1226, %v1225
        %v1244 = vpack.c.bf16 %v1228, %v1227
        %1245 = vmatpush.bf16.msra.mxu0 %v1236
        %1246 = vmatpush.bf16.msra.mxu0 %v1235
        %1247 = vmatpush.bf16.msra.mxu0 %v1234
        %1248 = vmatpush.bf16.msra.mxu0 %v1233
        %1249 = vmatpush.bf16.msra.mxu0 %v1232
        %1250 = vmatpush.bf16.msra.mxu0 %v1231
        %1251 = vmatpush.bf16.msra.mxu0 %v1230
        %1252 = vmatpush.bf16.msra.mxu0 %v1229
        %1253 = vmatmul.bf16.gmra.mxu0 %v654
        %v1254 = vpop.f32.mrf.mxu0
        %v1255 = vadd.f32 0.0, %v1254
        %v1256 = vpop.f32.mrf.mxu0
        %v1257 = vadd.f32 0.0, %v1256
        %1258 = vmatmul.bf16.gmra.mxu0 %v656
        %v1259 = vpop.f32.mrf.mxu0
        %v1260 = vadd.f32 0.0, %v1259
        %v1261 = vpop.f32.mrf.mxu0
        %v1262 = vadd.f32 0.0, %v1261
        %1263 = vmatmul.bf16.gmra.mxu0 %v658
        %v1264 = vpop.f32.mrf.mxu0
        %v1265 = vadd.f32 0.0, %v1264
        %v1266 = vpop.f32.mrf.mxu0
        %v1267 = vadd.f32 0.0, %v1266
        %1268 = vmatmul.bf16.gmra.mxu0 %v660
        %v1269 = vpop.f32.mrf.mxu0
        %v1270 = vadd.f32 0.0, %v1269
        %v1271 = vpop.f32.mrf.mxu0
        %v1272 = vadd.f32 0.0, %v1271
        %1273 = vmatmul.bf16.gmra.mxu0 %v662
        %v1274 = vpop.f32.mrf.mxu0
        %v1275 = vadd.f32 0.0, %v1274
        %v1276 = vpop.f32.mrf.mxu0
        %v1277 = vadd.f32 0.0, %v1276
        %1278 = vmatmul.bf16.gmra.mxu0 %v664
        %v1279 = vpop.f32.mrf.mxu0
        %v1280 = vadd.f32 0.0, %v1279
        %v1281 = vpop.f32.mrf.mxu0
        %v1282 = vadd.f32 0.0, %v1281
        %1283 = vmatmul.bf16.gmra.mxu0 %v666
        %v1284 = vpop.f32.mrf.mxu0
        %v1285 = vadd.f32 0.0, %v1284
        %v1286 = vpop.f32.mrf.mxu0
        %v1287 = vadd.f32 0.0, %v1286
        %1288 = vmatmul.bf16.gmra.mxu0 %v668
        %v1289 = vpop.f32.mrf.mxu0
        %v1290 = vadd.f32 0.0, %v1289
        %v1291 = vpop.f32.mrf.mxu0
        %v1292 = vadd.f32 0.0, %v1291
        %1293 = vmatmul.bf16.gmra.mxu0 %v670
        %v1294 = vpop.f32.mrf.mxu0
        %v1295 = vadd.f32 0.0, %v1294
        %v1296 = vpop.f32.mrf.mxu0
        %v1297 = vadd.f32 0.0, %v1296
        %1298 = vmatmul.bf16.gmra.mxu0 %v672
        %v1299 = vpop.f32.mrf.mxu0
        %v1300 = vadd.f32 0.0, %v1299
        %v1301 = vpop.f32.mrf.mxu0
        %v1302 = vadd.f32 0.0, %v1301
        %1303 = vmatmul.bf16.gmra.mxu0 %v674
        %v1304 = vpop.f32.mrf.mxu0
        %v1305 = vadd.f32 0.0, %v1304
        %v1306 = vpop.f32.mrf.mxu0
        %v1307 = vadd.f32 0.0, %v1306
        %1308 = vmatmul.bf16.gmra.mxu0 %v676
        %v1309 = vpop.f32.mrf.mxu0
        %v1310 = vadd.f32 0.0, %v1309
        %v1311 = vpop.f32.mrf.mxu0
        %v1312 = vadd.f32 0.0, %v1311
        %1313 = vmatmul.bf16.gmra.mxu0 %v678
        %v1314 = vpop.f32.mrf.mxu0
        %v1315 = vadd.f32 0.0, %v1314
        %v1316 = vpop.f32.mrf.mxu0
        %v1317 = vadd.f32 0.0, %v1316
        %1318 = vmatmul.bf16.gmra.mxu0 %v680
        %v1319 = vpop.f32.mrf.mxu0
        %v1320 = vadd.f32 0.0, %v1319
        %v1321 = vpop.f32.mrf.mxu0
        %v1322 = vadd.f32 0.0, %v1321
        %1323 = vmatmul.bf16.gmra.mxu0 %v682
        %v1324 = vpop.f32.mrf.mxu0
        %v1325 = vadd.f32 0.0, %v1324
        %v1326 = vpop.f32.mrf.mxu0
        %v1327 = vadd.f32 0.0, %v1326
        %1328 = vmatmul.bf16.gmra.mxu0 %v684
        %v1329 = vpop.f32.mrf.mxu0
        %v1330 = vadd.f32 0.0, %v1329
        %v1331 = vpop.f32.mrf.mxu0
        %v1332 = vadd.f32 0.0, %v1331
        %1333 = vdwg.mxu0
        %1334 = vmatpush.bf16.msra.mxu0 %v1244
        %1335 = vmatpush.bf16.msra.mxu0 %v1243
        %1336 = vmatpush.bf16.msra.mxu0 %v1242
        %1337 = vmatpush.bf16.msra.mxu0 %v1241
        %1338 = vmatpush.bf16.msra.mxu0 %v1240
        %1339 = vmatpush.bf16.msra.mxu0 %v1239
        %1340 = vmatpush.bf16.msra.mxu0 %v1238
        %1341 = vmatpush.bf16.msra.mxu0 %v1237
        %1342 = vmatmul.bf16.gmra.mxu0 %v655
        %v1343 = vpop.f32.mrf.mxu0
        %v1344 = vadd.f32 %v1255, %v1343
        %v1345 = vpop.f32.mrf.mxu0
        %v1346 = vadd.f32 %v1257, %v1345
        %1347 = vmatmul.bf16.gmra.mxu0 %v657
        %v1348 = vpop.f32.mrf.mxu0
        %v1349 = vadd.f32 %v1260, %v1348
        %v1350 = vpop.f32.mrf.mxu0
        %v1351 = vadd.f32 %v1262, %v1350
        %1352 = vmatmul.bf16.gmra.mxu0 %v659
        %v1353 = vpop.f32.mrf.mxu0
        %v1354 = vadd.f32 %v1265, %v1353
        %v1355 = vpop.f32.mrf.mxu0
        %v1356 = vadd.f32 %v1267, %v1355
        %1357 = vmatmul.bf16.gmra.mxu0 %v661
        %v1358 = vpop.f32.mrf.mxu0
        %v1359 = vadd.f32 %v1270, %v1358
        %v1360 = vpop.f32.mrf.mxu0
        %v1361 = vadd.f32 %v1272, %v1360
        %1362 = vmatmul.bf16.gmra.mxu0 %v663
        %v1363 = vpop.f32.mrf.mxu0
        %v1364 = vadd.f32 %v1275, %v1363
        %v1365 = vpop.f32.mrf.mxu0
        %v1366 = vadd.f32 %v1277, %v1365
        %1367 = vmatmul.bf16.gmra.mxu0 %v665
        %v1368 = vpop.f32.mrf.mxu0
        %v1369 = vadd.f32 %v1280, %v1368
        %v1370 = vpop.f32.mrf.mxu0
        %v1371 = vadd.f32 %v1282, %v1370
        %1372 = vmatmul.bf16.gmra.mxu0 %v667
        %v1373 = vpop.f32.mrf.mxu0
        %v1374 = vadd.f32 %v1285, %v1373
        %v1375 = vpop.f32.mrf.mxu0
        %v1376 = vadd.f32 %v1287, %v1375
        %1377 = vmatmul.bf16.gmra.mxu0 %v669
        %v1378 = vpop.f32.mrf.mxu0
        %v1379 = vadd.f32 %v1290, %v1378
        %v1380 = vpop.f32.mrf.mxu0
        %v1381 = vadd.f32 %v1292, %v1380
        %1382 = vmatmul.bf16.gmra.mxu0 %v671
        %v1383 = vpop.f32.mrf.mxu0
        %v1384 = vadd.f32 %v1295, %v1383
        %v1385 = vpop.f32.mrf.mxu0
        %v1386 = vadd.f32 %v1297, %v1385
        %1387 = vmatmul.bf16.gmra.mxu0 %v673
        %v1388 = vpop.f32.mrf.mxu0
        %v1389 = vadd.f32 %v1300, %v1388
        %v1390 = vpop.f32.mrf.mxu0
        %v1391 = vadd.f32 %v1302, %v1390
        %1392 = vmatmul.bf16.gmra.mxu0 %v675
        %v1393 = vpop.f32.mrf.mxu0
        %v1394 = vadd.f32 %v1305, %v1393
        %v1395 = vpop.f32.mrf.mxu0
        %v1396 = vadd.f32 %v1307, %v1395
        %1397 = vmatmul.bf16.gmra.mxu0 %v677
        %v1398 = vpop.f32.mrf.mxu0
        %v1399 = vadd.f32 %v1310, %v1398
        %v1400 = vpop.f32.mrf.mxu0
        %v1401 = vadd.f32 %v1312, %v1400
        %1402 = vmatmul.bf16.gmra.mxu0 %v679
        %v1403 = vpop.f32.mrf.mxu0
        %v1404 = vadd.f32 %v1315, %v1403
        %v1405 = vpop.f32.mrf.mxu0
        %v1406 = vadd.f32 %v1317, %v1405
        %1407 = vmatmul.bf16.gmra.mxu0 %v681
        %v1408 = vpop.f32.mrf.mxu0
        %v1409 = vadd.f32 %v1320, %v1408
        %v1410 = vpop.f32.mrf.mxu0
        %v1411 = vadd.f32 %v1322, %v1410
        %1412 = vmatmul.bf16.gmra.mxu0 %v683
        %v1413 = vpop.f32.mrf.mxu0
        %v1414 = vadd.f32 %v1325, %v1413
        %v1415 = vpop.f32.mrf.mxu0
        %v1416 = vadd.f32 %v1327, %v1415
        %1417 = vmatmul.bf16.gmra.mxu0 %v685
        %v1418 = vpop.f32.mrf.mxu0
        %v1419 = vadd.f32 %v1330, %v1418
        %v1420 = vpop.f32.mrf.mxu0
        %v1421 = vadd.f32 %v1332, %v1420
        %1422 = vdwg.mxu0
        %v1423 = vpack.c.bf16 %v1346, %v1344
        %v1424 = vpack.c.bf16 %v1351, %v1349
        %v1425 = vpack.c.bf16 %v1356, %v1354
        %v1426 = vpack.c.bf16 %v1361, %v1359
        %v1427 = vpack.c.bf16 %v1366, %v1364
        %v1428 = vpack.c.bf16 %v1371, %v1369
        %v1429 = vpack.c.bf16 %v1376, %v1374
        %v1430 = vpack.c.bf16 %v1381, %v1379
        %v1431 = vpack.c.bf16 %v1386, %v1384
        %v1432 = vpack.c.bf16 %v1391, %v1389
        %v1433 = vpack.c.bf16 %v1396, %v1394
        %v1434 = vpack.c.bf16 %v1401, %v1399
        %v1435 = vpack.c.bf16 %v1406, %v1404
        %v1436 = vpack.c.bf16 %v1411, %v1409
        %v1437 = vpack.c.bf16 %v1416, %v1414
        %v1438 = vpack.c.bf16 %v1421, %v1419
        %v1439 = vld [vmem:[#allocation8] sm:$0xf]
        %v1440 = vld [vmem:[#allocation8 + $0x4] sm:$0xf]
        %v1441 = vld [vmem:[#allocation8 + $0x8] sm:$0xf]
        %v1442 = vld [vmem:[#allocation8 + $0xc] sm:$0xf]
        %v1443 = vld [vmem:[#allocation8 + $0x10] sm:$0xf]
        %v1444 = vld [vmem:[#allocation8 + $0x14] sm:$0xf]
        %v1445 = vld [vmem:[#allocation8 + $0x18] sm:$0xf]
        %v1446 = vld [vmem:[#allocation8 + $0x1c] sm:$0xf]
        %v1447 = vld [vmem:[#allocation8 + $0x20] sm:$0xf]
        %v1448 = vld [vmem:[#allocation8 + $0x24] sm:$0xf]
        %v1449 = vld [vmem:[#allocation8 + $0x28] sm:$0xf]
        %v1450 = vld [vmem:[#allocation8 + $0x2c] sm:$0xf]
        %v1451 = vld [vmem:[#allocation8 + $0x30] sm:$0xf]
        %v1452 = vld [vmem:[#allocation8 + $0x34] sm:$0xf]
        %v1453 = vld [vmem:[#allocation8 + $0x38] sm:$0xf]
        %v1454 = vld [vmem:[#allocation8 + $0x3c] sm:$0xf]
        %v1455 = vld [vmem:[%s7] sm:$0x1]
        %v1457 = vperm.slane %v1455, 0
        %v1475 = vunpack.c.l.b16 %v1439
        %v1476 = vunpack.c.l.b16 %v1440
        %v1477 = vunpack.c.l.b16 %v1441
        %v1478 = vunpack.c.l.b16 %v1442
        %v1479 = vunpack.c.l.b16 %v1443
        %v1480 = vunpack.c.l.b16 %v1444
        %v1481 = vunpack.c.l.b16 %v1445
        %v1482 = vunpack.c.l.b16 %v1446
        %v1483 = vunpack.c.l.b16 %v1447
        %v1484 = vunpack.c.l.b16 %v1448
        %v1485 = vunpack.c.l.b16 %v1449
        %v1486 = vunpack.c.l.b16 %v1450
        %v1487 = vunpack.c.l.b16 %v1451
        %v1488 = vunpack.c.l.b16 %v1452
        %v1489 = vunpack.c.l.b16 %v1453
        %v1490 = vunpack.c.l.b16 %v1454
        %v1491 = vpack.c.b16 %v1476, %v1475
        %v1492 = vpack.c.b16 %v1478, %v1477
        %v1493 = vpack.c.b16 %v1480, %v1479
        %v1494 = vpack.c.b16 %v1482, %v1481
        %v1495 = vpack.c.b16 %v1484, %v1483
        %v1496 = vpack.c.b16 %v1486, %v1485
        %v1497 = vpack.c.b16 %v1488, %v1487
        %v1498 = vpack.c.b16 %v1490, %v1489
        %1507 = vmatpush.bf16.msra.mxu0 %v1498
        %1508 = vmatpush.bf16.msra.mxu0 %v1497
        %1509 = vmatpush.bf16.msra.mxu0 %v1496
        %1510 = vmatpush.bf16.msra.mxu0 %v1495
        %1511 = vmatpush.bf16.msra.mxu0 %v1494
        %1512 = vmatpush.bf16.msra.mxu0 %v1493
        %1513 = vmatpush.bf16.msra.mxu0 %v1492
        %1514 = vmatpush.bf16.msra.mxu0 %v1491
        %1515 = vmatmul.bf16.gmra.mxu0 %v1423
        %v1516 = vpop.f32.mrf.mxu0
        %v1517 = vadd.f32 %v1457, %v1516
        %v1518 = vpop.f32.mrf.mxu0
        %v1519 = vadd.f32 %v1457, %v1518
        %1520 = vmatmul.bf16.gmra.mxu0 %v1424
        %v1521 = vpop.f32.mrf.mxu0
        %v1522 = vadd.f32 %v1457, %v1521
        %v1523 = vpop.f32.mrf.mxu0
        %v1524 = vadd.f32 %v1457, %v1523
        %1525 = vmatmul.bf16.gmra.mxu0 %v1425
        %v1526 = vpop.f32.mrf.mxu0
        %v1527 = vadd.f32 %v1457, %v1526
        %v1528 = vpop.f32.mrf.mxu0
        %v1529 = vadd.f32 %v1457, %v1528
        %1530 = vmatmul.bf16.gmra.mxu0 %v1426
        %v1531 = vpop.f32.mrf.mxu0
        %v1532 = vadd.f32 %v1457, %v1531
        %v1533 = vpop.f32.mrf.mxu0
        %v1534 = vadd.f32 %v1457, %v1533
        %1535 = vmatmul.bf16.gmra.mxu0 %v1427
        %v1536 = vpop.f32.mrf.mxu0
        %v1537 = vadd.f32 %v1457, %v1536
        %v1538 = vpop.f32.mrf.mxu0
        %v1539 = vadd.f32 %v1457, %v1538
        %1540 = vmatmul.bf16.gmra.mxu0 %v1428
        %v1541 = vpop.f32.mrf.mxu0
        %v1542 = vadd.f32 %v1457, %v1541
        %v1543 = vpop.f32.mrf.mxu0
        %v1544 = vadd.f32 %v1457, %v1543
        %1545 = vmatmul.bf16.gmra.mxu0 %v1429
        %v1546 = vpop.f32.mrf.mxu0
        %v1547 = vadd.f32 %v1457, %v1546
        %v1548 = vpop.f32.mrf.mxu0
        %v1549 = vadd.f32 %v1457, %v1548
        %1550 = vmatmul.bf16.gmra.mxu0 %v1430
        %v1551 = vpop.f32.mrf.mxu0
        %v1552 = vadd.f32 %v1457, %v1551
        %v1553 = vpop.f32.mrf.mxu0
        %v1554 = vadd.f32 %v1457, %v1553
        %1555 = vmatmul.bf16.gmra.mxu0 %v1431
        %v1556 = vpop.f32.mrf.mxu0
        %v1557 = vadd.f32 %v1457, %v1556
        %v1558 = vpop.f32.mrf.mxu0
        %v1559 = vadd.f32 %v1457, %v1558
        %1560 = vmatmul.bf16.gmra.mxu0 %v1432
        %v1561 = vpop.f32.mrf.mxu0
        %v1562 = vadd.f32 %v1457, %v1561
        %v1563 = vpop.f32.mrf.mxu0
        %v1564 = vadd.f32 %v1457, %v1563
        %1565 = vmatmul.bf16.gmra.mxu0 %v1433
        %v1566 = vpop.f32.mrf.mxu0
        %v1567 = vadd.f32 %v1457, %v1566
        %v1568 = vpop.f32.mrf.mxu0
        %v1569 = vadd.f32 %v1457, %v1568
        %1570 = vmatmul.bf16.gmra.mxu0 %v1434
        %v1571 = vpop.f32.mrf.mxu0
        %v1572 = vadd.f32 %v1457, %v1571
        %v1573 = vpop.f32.mrf.mxu0
        %v1574 = vadd.f32 %v1457, %v1573
        %1575 = vmatmul.bf16.gmra.mxu0 %v1435
        %v1576 = vpop.f32.mrf.mxu0
        %v1577 = vadd.f32 %v1457, %v1576
        %v1578 = vpop.f32.mrf.mxu0
        %v1579 = vadd.f32 %v1457, %v1578
        %1580 = vmatmul.bf16.gmra.mxu0 %v1436
        %v1581 = vpop.f32.mrf.mxu0
        %v1582 = vadd.f32 %v1457, %v1581
        %v1583 = vpop.f32.mrf.mxu0
        %v1584 = vadd.f32 %v1457, %v1583
        %1585 = vmatmul.bf16.gmra.mxu0 %v1437
        %v1586 = vpop.f32.mrf.mxu0
        %v1587 = vadd.f32 %v1457, %v1586
        %v1588 = vpop.f32.mrf.mxu0
        %v1589 = vadd.f32 %v1457, %v1588
        %1590 = vmatmul.bf16.gmra.mxu0 %v1438
        %v1591 = vpop.f32.mrf.mxu0
        %v1592 = vadd.f32 %v1457, %v1591
        %v1593 = vpop.f32.mrf.mxu0
        %v1594 = vadd.f32 %v1457, %v1593
        %1595 = vdwg.mxu0
        %v1596 = vmul.f32 %v1517, 0.01
        %v1597 = vmul.f32 %v1519, 0.01
        %v1598 = vmul.f32 %v1522, 0.01
        %v1599 = vmul.f32 %v1524, 0.01
        %v1600 = vmul.f32 %v1527, 0.01
        %v1601 = vmul.f32 %v1529, 0.01
        %v1602 = vmul.f32 %v1532, 0.01
        %v1603 = vmul.f32 %v1534, 0.01
        %v1604 = vmul.f32 %v1537, 0.01
        %v1605 = vmul.f32 %v1539, 0.01
        %v1606 = vmul.f32 %v1542, 0.01
        %v1607 = vmul.f32 %v1544, 0.01
        %v1608 = vmul.f32 %v1547, 0.01
        %v1609 = vmul.f32 %v1549, 0.01
        %v1610 = vmul.f32 %v1552, 0.01
        %v1611 = vmul.f32 %v1554, 0.01
        %v1612 = vmul.f32 %v1557, 0.01
        %v1613 = vmul.f32 %v1559, 0.01
        %v1614 = vmul.f32 %v1562, 0.01
        %v1615 = vmul.f32 %v1564, 0.01
        %v1616 = vmul.f32 %v1567, 0.01
        %v1617 = vmul.f32 %v1569, 0.01
        %v1618 = vmul.f32 %v1572, 0.01
        %v1619 = vmul.f32 %v1574, 0.01
        %v1620 = vmul.f32 %v1577, 0.01
        %v1621 = vmul.f32 %v1579, 0.01
        %v1622 = vmul.f32 %v1582, 0.01
        %v1623 = vmul.f32 %v1584, 0.01
        %v1624 = vmul.f32 %v1587, 0.01
        %v1625 = vmul.f32 %v1589, 0.01
        %v1626 = vmul.f32 %v1592, 0.01
        %v1627 = vmul.f32 %v1594, 0.01
        %v1628 = vmax.f32 %v1517, %v1596
        %v1629 = vmax.f32 %v1519, %v1597
        %v1630 = vmax.f32 %v1522, %v1598
        %v1631 = vmax.f32 %v1524, %v1599
        %v1632 = vmax.f32 %v1527, %v1600
        %v1633 = vmax.f32 %v1529, %v1601
        %v1634 = vmax.f32 %v1532, %v1602
        %v1635 = vmax.f32 %v1534, %v1603
        %v1636 = vmax.f32 %v1537, %v1604
        %v1637 = vmax.f32 %v1539, %v1605
        %v1638 = vmax.f32 %v1542, %v1606
        %v1639 = vmax.f32 %v1544, %v1607
        %v1640 = vmax.f32 %v1547, %v1608
        %v1641 = vmax.f32 %v1549, %v1609
        %v1642 = vmax.f32 %v1552, %v1610
        %v1643 = vmax.f32 %v1554, %v1611
        %v1644 = vmax.f32 %v1557, %v1612
        %v1645 = vmax.f32 %v1559, %v1613
        %v1646 = vmax.f32 %v1562, %v1614
        %v1647 = vmax.f32 %v1564, %v1615
        %v1648 = vmax.f32 %v1567, %v1616
        %v1649 = vmax.f32 %v1569, %v1617
        %v1650 = vmax.f32 %v1572, %v1618
        %v1651 = vmax.f32 %v1574, %v1619
        %v1652 = vmax.f32 %v1577, %v1620
        %v1653 = vmax.f32 %v1579, %v1621
        %v1654 = vmax.f32 %v1582, %v1622
        %v1655 = vmax.f32 %v1584, %v1623
        %v1656 = vmax.f32 %v1587, %v1624
        %v1657 = vmax.f32 %v1589, %v1625
        %v1658 = vmax.f32 %v1592, %v1626
        %v1659 = vmax.f32 %v1594, %v1627
        %v1660 = vpack.c.bf16 %v1629, %v1628
        %v1661 = vpack.c.bf16 %v1631, %v1630
        %v1662 = vpack.c.bf16 %v1633, %v1632
        %v1663 = vpack.c.bf16 %v1635, %v1634
        %v1664 = vpack.c.bf16 %v1637, %v1636
        %v1665 = vpack.c.bf16 %v1639, %v1638
        %v1666 = vpack.c.bf16 %v1641, %v1640
        %v1667 = vpack.c.bf16 %v1643, %v1642
        %v1668 = vpack.c.bf16 %v1645, %v1644
        %v1669 = vpack.c.bf16 %v1647, %v1646
        %v1670 = vpack.c.bf16 %v1649, %v1648
        %v1671 = vpack.c.bf16 %v1651, %v1650
        %v1672 = vpack.c.bf16 %v1653, %v1652
        %v1673 = vpack.c.bf16 %v1655, %v1654
        %v1674 = vpack.c.bf16 %v1657, %v1656
        %v1675 = vpack.c.bf16 %v1659, %v1658
        %v1676 = vld [vmem:[#allocation10] sm:$0xf]
        %v1677 = vld [vmem:[#allocation10 + $0x4] sm:$0xf]
        %v1678 = vld [vmem:[#allocation10 + $0x8] sm:$0xf]
        %v1679 = vld [vmem:[#allocation10 + $0xc] sm:$0xf]
        %v1680 = vld [vmem:[#allocation10 + $0x10] sm:$0xf]
        %v1681 = vld [vmem:[#allocation10 + $0x14] sm:$0xf]
        %v1682 = vld [vmem:[#allocation10 + $0x18] sm:$0xf]
        %v1683 = vld [vmem:[#allocation10 + $0x1c] sm:$0xf]
        %v1684 = vld [vmem:[#allocation10 + $0x20] sm:$0xf]
        %v1685 = vld [vmem:[#allocation10 + $0x24] sm:$0xf]
        %v1686 = vld [vmem:[#allocation10 + $0x28] sm:$0xf]
        %v1687 = vld [vmem:[#allocation10 + $0x2c] sm:$0xf]
        %v1688 = vld [vmem:[#allocation10 + $0x30] sm:$0xf]
        %v1689 = vld [vmem:[#allocation10 + $0x34] sm:$0xf]
        %v1690 = vld [vmem:[#allocation10 + $0x38] sm:$0xf]
        %v1691 = vld [vmem:[#allocation10 + $0x3c] sm:$0xf]
        %v1692 = vld [vmem:[%s9] sm:$0x1]
        %v1694 = vperm.slane %v1692, 0
        %v1712 = vunpack.c.l.b16 %v1676
        %v1713 = vunpack.c.l.b16 %v1677
        %v1714 = vunpack.c.l.b16 %v1678
        %v1715 = vunpack.c.l.b16 %v1679
        %v1716 = vunpack.c.l.b16 %v1680
        %v1717 = vunpack.c.l.b16 %v1681
        %v1718 = vunpack.c.l.b16 %v1682
        %v1719 = vunpack.c.l.b16 %v1683
        %v1720 = vunpack.c.l.b16 %v1684
        %v1721 = vunpack.c.l.b16 %v1685
        %v1722 = vunpack.c.l.b16 %v1686
        %v1723 = vunpack.c.l.b16 %v1687
        %v1724 = vunpack.c.l.b16 %v1688
        %v1725 = vunpack.c.l.b16 %v1689
        %v1726 = vunpack.c.l.b16 %v1690
        %v1727 = vunpack.c.l.b16 %v1691
        %v1728 = vpack.c.b16 %v1713, %v1712
        %v1729 = vpack.c.b16 %v1715, %v1714
        %v1730 = vpack.c.b16 %v1717, %v1716
        %v1731 = vpack.c.b16 %v1719, %v1718
        %v1732 = vpack.c.b16 %v1721, %v1720
        %v1733 = vpack.c.b16 %v1723, %v1722
        %v1734 = vpack.c.b16 %v1725, %v1724
        %v1735 = vpack.c.b16 %v1727, %v1726
        %1744 = vmatpush.bf16.msra.mxu0 %v1735
        %1745 = vmatpush.bf16.msra.mxu0 %v1734
        %1746 = vmatpush.bf16.msra.mxu0 %v1733
        %1747 = vmatpush.bf16.msra.mxu0 %v1732
        %1748 = vmatpush.bf16.msra.mxu0 %v1731
        %1749 = vmatpush.bf16.msra.mxu0 %v1730
        %1750 = vmatpush.bf16.msra.mxu0 %v1729
        %1751 = vmatpush.bf16.msra.mxu0 %v1728
        %1752 = vmatmul.bf16.gmra.mxu0 %v1660
        %v1753 = vpop.f32.mrf.mxu0
        %v1754 = vadd.f32 %v1694, %v1753
        %v1755 = vpop.f32.mrf.mxu0
        %v1756 = vadd.f32 %v1694, %v1755
        %1757 = vmatmul.bf16.gmra.mxu0 %v1661
        %v1758 = vpop.f32.mrf.mxu0
        %v1759 = vadd.f32 %v1694, %v1758
        %v1760 = vpop.f32.mrf.mxu0
        %v1761 = vadd.f32 %v1694, %v1760
        %1762 = vmatmul.bf16.gmra.mxu0 %v1662
        %v1763 = vpop.f32.mrf.mxu0
        %v1764 = vadd.f32 %v1694, %v1763
        %v1765 = vpop.f32.mrf.mxu0
        %v1766 = vadd.f32 %v1694, %v1765
        %1767 = vmatmul.bf16.gmra.mxu0 %v1663
        %v1768 = vpop.f32.mrf.mxu0
        %v1769 = vadd.f32 %v1694, %v1768
        %v1770 = vpop.f32.mrf.mxu0
        %v1771 = vadd.f32 %v1694, %v1770
        %1772 = vmatmul.bf16.gmra.mxu0 %v1664
        %v1773 = vpop.f32.mrf.mxu0
        %v1774 = vadd.f32 %v1694, %v1773
        %v1775 = vpop.f32.mrf.mxu0
        %v1776 = vadd.f32 %v1694, %v1775
        %1777 = vmatmul.bf16.gmra.mxu0 %v1665
        %v1778 = vpop.f32.mrf.mxu0
        %v1779 = vadd.f32 %v1694, %v1778
        %v1780 = vpop.f32.mrf.mxu0
        %v1781 = vadd.f32 %v1694, %v1780
        %1782 = vmatmul.bf16.gmra.mxu0 %v1666
        %v1783 = vpop.f32.mrf.mxu0
        %v1784 = vadd.f32 %v1694, %v1783
        %v1785 = vpop.f32.mrf.mxu0
        %v1786 = vadd.f32 %v1694, %v1785
        %1787 = vmatmul.bf16.gmra.mxu0 %v1667
        %v1788 = vpop.f32.mrf.mxu0
        %v1789 = vadd.f32 %v1694, %v1788
        %v1790 = vpop.f32.mrf.mxu0
        %v1791 = vadd.f32 %v1694, %v1790
        %1792 = vmatmul.bf16.gmra.mxu0 %v1668
        %v1793 = vpop.f32.mrf.mxu0
        %v1794 = vadd.f32 %v1694, %v1793
        %v1795 = vpop.f32.mrf.mxu0
        %v1796 = vadd.f32 %v1694, %v1795
        %1797 = vmatmul.bf16.gmra.mxu0 %v1669
        %v1798 = vpop.f32.mrf.mxu0
        %v1799 = vadd.f32 %v1694, %v1798
        %v1800 = vpop.f32.mrf.mxu0
        %v1801 = vadd.f32 %v1694, %v1800
        %1802 = vmatmul.bf16.gmra.mxu0 %v1670
        %v1803 = vpop.f32.mrf.mxu0
        %v1804 = vadd.f32 %v1694, %v1803
        %v1805 = vpop.f32.mrf.mxu0
        %v1806 = vadd.f32 %v1694, %v1805
        %1807 = vmatmul.bf16.gmra.mxu0 %v1671
        %v1808 = vpop.f32.mrf.mxu0
        %v1809 = vadd.f32 %v1694, %v1808
        %v1810 = vpop.f32.mrf.mxu0
        %v1811 = vadd.f32 %v1694, %v1810
        %1812 = vmatmul.bf16.gmra.mxu0 %v1672
        %v1813 = vpop.f32.mrf.mxu0
        %v1814 = vadd.f32 %v1694, %v1813
        %v1815 = vpop.f32.mrf.mxu0
        %v1816 = vadd.f32 %v1694, %v1815
        %1817 = vmatmul.bf16.gmra.mxu0 %v1673
        %v1818 = vpop.f32.mrf.mxu0
        %v1819 = vadd.f32 %v1694, %v1818
        %v1820 = vpop.f32.mrf.mxu0
        %v1821 = vadd.f32 %v1694, %v1820
        %1822 = vmatmul.bf16.gmra.mxu0 %v1674
        %v1823 = vpop.f32.mrf.mxu0
        %v1824 = vadd.f32 %v1694, %v1823
        %v1825 = vpop.f32.mrf.mxu0
        %v1826 = vadd.f32 %v1694, %v1825
        %1827 = vmatmul.bf16.gmra.mxu0 %v1675
        %v1828 = vpop.f32.mrf.mxu0
        %v1829 = vadd.f32 %v1694, %v1828
        %v1830 = vpop.f32.mrf.mxu0
        %v1831 = vadd.f32 %v1694, %v1830
        %1832 = vdwg.mxu0
        %v1833 = vmul.f32 %v1754, 0.01
        %v1834 = vmul.f32 %v1756, 0.01
        %v1835 = vmul.f32 %v1759, 0.01
        %v1836 = vmul.f32 %v1761, 0.01
        %v1837 = vmul.f32 %v1764, 0.01
        %v1838 = vmul.f32 %v1766, 0.01
        %v1839 = vmul.f32 %v1769, 0.01
        %v1840 = vmul.f32 %v1771, 0.01
        %v1841 = vmul.f32 %v1774, 0.01
        %v1842 = vmul.f32 %v1776, 0.01
        %v1843 = vmul.f32 %v1779, 0.01
        %v1844 = vmul.f32 %v1781, 0.01
        %v1845 = vmul.f32 %v1784, 0.01
        %v1846 = vmul.f32 %v1786, 0.01
        %v1847 = vmul.f32 %v1789, 0.01
        %v1848 = vmul.f32 %v1791, 0.01
        %v1849 = vmul.f32 %v1794, 0.01
        %v1850 = vmul.f32 %v1796, 0.01
        %v1851 = vmul.f32 %v1799, 0.01
        %v1852 = vmul.f32 %v1801, 0.01
        %v1853 = vmul.f32 %v1804, 0.01
        %v1854 = vmul.f32 %v1806, 0.01
        %v1855 = vmul.f32 %v1809, 0.01
        %v1856 = vmul.f32 %v1811, 0.01
        %v1857 = vmul.f32 %v1814, 0.01
        %v1858 = vmul.f32 %v1816, 0.01
        %v1859 = vmul.f32 %v1819, 0.01
        %v1860 = vmul.f32 %v1821, 0.01
        %v1861 = vmul.f32 %v1824, 0.01
        %v1862 = vmul.f32 %v1826, 0.01
        %v1863 = vmul.f32 %v1829, 0.01
        %v1864 = vmul.f32 %v1831, 0.01
        %v1865 = vmax.f32 %v1754, %v1833
        %v1866 = vmax.f32 %v1756, %v1834
        %v1867 = vmax.f32 %v1759, %v1835
        %v1868 = vmax.f32 %v1761, %v1836
        %v1869 = vmax.f32 %v1764, %v1837
        %v1870 = vmax.f32 %v1766, %v1838
        %v1871 = vmax.f32 %v1769, %v1839
        %v1872 = vmax.f32 %v1771, %v1840
        %v1873 = vmax.f32 %v1774, %v1841
        %v1874 = vmax.f32 %v1776, %v1842
        %v1875 = vmax.f32 %v1779, %v1843
        %v1876 = vmax.f32 %v1781, %v1844
        %v1877 = vmax.f32 %v1784, %v1845
        %v1878 = vmax.f32 %v1786, %v1846
        %v1879 = vmax.f32 %v1789, %v1847
        %v1880 = vmax.f32 %v1791, %v1848
        %v1881 = vmax.f32 %v1794, %v1849
        %v1882 = vmax.f32 %v1796, %v1850
        %v1883 = vmax.f32 %v1799, %v1851
        %v1884 = vmax.f32 %v1801, %v1852
        %v1885 = vmax.f32 %v1804, %v1853
        %v1886 = vmax.f32 %v1806, %v1854
        %v1887 = vmax.f32 %v1809, %v1855
        %v1888 = vmax.f32 %v1811, %v1856
        %v1889 = vmax.f32 %v1814, %v1857
        %v1890 = vmax.f32 %v1816, %v1858
        %v1891 = vmax.f32 %v1819, %v1859
        %v1892 = vmax.f32 %v1821, %v1860
        %v1893 = vmax.f32 %v1824, %v1861
        %v1894 = vmax.f32 %v1826, %v1862
        %v1895 = vmax.f32 %v1829, %v1863
        %v1896 = vmax.f32 %v1831, %v1864
        %v1897 = vld [vmem:[%s2] sm:$0xff]
        %v1898 = vld [vmem:[%s2 + $0x8] sm:$0xff]
        %v1899 = vpack.c.bf16 %v1866, %v1865
        %v1900 = vpack.c.bf16 %v1868, %v1867
        %v1901 = vpack.c.bf16 %v1870, %v1869
        %v1902 = vpack.c.bf16 %v1872, %v1871
        %v1903 = vpack.c.bf16 %v1874, %v1873
        %v1904 = vpack.c.bf16 %v1876, %v1875
        %v1905 = vpack.c.bf16 %v1878, %v1877
        %v1906 = vpack.c.bf16 %v1880, %v1879
        %v1907 = vpack.c.bf16 %v1882, %v1881
        %v1908 = vpack.c.bf16 %v1884, %v1883
        %v1909 = vpack.c.bf16 %v1886, %v1885
        %v1910 = vpack.c.bf16 %v1888, %v1887
        %v1911 = vpack.c.bf16 %v1890, %v1889
        %v1912 = vpack.c.bf16 %v1892, %v1891
        %v1913 = vpack.c.bf16 %v1894, %v1893
        %v1914 = vpack.c.bf16 %v1896, %v1895
        %v1917 = vunpack.c.l.b16 %v1897
        %v1918 = vunpack.c.h.b16 %v1897
        %v1919 = vunpack.c.l.b16 %v1898
        %v1920 = vunpack.c.h.b16 %v1898
        %v1921 = vpack.c.b16 %v1919, %v1917
        %v1922 = vpack.c.b16 %v1920, %v1918
        %1925 = vmatpush.bf16.msra.mxu0 %v1906
        %1926 = vmatpush.bf16.msra.mxu0 %v1905
        %1927 = vmatpush.bf16.msra.mxu0 %v1904
        %1928 = vmatpush.bf16.msra.mxu0 %v1903
        %1929 = vmatpush.bf16.msra.mxu0 %v1902
        %1930 = vmatpush.bf16.msra.mxu0 %v1901
        %1931 = vmatpush.bf16.msra.mxu0 %v1900
        %1932 = vmatpush.bf16.msra.mxu0 %v1899
        %1933 = vmatmul.bf16.gmra.mxu0 %v1921
        %v1934 = vpop.f32.mrf.mxu0
        %v1935 = vadd.f32 0.0, %v1934
        %v1936 = vpop.f32.mrf.mxu0
        %v1937 = vadd.f32 0.0, %v1936
        %1938 = vdwg.mxu0
        %1939 = vmatpush.bf16.msra.mxu0 %v1914
        %1940 = vmatpush.bf16.msra.mxu0 %v1913
        %1941 = vmatpush.bf16.msra.mxu0 %v1912
        %1942 = vmatpush.bf16.msra.mxu0 %v1911
        %1943 = vmatpush.bf16.msra.mxu0 %v1910
        %1944 = vmatpush.bf16.msra.mxu0 %v1909
        %1945 = vmatpush.bf16.msra.mxu0 %v1908
        %1946 = vmatpush.bf16.msra.mxu0 %v1907
        %1947 = vmatmul.bf16.gmra.mxu0 %v1922
        %v1948 = vpop.f32.mrf.mxu0
        %v1949 = vadd.f32 %v1935, %v1948
        %v1950 = vpop.f32.mrf.mxu0
        %v1951 = vadd.f32 %v1937, %v1950
        %1952 = vdwg.mxu0
        %v1953 = vld [vmem:[%s491] sm:$0xff]
        %v1954 = vld [vmem:[%s491 + $0x8] sm:$0xff]
        %1956 = vset.pattern.permute.xlu0 0
        %1957 = vperm.xlu0 %1956, %v1953
        %v1958 = vpop.permute.xlu0 %1957
        %1961 = vset.pattern.permute.xlu0 0
        %1962 = vperm.xlu0 %1961, %v1954
        %v1963 = vpop.permute.xlu0 %1962
        %v1965 = vmul.f32 %v1949, %v1958
        %v1966 = vmul.f32 %v1951, %v1963
        %1967 = vst [vmem:[%s486] sm:$0xff] %v1965
        %1968 = vst [vmem:[%s486 + $0x8] sm:$0xff] %v1966
        %s1969 = sand.u32 %s264, 1
        %s1970 = scalar_lea.sflag [#allocation4], %s1969
        %s1971 = sand.u32 %s264, 1
        %s1972 = smul.addr %s1971, 16
        %s1973 = scalar_lea.vmem [#allocation11], %s1972
        // Predicated region
        $region81: #{tpu_custom_call.1} parent=59 // pred_check
          %p1974 = pneg %p274
        $region82: #{tpu_custom_call.1} parent=59 // pred_check_branch
          %1976 = sbr.rel (%p1974) target = $region84
        $region83: #{tpu_custom_call.1} parent=59 // pred_region
          %s1977 = smul.u32 2, %s31
          %1979 = vsyncadd %s1970, 0
          %s1980 = smul.addr %s1977, 8
          %s1981 = scalar_lea.hbm %s10, %s1980
          %s1982 = sshll.u32 %s1973, 4
          %s1983 = int_to_ptr.vmem [resolvable:$true] %s1982
          %s1984 = sshll.u32 %s1981, 4
          %s1985 = int_to_ptr.hbm [resolvable:$true] %s1984
          %1990 = dma.vmem_to_hbm [thread:$0]  %s1983, 256, %s1985, %s1970, 128, 128, 8
        $region84: #{tpu_custom_call.1} parent=59 // pred_fallthru
          _
      $region60: #{tpu_custom_call.1} parent=5 // pred_fallthru
        _
      %p1991 = scmp.le.s32.totalorder 2, %s26
      // Predicated region
      $region85: #{tpu_custom_call.1} parent=5 // pred_check
        %p1992 = pneg %p1991
      $region86: #{tpu_custom_call.1} parent=5 // pred_check_branch
        %1994 = sbr.rel (%p1992) target = $region88
      $region87: #{tpu_custom_call.1} parent=5 // pred_region
        %s1995 = ssub.s32 %s26, 2
        // Predicated region
        $region89: #{tpu_custom_call.1} parent=87 // pred_check
          %p1996 = pneg %p280
        $region90: #{tpu_custom_call.1} parent=87 // pred_check_branch
          %1998 = sbr.rel (%p1996) target = $region92
        $region91: #{tpu_custom_call.1} parent=87 // pred_region
          %s1999 = sand.u32 %s265, 1
          %s2000 = scalar_lea.sflag [#allocation4], %s1999
          %s2001 = sand.u32 %s265, 1
          %s2002 = smul.addr %s2001, 16
          %s2003 = scalar_lea.vmem [#allocation11], %s2002
          %2005 = dma.done %s2000, 256
        $region92: #{tpu_custom_call.1} parent=87 // pred_fallthru
          _
      $region88: #{tpu_custom_call.1} parent=5 // pred_fallthru
        _
    $region6: #{tpu_custom_call.1} parent=1 // loop_footer
      %s30 = sadd.s32 1, %s26
    $region7: #{tpu_custom_call.1} parent=1 // loop_footer_branch
      %25 = sbr.rel target = $region3
    $region8: #{tpu_custom_call.1} parent=1 // loop_exit
      _
    %2006 = vsyncpa [#allocation3], 1
    %s2007 = scalar_lea.sflag [#allocation3], 1
    %2008 = vsyncpa %s2007, 1
    %2009 = vsyncpa [#allocation6], 1
    %s2010 = scalar_lea.sflag [#allocation6], 1
    %2011 = vsyncpa %s2010, 1
    %2012 = vsyncpa [#allocation9], 1
    %2013 = vsyncpa [#allocation4], 1
    %s2014 = scalar_lea.sflag [#allocation4], 1
    %2015 = vsyncpa %s2014, 1

// kernel: tpu_custom_call.1
$region0: #{tpu_custom_call.1}
  #allocation0 [shape = 'u32[]', space=smem, size = 0x4, offset = 0x4, fixed_abs, tag = 'smem constant byte address 0x4 - core index']
  #allocation1 [shape = 'u32[72,128]{1,0:T(1,128)}', space=vmem, size = 0x9000, scoped, tag = 'internal scratch']
  %s0 = inlined_call_operand.hbm [shape: bf16[2,256,128], index: 0, kind: input, shape index: {}]
  %s1 = inlined_call_operand.hbm [shape: bf16[2,256,256], index: 1, kind: input, shape index: {}]
  %s2 = inlined_call_operand.vmem [shape: bf16[16,256], index: 2, kind: input, shape index: {}]
  %s3 = inlined_call_operand.vmem [shape: f32[32,1], index: 3, kind: input, shape index: {}]
  %s4 = inlined_call_operand.hbm [shape: bf16[128,128], index: 4, kind: input, shape index: {}]
  %s5 = inlined_call_operand.vmem [shape: f32[1,128], index: 5, kind: input, shape index: {}]
  %s6 = inlined_call_operand.hbm [shape: bf16[128,128], index: 6, kind: input, shape index: {}]
  %s7 = inlined_call_operand.vmem [shape: f32[1,128], index: 7, kind: input, shape index: {}]
  %s8 = inlined_call_operand.hbm [shape: bf16[128,128], index: 8, kind: input, shape index: {}]
  %s9 = inlined_call_operand.vmem [shape: f32[1,128], index: 9, kind: input, shape index: {}]
  %s10 = inlined_call_operand.hbm [shape: f32[32,128], index: 10, kind: output, shape index: {}]
  %s11 = sld [smem:[#allocation0]]
  $region93: #{tpu_custom_call.1} parent=0
    _
  %s13 = ssub.s32 1, %s11
  %s14 = scalar_select 0, %s13, %s11
  $region1: #{tpu_custom_call.1} parent=0
    #allocation2 [shape = 'u8[131072]{0}', space=vmem, size = 0x20000, scoped, tag = 'input window, operand 0']
    #allocation3 [shape = 's32[2]{0}', space=sflag, size = 0x8, scoped, tag = 'scoped memory for tpu_custom_call.1']
    #allocation4 [shape = 's32[2]{0}', space=sflag, size = 0x8, scoped, tag = 'scoped memory for tpu_custom_call.1']
    #allocation5 [shape = 'u8[262144]{0}', space=vmem, size = 0x40000, scoped, tag = 'input window, operand 1']
    #allocation6 [shape = 's32[2]{0}', space=sflag, size = 0x8, scoped, tag = 'scoped memory for tpu_custom_call.1']
    #allocation7 [shape = 'u8[32768]{0}', space=vmem, size = 0x8000, scoped, tag = 'input window, operand 4, single buffered']
    #allocation8 [shape = 'u8[32768]{0}', space=vmem, size = 0x8000, scoped, tag = 'input window, operand 6, single buffered']
    #allocation9 [shape = 's32[1]{0}', space=sflag, size = 0x4, scoped, tag = 'scoped memory for tpu_custom_call.1']
    #allocation10 [shape = 'u8[32768]{0}', space=vmem, size = 0x8000, scoped, tag = 'input window, operand 8, single buffered']
    #allocation11 [shape = 'u8[16384]{0}', space=vmem, size = 0x4000, scoped, tag = 'output window, operand 0']
    %15 = vsyncpa [#allocation3], 0
    %s16 = scalar_lea.sflag [#allocation3], 1
    %17 = vsyncpa %s16, 0
    %18 = vsyncpa [#allocation6], 0
    %s19 = scalar_lea.sflag [#allocation6], 1
    %20 = vsyncpa %s19, 0
    %21 = vsyncpa [#allocation9], 0
    %22 = vsyncpa [#allocation4], 0
    %s23 = scalar_lea.sflag [#allocation4], 1
    %24 = vsyncpa %s23, 0
    loop: start=0, step=1, limit=4
    $region2: #{tpu_custom_call.1} parent=1 // loop_pre_header
      _
    $region3: #{tpu_custom_call.1} parent=1 // loop_header
      %s26 = sphi 0, %s30
      %p27 = scmp.ge.s32.totalorder %s26, 4
      %s36 = sphi 0, %s38
      %s39 = sphi 0, %s36
      %s40 = sphi 0, %s39
      %s56 = sphi 0, %s40
      %s62 = sphi 0, %s64
      %s65 = sphi 0, %s62
      %s66 = sphi 0, %s65
      %s82 = sphi 0, %s66
      %s86 = sphi 0, %s86
      %s88 = sphi 0, %s86
      %s89 = sphi 0, %s88
      %s103 = sphi 0, %s89
      %s109 = sphi 0, %s111
      %s112 = sphi 0, %s109
      %s113 = sphi 0, %s112
      %s129 = sphi 0, %s113
      %s133 = sphi 0, %s133
      %s135 = sphi 0, %s133
      %s136 = sphi 0, %s135
      %s150 = sphi 0, %s136
      %s154 = sphi 0, %s154
      %s156 = sphi 0, %s154
      %s157 = sphi 0, %s156
      %s171 = sphi 0, %s157
      %s175 = sphi 0, %s175
      %s177 = sphi 0, %s175
      %s178 = sphi 0, %s177
      %s192 = sphi 0, %s178
      %s196 = sphi 0, %s196
      %s198 = sphi 0, %s196
      %s199 = sphi 0, %s198
      %s213 = sphi 0, %s199
      %s217 = sphi 0, %s217
      %s219 = sphi 0, %s217
      %s220 = sphi 0, %s219
      %s234 = sphi 0, %s220
      %s238 = sphi 0, %s238
      %s240 = sphi 0, %s238
      %s241 = sphi 0, %s240
      %s255 = sphi 0, %s241
      %s261 = sphi 0, %s263
      %s264 = sphi 0, %s261
      %s265 = sphi 0, %s264
      %s281 = sphi 0, %s265
    $region4: #{tpu_custom_call.1} parent=1 // loop_header_branch
      %29 = sbr.rel (%p27) target = $region8
    $region5: #{tpu_custom_call.1} parent=1 // loop_body
      %s31 = ssub.s32 %s26, 1
      %s32 = ssub.s32 %s26, 2
      %s33 = sadd.s32 %s26, 1
      %s34 = ssub.s32 %s26, %s33
      %p35 = scmp.eq.s32.totalorder %s34, 0
      %s37 = sadd.s32 %s36, 1
      %s38 = scalar_select %p35, %s36, %s37
      %p41 = pneg %p35
      %p42 = scmp.eq.s32.totalorder %s26, 1
      %p43 = por %p41, %p42
      %p44 = scmp.ne.s32.totalorder %s36, %s39
      %p45 = scmp.eq.s32.totalorder %s26, 0
      %p46 = por %p44, %p45
      %p47 = scmp.ne.s32.totalorder %s36, %s39
      %p48 = scmp.eq.s32.totalorder %s31, 1
      %p49 = por %p47, %p48
      %p50 = scmp.ne.s32.totalorder %s39, %s40
      %p51 = scmp.eq.s32.totalorder %s31, 0
      %p52 = por %p50, %p51
      %p53 = scmp.ne.s32.totalorder %s39, %s40
      %p54 = scmp.eq.s32.totalorder %s32, 1
      %p55 = por %p53, %p54
      %p57 = scmp.ne.s32.totalorder %s40, %s56
      %p58 = scmp.eq.s32.totalorder %s32, 0
      %p59 = por %p57, %p58
      %s60 = ssub.s32 %s26, %s33
      %p61 = scmp.eq.s32.totalorder %s60, 0
      %s63 = sadd.s32 %s62, 1
      %s64 = scalar_select %p61, %s62, %s63
      %p67 = pneg %p61
      %p68 = scmp.eq.s32.totalorder %s26, 1
      %p69 = por %p67, %p68
      %p70 = scmp.ne.s32.totalorder %s62, %s65
      %p71 = scmp.eq.s32.totalorder %s26, 0
      %p72 = por %p70, %p71
      %p73 = scmp.ne.s32.totalorder %s62, %s65
      %p74 = scmp.eq.s32.totalorder %s31, 1
      %p75 = por %p73, %p74
      %p76 = scmp.ne.s32.totalorder %s65, %s66
      %p77 = scmp.eq.s32.totalorder %s31, 0
      %p78 = por %p76, %p77
      %p79 = scmp.ne.s32.totalorder %s65, %s66
      %p80 = scmp.eq.s32.totalorder %s32, 1
      %p81 = por %p79, %p80
      %p83 = scmp.ne.s32.totalorder %s66, %s82
      %p84 = scmp.eq.s32.totalorder %s32, 0
      %p85 = por %p83, %p84
      %s87 = sadd.s32 %s86, 1
      %p90 = scmp.eq.s32.totalorder %s26, 1
      %p91 = scmp.ne.s32.totalorder %s86, %s88
      %p92 = scmp.eq.s32.totalorder %s26, 0
      %p93 = por %p91, %p92
      %p94 = scmp.ne.s32.totalorder %s86, %s88
      %p95 = scmp.eq.s32.totalorder %s31, 1
      %p96 = por %p94, %p95
      %p97 = scmp.ne.s32.totalorder %s88, %s89
      %p98 = scmp.eq.s32.totalorder %s31, 0
      %p99 = por %p97, %p98
      %p100 = scmp.ne.s32.totalorder %s88, %s89
      %p101 = scmp.eq.s32.totalorder %s32, 1
      %p102 = por %p100, %p101
      %p104 = scmp.ne.s32.totalorder %s89, %s103
      %p105 = scmp.eq.s32.totalorder %s32, 0
      %p106 = por %p104, %p105
      %s107 = ssub.s32 %s26, %s33
      %p108 = scmp.eq.s32.totalorder %s107, 0
      %s110 = sadd.s32 %s109, 1
      %s111 = scalar_select %p108, %s109, %s110
      %p114 = pneg %p108
      %p115 = scmp.eq.s32.totalorder %s26, 1
      %p116 = por %p114, %p115
      %p117 = scmp.ne.s32.totalorder %s109, %s112
      %p118 = scmp.eq.s32.totalorder %s26, 0
      %p119 = por %p117, %p118
      %p120 = scmp.ne.s32.totalorder %s109, %s112
      %p121 = scmp.eq.s32.totalorder %s31, 1
      %p122 = por %p120, %p121
      %p123 = scmp.ne.s32.totalorder %s112, %s113
      %p124 = scmp.eq.s32.totalorder %s31, 0
      %p125 = por %p123, %p124
      %p126 = scmp.ne.s32.totalorder %s112, %s113
      %p127 = scmp.eq.s32.totalorder %s32, 1
      %p128 = por %p126, %p127
      %p130 = scmp.ne.s32.totalorder %s113, %s129
      %p131 = scmp.eq.s32.totalorder %s32, 0
      %p132 = por %p130, %p131
      %s134 = sadd.s32 %s133, 1
      %p137 = scmp.eq.s32.totalorder %s26, 1
      %p138 = scmp.ne.s32.totalorder %s133, %s135
      %p139 = scmp.eq.s32.totalorder %s26, 0
      %p140 = por %p138, %p139
      %p141 = scmp.ne.s32.totalorder %s133, %s135
      %p142 = scmp.eq.s32.totalorder %s31, 1
      %p143 = por %p141, %p142
      %p144 = scmp.ne.s32.totalorder %s135, %s136
      %p145 = scmp.eq.s32.totalorder %s31, 0
      %p146 = por %p144, %p145
      %p147 = scmp.ne.s32.totalorder %s135, %s136
      %p148 = scmp.eq.s32.totalorder %s32, 1
      %p149 = por %p147, %p148
      %p151 = scmp.ne.s32.totalorder %s136, %s150
      %p152 = scmp.eq.s32.totalorder %s32, 0
      %p153 = por %p151, %p152
      %s155 = sadd.s32 %s154, 1
      %p158 = scmp.eq.s32.totalorder %s26, 1
      %p159 = scmp.ne.s32.totalorder %s154, %s156
      %p160 = scmp.eq.s32.totalorder %s26, 0
      %p161 = por %p159, %p160
      %p162 = scmp.ne.s32.totalorder %s154, %s156
      %p163 = scmp.eq.s32.totalorder %s31, 1
      %p164 = por %p162, %p163
      %p165 = scmp.ne.s32.totalorder %s156, %s157
      %p166 = scmp.eq.s32.totalorder %s31, 0
      %p167 = por %p165, %p166
      %p168 = scmp.ne.s32.totalorder %s156, %s157
      %p169 = scmp.eq.s32.totalorder %s32, 1
      %p170 = por %p168, %p169
      %p172 = scmp.ne.s32.totalorder %s157, %s171
      %p173 = scmp.eq.s32.totalorder %s32, 0
      %p174 = por %p172, %p173
      %s176 = sadd.s32 %s175, 1
      %p179 = scmp.eq.s32.totalorder %s26, 1
      %p180 = scmp.ne.s32.totalorder %s175, %s177
      %p181 = scmp.eq.s32.totalorder %s26, 0
      %p182 = por %p180, %p181
      %p183 = scmp.ne.s32.totalorder %s175, %s177
      %p184 = scmp.eq.s32.totalorder %s31, 1
      %p185 = por %p183, %p184
      %p186 = scmp.ne.s32.totalorder %s177, %s178
      %p187 = scmp.eq.s32.totalorder %s31, 0
      %p188 = por %p186, %p187
      %p189 = scmp.ne.s32.totalorder %s177, %s178
      %p190 = scmp.eq.s32.totalorder %s32, 1
      %p191 = por %p189, %p190
      %p193 = scmp.ne.s32.totalorder %s178, %s192
      %p194 = scmp.eq.s32.totalorder %s32, 0
      %p195 = por %p193, %p194
      %s197 = sadd.s32 %s196, 1
      %p200 = scmp.eq.s32.totalorder %s26, 1
      %p201 = scmp.ne.s32.totalorder %s196, %s198
      %p202 = scmp.eq.s32.totalorder %s26, 0
      %p203 = por %p201, %p202
      %p204 = scmp.ne.s32.totalorder %s196, %s198
      %p205 = scmp.eq.s32.totalorder %s31, 1
      %p206 = por %p204, %p205
      %p207 = scmp.ne.s32.totalorder %s198, %s199
      %p208 = scmp.eq.s32.totalorder %s31, 0
      %p209 = por %p207, %p208
      %p210 = scmp.ne.s32.totalorder %s198, %s199
      %p211 = scmp.eq.s32.totalorder %s32, 1
      %p212 = por %p210, %p211
      %p214 = scmp.ne.s32.totalorder %s199, %s213
      %p215 = scmp.eq.s32.totalorder %s32, 0
      %p216 = por %p214, %p215
      %s218 = sadd.s32 %s217, 1
      %p221 = scmp.eq.s32.totalorder %s26, 1
      %p222 = scmp.ne.s32.totalorder %s217, %s219
      %p223 = scmp.eq.s32.totalorder %s26, 0
      %p224 = por %p222, %p223
      %p225 = scmp.ne.s32.totalorder %s217, %s219
      %p226 = scmp.eq.s32.totalorder %s31, 1
      %p227 = por %p225, %p226
      %p228 = scmp.ne.s32.totalorder %s219, %s220
      %p229 = scmp.eq.s32.totalorder %s31, 0
      %p230 = por %p228, %p229
      %p231 = scmp.ne.s32.totalorder %s219, %s220
      %p232 = scmp.eq.s32.totalorder %s32, 1
      %p233 = por %p231, %p232
      %p235 = scmp.ne.s32.totalorder %s220, %s234
      %p236 = scmp.eq.s32.totalorder %s32, 0
      %p237 = por %p235, %p236
      %s239 = sadd.s32 %s238, 1
      %p242 = scmp.eq.s32.totalorder %s26, 1
      %p243 = scmp.ne.s32.totalorder %s238, %s240
      %p244 = scmp.eq.s32.totalorder %s26, 0
      %p245 = por %p243, %p244
      %p246 = scmp.ne.s32.totalorder %s238, %s240
      %p247 = scmp.eq.s32.totalorder %s31, 1
      %p248 = por %p246, %p247
      %p249 = scmp.ne.s32.totalorder %s240, %s241
      %p250 = scmp.eq.s32.totalorder %s31, 0
      %p251 = por %p249, %p250
      %p252 = scmp.ne.s32.totalorder %s240, %s241
      %p253 = scmp.eq.s32.totalorder %s32, 1
      %p254 = por %p252, %p253
      %p256 = scmp.ne.s32.totalorder %s241, %s255
      %p257 = scmp.eq.s32.totalorder %s32, 0
      %p258 = por %p256, %p257
      %s259 = ssub.s32 %s26, %s33
      %p260 = scmp.eq.s32.totalorder %s259, 0
      %s262 = sadd.s32 %s261, 1
      %s263 = scalar_select %p260, %s261, %s262
      %p266 = pneg %p260
      %p267 = scmp.eq.s32.totalorder %s26, 1
      %p268 = por %p266, %p267
      %p269 = scmp.ne.s32.totalorder %s261, %s264
      %p270 = scmp.eq.s32.totalorder %s26, 0
      %p271 = por %p269, %p270
      %p272 = scmp.ne.s32.totalorder %s261, %s264
      %p273 = scmp.eq.s32.totalorder %s31, 1
      %p274 = por %p272, %p273
      %p275 = scmp.ne.s32.totalorder %s264, %s265
      %p276 = scmp.eq.s32.totalorder %s31, 0
      %p277 = por %p275, %p276
      %p278 = scmp.ne.s32.totalorder %s264, %s265
      %p279 = scmp.eq.s32.totalorder %s32, 1
      %p280 = por %p278, %p279
      %p282 = scmp.ne.s32.totalorder %s265, %s281
      %p283 = scmp.eq.s32.totalorder %s32, 0
      %p284 = por %p282, %p283
      %p285 = scmp.le.s32.totalorder 1, %s26
      %p286 = scmp.lt.s32.totalorder %s26, 3
      %p287 = pnand %p285, %p286
      %p288 = pneg %p287
      // Predicated region
      $region9: #{tpu_custom_call.1} parent=5 // pred_check
        _
      $region10: #{tpu_custom_call.1} parent=5 // pred_check_branch
        %290 = sbr.rel (%p287) target = $region12
      $region11: #{tpu_custom_call.1} parent=5 // pred_region
        %s291 = ssub.s32 %s26, 1
        // Predicated region
        $region13: #{tpu_custom_call.1} parent=11 // pred_check
          %p292 = pneg %p99
        $region14: #{tpu_custom_call.1} parent=11 // pred_check_branch
          %294 = sbr.rel (%p292) target = $region16
        $region15: #{tpu_custom_call.1} parent=11 // pred_region
          _
        $region16: #{tpu_custom_call.1} parent=11 // pred_fallthru
          _
        // Predicated region
        $region17: #{tpu_custom_call.1} parent=11 // pred_check
          %p295 = pneg %p146
        $region18: #{tpu_custom_call.1} parent=11 // pred_check_branch
          %297 = sbr.rel (%p295) target = $region20
        $region19: #{tpu_custom_call.1} parent=11 // pred_region
          %299 = vsyncadd [#allocation6], 0
          %s300 = sshll.u32 %s4, 4
          %s301 = int_to_ptr.hbm [resolvable:$true] %s300
          %s302 = sshll.u32 [#allocation7], 4
          %s303 = int_to_ptr.vmem [resolvable:$true] %s302
          %308 = dma.hbm_to_vmem [thread:$0]  %s301, 1024, %s303, [#allocation6], 64, 64, 4
        $region20: #{tpu_custom_call.1} parent=11 // pred_fallthru
          _
        // Predicated region
        $region21: #{tpu_custom_call.1} parent=11 // pred_check
          %p309 = pneg %p167
        $region22: #{tpu_custom_call.1} parent=11 // pred_check_branch
          %311 = sbr.rel (%p309) target = $region24
        $region23: #{tpu_custom_call.1} parent=11 // pred_region
          _
        $region24: #{tpu_custom_call.1} parent=11 // pred_fallthru
          _
        // Predicated region
        $region25: #{tpu_custom_call.1} parent=11 // pred_check
          %p312 = pneg %p188
        $region26: #{tpu_custom_call.1} parent=11 // pred_check_branch
          %314 = sbr.rel (%p312) target = $region28
        $region27: #{tpu_custom_call.1} parent=11 // pred_region
          %316 = vsyncadd [#allocation9], 0
          %s317 = sshll.u32 %s6, 4
          %s318 = int_to_ptr.hbm [resolvable:$true] %s317
          %s319 = sshll.u32 [#allocation8], 4
          %s320 = int_to_ptr.vmem [resolvable:$true] %s319
          %325 = dma.hbm_to_vmem [thread:$0]  %s318, 1024, %s320, [#allocation9], 64, 64, 4
        $region28: #{tpu_custom_call.1} parent=11 // pred_fallthru
          _
        // Predicated region
        $region29: #{tpu_custom_call.1} parent=11 // pred_check
          %p326 = pneg %p209
        $region30: #{tpu_custom_call.1} parent=11 // pred_check_branch
          %328 = sbr.rel (%p326) target = $region32
        $region31: #{tpu_custom_call.1} parent=11 // pred_region
          _
        $region32: #{tpu_custom_call.1} parent=11 // pred_fallthru
          _
        // Predicated region
        $region33: #{tpu_custom_call.1} parent=11 // pred_check
          %p329 = pneg %p230
        $region34: #{tpu_custom_call.1} parent=11 // pred_check_branch
          %331 = sbr.rel (%p329) target = $region36
        $region35: #{tpu_custom_call.1} parent=11 // pred_region
          %333 = vsyncadd [#allocation9], 0
          %s334 = sshll.u32 %s8, 4
          %s335 = int_to_ptr.hbm [resolvable:$true] %s334
          %s336 = sshll.u32 [#allocation10], 4
          %s337 = int_to_ptr.vmem [resolvable:$true] %s336
          %342 = dma.hbm_to_vmem [thread:$0]  %s335, 1024, %s337, [#allocation9], 64, 64, 4
        $region36: #{tpu_custom_call.1} parent=11 // pred_fallthru
          _
        // Predicated region
        $region37: #{tpu_custom_call.1} parent=11 // pred_check
          %p343 = pneg %p251
        $region38: #{tpu_custom_call.1} parent=11 // pred_check_branch
          %345 = sbr.rel (%p343) target = $region40
        $region39: #{tpu_custom_call.1} parent=11 // pred_region
          _
        $region40: #{tpu_custom_call.1} parent=11 // pred_fallthru
          _
      $region12: #{tpu_custom_call.1} parent=5 // pred_fallthru
        _
      %p346 = scmp.lt.s32.totalorder %s26, 2
      // Predicated region
      $region41: #{tpu_custom_call.1} parent=5 // pred_check
        %p347 = pneg %p346
      $region42: #{tpu_custom_call.1} parent=5 // pred_check_branch
        %349 = sbr.rel (%p347) target = $region44
      $region43: #{tpu_custom_call.1} parent=5 // pred_region
        // Predicated region
        $region45: #{tpu_custom_call.1} parent=43 // pred_check
          %p350 = pneg %p46
        $region46: #{tpu_custom_call.1} parent=43 // pred_check_branch
          %352 = sbr.rel (%p350) target = $region48
        $region47: #{tpu_custom_call.1} parent=43 // pred_region
          %s353 = sand.u32 %s36, 1
          %s354 = scalar_lea.sflag [#allocation3], %s353
          %s355 = sand.u32 %s36, 1
          %s356 = smul.addr %s355, 128
          %s357 = scalar_lea.vmem [#allocation2], %s356
          %359 = vsyncadd %s354, 0
          %s360 = smul.addr %s26, 32
          %s361 = smul.addr %s360, 4
          %s362 = scalar_lea.hbm %s0, %s361
          %s363 = sshll.u32 %s362, 4
          %s364 = int_to_ptr.hbm [resolvable:$true] %s363
          %s365 = sshll.u32 %s357, 4
          %s366 = int_to_ptr.vmem [resolvable:$true] %s365
          %371 = dma.hbm_to_vmem [thread:$0]  %s364, 2048, %s366, %s354, 64, 64, 4
        $region48: #{tpu_custom_call.1} parent=43 // pred_fallthru
          _
        // Predicated region
        $region49: #{tpu_custom_call.1} parent=43 // pred_check
          %p372 = pneg %p72
        $region50: #{tpu_custom_call.1} parent=43 // pred_check_branch
          %374 = sbr.rel (%p372) target = $region52
        $region51: #{tpu_custom_call.1} parent=43 // pred_region
          %s375 = sand.u32 %s26, 1
          %s376 = scalar_lea.sflag [#allocation6], %s375
          %s377 = sand.u32 %s62, 1
          %s378 = smul.addr %s377, 256
          %s379 = scalar_lea.vmem [#allocation5], %s378
          %381 = vsyncadd %s376, 0
          %s382 = smul.addr %s26, 64
          %s383 = smul.addr %s382, 4
          %s384 = scalar_lea.hbm %s1, %s383
          %s385 = sshll.u32 %s384, 4
          %s386 = int_to_ptr.hbm [resolvable:$true] %s385
          %s387 = sshll.u32 %s379, 4
          %s388 = int_to_ptr.vmem [resolvable:$true] %s387
          %393 = dma.hbm_to_vmem [thread:$0]  %s386, 4096, %s388, %s376, 128, 128, 8
        $region52: #{tpu_custom_call.1} parent=43 // pred_fallthru
          _
        // Predicated region
        $region53: #{tpu_custom_call.1} parent=43 // pred_check
          %p394 = pneg %p119
        $region54: #{tpu_custom_call.1} parent=43 // pred_check_branch
          %396 = sbr.rel (%p394) target = $region56
        $region55: #{tpu_custom_call.1} parent=43 // pred_region
          %s397 = smul.u32 2, %s26
          %p398 = scmp.lt.s32.totalorder %s397, 3
          %s399 = scalar_select %p398, %s397, 3
          %s400 = smul.addr %s399, 8
          %s401 = scalar_lea.vmem %s3, %s400
          %s402 = smul.u32 2, %s26
        $region56: #{tpu_custom_call.1} parent=43 // pred_fallthru
          _
      $region44: #{tpu_custom_call.1} parent=5 // pred_fallthru
        _
      %p403 = scmp.le.s32.totalorder 1, %s26
      %p404 = scmp.lt.s32.totalorder %s26, 3
      %p405 = pnand %p403, %p404
      %p406 = pneg %p405
      // Predicated region
      $region57: #{tpu_custom_call.1} parent=5 // pred_check
        _
      $region58: #{tpu_custom_call.1} parent=5 // pred_check_branch
        %408 = sbr.rel (%p405) target = $region60
      $region59: #{tpu_custom_call.1} parent=5 // pred_region
        %s409 = ssub.s32 %s26, 1
        %s410 = sand.u32 %s39, 1
        %s411 = scalar_lea.sflag [#allocation3], %s410
        %s412 = sand.u32 %s39, 1
        %s413 = smul.addr %s412, 128
        %s414 = scalar_lea.vmem [#allocation2], %s413
        // Predicated region
        $region61: #{tpu_custom_call.1} parent=59 // pred_check
          %p415 = pneg %p52
        $region62: #{tpu_custom_call.1} parent=59 // pred_check_branch
          %417 = sbr.rel (%p415) target = $region64
        $region63: #{tpu_custom_call.1} parent=59 // pred_region
          %419 = dma.done %s411, 2048
        $region64: #{tpu_custom_call.1} parent=59 // pred_fallthru
          _
        %s420 = sand.u32 %s31, 1
        %s421 = scalar_lea.sflag [#allocation6], %s420
        %s422 = sand.u32 %s65, 1
        %s423 = smul.addr %s422, 256
        %s424 = scalar_lea.vmem [#allocation5], %s423
        // Predicated region
        $region65: #{tpu_custom_call.1} parent=59 // pred_check
          %p425 = pneg %p78
        $region66: #{tpu_custom_call.1} parent=59 // pred_check_branch
          %427 = sbr.rel (%p425) target = $region68
        $region67: #{tpu_custom_call.1} parent=59 // pred_region
          %429 = dma.done %s421, 4096
        $region68: #{tpu_custom_call.1} parent=59 // pred_fallthru
          _
        // Predicated region
        $region69: #{tpu_custom_call.1} parent=59 // pred_check
          %p430 = pneg %p146
        $region70: #{tpu_custom_call.1} parent=59 // pred_check_branch
          %432 = sbr.rel (%p430) target = $region72
        $region71: #{tpu_custom_call.1} parent=59 // pred_region
          %434 = dma.done [#allocation6], 1024
        $region72: #{tpu_custom_call.1} parent=59 // pred_fallthru
          _
        // Predicated region
        $region73: #{tpu_custom_call.1} parent=59 // pred_check
          %p435 = pneg %p188
        $region74: #{tpu_custom_call.1} parent=59 // pred_check_branch
          %437 = sbr.rel (%p435) target = $region76
        $region75: #{tpu_custom_call.1} parent=59 // pred_region
          %439 = dma.done [#allocation9], 1024
        $region76: #{tpu_custom_call.1} parent=59 // pred_fallthru
          _
        // Predicated region
        $region77: #{tpu_custom_call.1} parent=59 // pred_check
          %p440 = pneg %p230
        $region78: #{tpu_custom_call.1} parent=59 // pred_check_branch
          %442 = sbr.rel (%p440) target = $region80
        $region79: #{tpu_custom_call.1} parent=59 // pred_region
          %444 = dma.done [#allocation9], 1024
        $region80: #{tpu_custom_call.1} parent=59 // pred_fallthru
          _
        %s445 = sand.u32 %s39, 1
        %s446 = scalar_lea.sflag [#allocation3], %s445
        %s447 = sand.u32 %s39, 1
        %s448 = smul.addr %s447, 128
        %s449 = scalar_lea.vmem [#allocation2], %s448
        %p450 = pneg %p52
        %p451 = pneg %p49
        %s452 = sand.u32 %s31, 1
        %s453 = scalar_lea.sflag [#allocation6], %s452
        %s454 = sand.u32 %s65, 1
        %s455 = smul.addr %s454, 256
        %s456 = scalar_lea.vmem [#allocation5], %s455
        %p457 = pneg %p78
        %p458 = pneg %p75
        %p459 = pneg %p99
        %p460 = pneg %p96
        %s461 = smul.u32 2, %s31
        %p462 = scmp.lt.s32.totalorder %s461, 3
        %s463 = scalar_select %p462, %s461, 3
        %s464 = smul.addr %s463, 8
        %s465 = scalar_lea.vmem %s3, %s464
        %p466 = pneg %p125
        %p467 = pneg %p122
        %p468 = pneg %p146
        %p469 = pneg %p143
        %p470 = pneg %p167
        %p471 = pneg %p164
        %p472 = pneg %p188
        %p473 = pneg %p185
        %p474 = pneg %p209
        %p475 = pneg %p206
        %p476 = pneg %p230
        %p477 = pneg %p227
        %p478 = pneg %p251
        %p479 = pneg %p248
        %p480 = pneg %p277
        %p481 = pneg %p274
        %s482 = sand.u32 %s264, 1
        %s483 = scalar_lea.sflag [#allocation4], %s482
        %s484 = sand.u32 %s264, 1
        %s485 = smul.addr %s484, 16
        %s486 = scalar_lea.vmem [#allocation11], %s485
        %s487 = smul.u32 2, %s31
        %p488 = scmp.lt.s32.totalorder %s487, 3
        %s489 = scalar_select %p488, %s487, 3
        %s490 = smul.addr %s489, 8
        %s491 = scalar_lea.vmem %s3, %s490
        %s492 = smul.u32 2, %s31
        %s493 = smul.u32 2, %s31
        %v494 = vld [vmem:[%s424] sm:$0xff]
        %v495 = vld [vmem:[%s424 + $0x8] sm:$0xff]
        %v496 = vld [vmem:[%s424 + $0x10] sm:$0xff]
        %v497 = vld [vmem:[%s424 + $0x18] sm:$0xff]
        %v498 = vld [vmem:[%s424 + $0x20] sm:$0xff]
        %v499 = vld [vmem:[%s424 + $0x28] sm:$0xff]
        %v500 = vld [vmem:[%s424 + $0x30] sm:$0xff]
        %v501 = vld [vmem:[%s424 + $0x38] sm:$0xff]
        %v502 = vld [vmem:[%s424 + $0x40] sm:$0xff]
        %v503 = vld [vmem:[%s424 + $0x48] sm:$0xff]
        %v504 = vld [vmem:[%s424 + $0x50] sm:$0xff]
        %v505 = vld [vmem:[%s424 + $0x58] sm:$0xff]
        %v506 = vld [vmem:[%s424 + $0x60] sm:$0xff]
        %v507 = vld [vmem:[%s424 + $0x68] sm:$0xff]
        %v508 = vld [vmem:[%s424 + $0x70] sm:$0xff]
        %v509 = vld [vmem:[%s424 + $0x78] sm:$0xff]
        %v510 = vld [vmem:[%s424 + $0x80] sm:$0xff]
        %v511 = vld [vmem:[%s424 + $0x88] sm:$0xff]
        %v512 = vld [vmem:[%s424 + $0x90] sm:$0xff]
        %v513 = vld [vmem:[%s424 + $0x98] sm:$0xff]
        %v514 = vld [vmem:[%s424 + $0xa0] sm:$0xff]
        %v515 = vld [vmem:[%s424 + $0xa8] sm:$0xff]
        %v516 = vld [vmem:[%s424 + $0xb0] sm:$0xff]
        %v517 = vld [vmem:[%s424 + $0xb8] sm:$0xff]
        %v518 = vld [vmem:[%s424 + $0xc0] sm:$0xff]
        %v519 = vld [vmem:[%s424 + $0xc8] sm:$0xff]
        %v520 = vld [vmem:[%s424 + $0xd0] sm:$0xff]
        %v521 = vld [vmem:[%s424 + $0xd8] sm:$0xff]
        %v522 = vld [vmem:[%s424 + $0xe0] sm:$0xff]
        %v523 = vld [vmem:[%s424 + $0xe8] sm:$0xff]
        %v524 = vld [vmem:[%s424 + $0xf0] sm:$0xff]
        %v525 = vld [vmem:[%s424 + $0xf8] sm:$0xff]
        %v526 = vld [vmem:[%s414] sm:$0xf]
        %v527 = vld [vmem:[%s414 + $0x4] sm:$0xf]
        %v528 = vld [vmem:[%s414 + $0x8] sm:$0xf]
        %v529 = vld [vmem:[%s414 + $0xc] sm:$0xf]
        %v530 = vld [vmem:[%s414 + $0x10] sm:$0xf]
        %v531 = vld [vmem:[%s414 + $0x14] sm:$0xf]
        %v532 = vld [vmem:[%s414 + $0x18] sm:$0xf]
        %v533 = vld [vmem:[%s414 + $0x1c] sm:$0xf]
        %v534 = vld [vmem:[%s414 + $0x20] sm:$0xf]
        %v535 = vld [vmem:[%s414 + $0x24] sm:$0xf]
        %v536 = vld [vmem:[%s414 + $0x28] sm:$0xf]
        %v537 = vld [vmem:[%s414 + $0x2c] sm:$0xf]
        %v538 = vld [vmem:[%s414 + $0x30] sm:$0xf]
        %v539 = vld [vmem:[%s414 + $0x34] sm:$0xf]
        %v540 = vld [vmem:[%s414 + $0x38] sm:$0xf]
        %v541 = vld [vmem:[%s414 + $0x3c] sm:$0xf]
        %v542 = vld [vmem:[%s414 + $0x40] sm:$0xf]
        %v543 = vld [vmem:[%s414 + $0x44] sm:$0xf]
        %v544 = vld [vmem:[%s414 + $0x48] sm:$0xf]
        %v545 = vld [vmem:[%s414 + $0x4c] sm:$0xf]
        %v546 = vld [vmem:[%s414 + $0x50] sm:$0xf]
        %v547 = vld [vmem:[%s414 + $0x54] sm:$0xf]
        %v548 = vld [vmem:[%s414 + $0x58] sm:$0xf]
        %v549 = vld [vmem:[%s414 + $0x5c] sm:$0xf]
        %v550 = vld [vmem:[%s414 + $0x60] sm:$0xf]
        %v551 = vld [vmem:[%s414 + $0x64] sm:$0xf]
        %v552 = vld [vmem:[%s414 + $0x68] sm:$0xf]
        %v553 = vld [vmem:[%s414 + $0x6c] sm:$0xf]
        %v554 = vld [vmem:[%s414 + $0x70] sm:$0xf]
        %v555 = vld [vmem:[%s414 + $0x74] sm:$0xf]
        %v556 = vld [vmem:[%s414 + $0x78] sm:$0xf]
        %v557 = vld [vmem:[%s414 + $0x7c] sm:$0xf]
        %v590 = vunpack.c.l.b16 %v494
        %v591 = vunpack.c.h.b16 %v494
        %v592 = vunpack.c.l.b16 %v495
        %v593 = vunpack.c.h.b16 %v495
        %v594 = vunpack.c.l.b16 %v496
        %v595 = vunpack.c.h.b16 %v496
        %v596 = vunpack.c.l.b16 %v497
        %v597 = vunpack.c.h.b16 %v497
        %v598 = vunpack.c.l.b16 %v498
        %v599 = vunpack.c.h.b16 %v498
        %v600 = vunpack.c.l.b16 %v499
        %v601 = vunpack.c.h.b16 %v499
        %v602 = vunpack.c.l.b16 %v500
        %v603 = vunpack.c.h.b16 %v500
        %v604 = vunpack.c.l.b16 %v501
        %v605 = vunpack.c.h.b16 %v501
        %v606 = vunpack.c.l.b16 %v502
        %v607 = vunpack.c.h.b16 %v502
        %v608 = vunpack.c.l.b16 %v503
        %v609 = vunpack.c.h.b16 %v503
        %v610 = vunpack.c.l.b16 %v504
        %v611 = vunpack.c.h.b16 %v504
        %v612 = vunpack.c.l.b16 %v505
        %v613 = vunpack.c.h.b16 %v505
        %v614 = vunpack.c.l.b16 %v506
        %v615 = vunpack.c.h.b16 %v506
        %v616 = vunpack.c.l.b16 %v507
        %v617 = vunpack.c.h.b16 %v507
        %v618 = vunpack.c.l.b16 %v508
        %v619 = vunpack.c.h.b16 %v508
        %v620 = vunpack.c.l.b16 %v509
        %v621 = vunpack.c.h.b16 %v509
        %v622 = vunpack.c.l.b16 %v510
        %v623 = vunpack.c.h.b16 %v510
        %v624 = vunpack.c.l.b16 %v511
        %v625 = vunpack.c.h.b16 %v511
        %v626 = vunpack.c.l.b16 %v512
        %v627 = vunpack.c.h.b16 %v512
        %v628 = vunpack.c.l.b16 %v513
        %v629 = vunpack.c.h.b16 %v513
        %v630 = vunpack.c.l.b16 %v514
        %v631 = vunpack.c.h.b16 %v514
        %v632 = vunpack.c.l.b16 %v515
        %v633 = vunpack.c.h.b16 %v515
        %v634 = vunpack.c.l.b16 %v516
        %v635 = vunpack.c.h.b16 %v516
        %v636 = vunpack.c.l.b16 %v517
        %v637 = vunpack.c.h.b16 %v517
        %v638 = vunpack.c.l.b16 %v518
        %v639 = vunpack.c.h.b16 %v518
        %v640 = vunpack.c.l.b16 %v519
        %v641 = vunpack.c.h.b16 %v519
        %v642 = vunpack.c.l.b16 %v520
        %v643 = vunpack.c.h.b16 %v520
        %v644 = vunpack.c.l.b16 %v521
        %v645 = vunpack.c.h.b16 %v521
        %v646 = vunpack.c.l.b16 %v522
        %v647 = vunpack.c.h.b16 %v522
        %v648 = vunpack.c.l.b16 %v523
        %v649 = vunpack.c.h.b16 %v523
        %v650 = vunpack.c.l.b16 %v524
        %v651 = vunpack.c.h.b16 %v524
        %v652 = vunpack.c.l.b16 %v525
        %v653 = vunpack.c.h.b16 %v525
        %v654 = vpack.c.b16 %v592, %v590
        %v655 = vpack.c.b16 %v593, %v591
        %v656 = vpack.c.b16 %v596, %v594
        %v657 = vpack.c.b16 %v597, %v595
        %v658 = vpack.c.b16 %v600, %v598
        %v659 = vpack.c.b16 %v601, %v599
        %v660 = vpack.c.b16 %v604, %v602
        %v661 = vpack.c.b16 %v605, %v603
        %v662 = vpack.c.b16 %v608, %v606
        %v663 = vpack.c.b16 %v609, %v607
        %v664 = vpack.c.b16 %v612, %v610
        %v665 = vpack.c.b16 %v613, %v611
        %v666 = vpack.c.b16 %v616, %v614
        %v667 = vpack.c.b16 %v617, %v615
        %v668 = vpack.c.b16 %v620, %v618
        %v669 = vpack.c.b16 %v621, %v619
        %v670 = vpack.c.b16 %v624, %v622
        %v671 = vpack.c.b16 %v625, %v623
        %v672 = vpack.c.b16 %v628, %v626
        %v673 = vpack.c.b16 %v629, %v627
        %v674 = vpack.c.b16 %v632, %v630
        %v675 = vpack.c.b16 %v633, %v631
        %v676 = vpack.c.b16 %v636, %v634
        %v677 = vpack.c.b16 %v637, %v635
        %v678 = vpack.c.b16 %v640, %v638
        %v679 = vpack.c.b16 %v641, %v639
        %v680 = vpack.c.b16 %v644, %v642
        %v681 = vpack.c.b16 %v645, %v643
        %v682 = vpack.c.b16 %v648, %v646
        %v683 = vpack.c.b16 %v649, %v647
        %v684 = vpack.c.b16 %v652, %v650
        %v685 = vpack.c.b16 %v653, %v651
        %v750 = vunpack.c.l.b16 %v526
        %v751 = vunpack.c.l.b16 %v527
        %v752 = vunpack.c.l.b16 %v528
        %v753 = vunpack.c.l.b16 %v529
        %v754 = vunpack.c.l.b16 %v530
        %v755 = vunpack.c.l.b16 %v531
        %v756 = vunpack.c.l.b16 %v532
        %v757 = vunpack.c.l.b16 %v533
        %v758 = vunpack.c.l.b16 %v534
        %v759 = vunpack.c.l.b16 %v535
        %v760 = vunpack.c.l.b16 %v536
        %v761 = vunpack.c.l.b16 %v537
        %v762 = vunpack.c.l.b16 %v538
        %v763 = vunpack.c.l.b16 %v539
        %v764 = vunpack.c.l.b16 %v540
        %v765 = vunpack.c.l.b16 %v541
        %v766 = vunpack.c.l.b16 %v542
        %v767 = vunpack.c.l.b16 %v543
        %v768 = vunpack.c.l.b16 %v544
        %v769 = vunpack.c.l.b16 %v545
        %v770 = vunpack.c.l.b16 %v546
        %v771 = vunpack.c.l.b16 %v547
        %v772 = vunpack.c.l.b16 %v548
        %v773 = vunpack.c.l.b16 %v549
        %v774 = vunpack.c.l.b16 %v550
        %v775 = vunpack.c.l.b16 %v551
        %v776 = vunpack.c.l.b16 %v552
        %v777 = vunpack.c.l.b16 %v553
        %v778 = vunpack.c.l.b16 %v554
        %v779 = vunpack.c.l.b16 %v555
        %v780 = vunpack.c.l.b16 %v556
        %v781 = vunpack.c.l.b16 %v557
        %v782 = vpack.c.b16 %v751, %v750
        %v783 = vpack.c.b16 %v753, %v752
        %v784 = vpack.c.b16 %v755, %v754
        %v785 = vpack.c.b16 %v757, %v756
        %v786 = vpack.c.b16 %v759, %v758
        %v787 = vpack.c.b16 %v761, %v760
        %v788 = vpack.c.b16 %v763, %v762
        %v789 = vpack.c.b16 %v765, %v764
        %v790 = vpack.c.b16 %v767, %v766
        %v791 = vpack.c.b16 %v769, %v768
        %v792 = vpack.c.b16 %v771, %v770
        %v793 = vpack.c.b16 %v773, %v772
        %v794 = vpack.c.b16 %v775, %v774
        %v795 = vpack.c.b16 %v777, %v776
        %v796 = vpack.c.b16 %v779, %v778
        %v797 = vpack.c.b16 %v781, %v780
        %814 = vmatpush.bf16.msra.mxu0 %v789
        %815 = vmatpush.bf16.msra.mxu0 %v788
        %816 = vmatpush.bf16.msra.mxu0 %v787
        %817 = vmatpush.bf16.msra.mxu0 %v786
        %818 = vmatpush.bf16.msra.mxu0 %v785
        %819 = vmatpush.bf16.msra.mxu0 %v784
        %820 = vmatpush.bf16.msra.mxu0 %v783
        %821 = vmatpush.bf16.msra.mxu0 %v782
        %822 = vmatmul.bf16.gmra.mxu0 %v654
        %v823 = vpop.f32.mrf.mxu0
        %v824 = vadd.f32 0.0, %v823
        %v825 = vpop.f32.mrf.mxu0
        %v826 = vadd.f32 0.0, %v825
        %827 = vmatmul.bf16.gmra.mxu0 %v656
        %v828 = vpop.f32.mrf.mxu0
        %v829 = vadd.f32 0.0, %v828
        %v830 = vpop.f32.mrf.mxu0
        %v831 = vadd.f32 0.0, %v830
        %832 = vmatmul.bf16.gmra.mxu0 %v658
        %v833 = vpop.f32.mrf.mxu0
        %v834 = vadd.f32 0.0, %v833
        %v835 = vpop.f32.mrf.mxu0
        %v836 = vadd.f32 0.0, %v835
        %837 = vmatmul.bf16.gmra.mxu0 %v660
        %v838 = vpop.f32.mrf.mxu0
        %v839 = vadd.f32 0.0, %v838
        %v840 = vpop.f32.mrf.mxu0
        %v841 = vadd.f32 0.0, %v840
        %842 = vmatmul.bf16.gmra.mxu0 %v662
        %v843 = vpop.f32.mrf.mxu0
        %v844 = vadd.f32 0.0, %v843
        %v845 = vpop.f32.mrf.mxu0
        %v846 = vadd.f32 0.0, %v845
        %847 = vmatmul.bf16.gmra.mxu0 %v664
        %v848 = vpop.f32.mrf.mxu0
        %v849 = vadd.f32 0.0, %v848
        %v850 = vpop.f32.mrf.mxu0
        %v851 = vadd.f32 0.0, %v850
        %852 = vmatmul.bf16.gmra.mxu0 %v666
        %v853 = vpop.f32.mrf.mxu0
        %v854 = vadd.f32 0.0, %v853
        %v855 = vpop.f32.mrf.mxu0
        %v856 = vadd.f32 0.0, %v855
        %857 = vmatmul.bf16.gmra.mxu0 %v668
        %v858 = vpop.f32.mrf.mxu0
        %v859 = vadd.f32 0.0, %v858
        %v860 = vpop.f32.mrf.mxu0
        %v861 = vadd.f32 0.0, %v860
        %862 = vmatmul.bf16.gmra.mxu0 %v670
        %v863 = vpop.f32.mrf.mxu0
        %v864 = vadd.f32 0.0, %v863
        %v865 = vpop.f32.mrf.mxu0
        %v866 = vadd.f32 0.0, %v865
        %867 = vmatmul.bf16.gmra.mxu0 %v672
        %v868 = vpop.f32.mrf.mxu0
        %v869 = vadd.f32 0.0, %v868
        %v870 = vpop.f32.mrf.mxu0
        %v871 = vadd.f32 0.0, %v870
        %872 = vmatmul.bf16.gmra.mxu0 %v674
        %v873 = vpop.f32.mrf.mxu0
        %v874 = vadd.f32 0.0, %v873
        %v875 = vpop.f32.mrf.mxu0
        %v876 = vadd.f32 0.0, %v875
        %877 = vmatmul.bf16.gmra.mxu0 %v676
        %v878 = vpop.f32.mrf.mxu0
        %v879 = vadd.f32 0.0, %v878
        %v880 = vpop.f32.mrf.mxu0
        %v881 = vadd.f32 0.0, %v880
        %882 = vmatmul.bf16.gmra.mxu0 %v678
        %v883 = vpop.f32.mrf.mxu0
        %v884 = vadd.f32 0.0, %v883
        %v885 = vpop.f32.mrf.mxu0
        %v886 = vadd.f32 0.0, %v885
        %887 = vmatmul.bf16.gmra.mxu0 %v680
        %v888 = vpop.f32.mrf.mxu0
        %v889 = vadd.f32 0.0, %v888
        %v890 = vpop.f32.mrf.mxu0
        %v891 = vadd.f32 0.0, %v890
        %892 = vmatmul.bf16.gmra.mxu0 %v682
        %v893 = vpop.f32.mrf.mxu0
        %v894 = vadd.f32 0.0, %v893
        %v895 = vpop.f32.mrf.mxu0
        %v896 = vadd.f32 0.0, %v895
        %897 = vmatmul.bf16.gmra.mxu0 %v684
        %v898 = vpop.f32.mrf.mxu0
        %v899 = vadd.f32 0.0, %v898
        %v900 = vpop.f32.mrf.mxu0
        %v901 = vadd.f32 0.0, %v900
        %902 = vdwg.mxu0
        %903 = vmatpush.bf16.msra.mxu0 %v797
        %904 = vmatpush.bf16.msra.mxu0 %v796
        %905 = vmatpush.bf16.msra.mxu0 %v795
        %906 = vmatpush.bf16.msra.mxu0 %v794
        %907 = vmatpush.bf16.msra.mxu0 %v793
        %908 = vmatpush.bf16.msra.mxu0 %v792
        %909 = vmatpush.bf16.msra.mxu0 %v791
        %910 = vmatpush.bf16.msra.mxu0 %v790
        %911 = vmatmul.bf16.gmra.mxu0 %v655
        %v912 = vpop.f32.mrf.mxu0
        %v913 = vadd.f32 %v824, %v912
        %v914 = vpop.f32.mrf.mxu0
        %v915 = vadd.f32 %v826, %v914
        %916 = vmatmul.bf16.gmra.mxu0 %v657
        %v917 = vpop.f32.mrf.mxu0
        %v918 = vadd.f32 %v829, %v917
        %v919 = vpop.f32.mrf.mxu0
        %v920 = vadd.f32 %v831, %v919
        %921 = vmatmul.bf16.gmra.mxu0 %v659
        %v922 = vpop.f32.mrf.mxu0
        %v923 = vadd.f32 %v834, %v922
        %v924 = vpop.f32.mrf.mxu0
        %v925 = vadd.f32 %v836, %v924
        %926 = vmatmul.bf16.gmra.mxu0 %v661
        %v927 = vpop.f32.mrf.mxu0
        %v928 = vadd.f32 %v839, %v927
        %v929 = vpop.f32.mrf.mxu0
        %v930 = vadd.f32 %v841, %v929
        %931 = vmatmul.bf16.gmra.mxu0 %v663
        %v932 = vpop.f32.mrf.mxu0
        %v933 = vadd.f32 %v844, %v932
        %v934 = vpop.f32.mrf.mxu0
        %v935 = vadd.f32 %v846, %v934
        %936 = vmatmul.bf16.gmra.mxu0 %v665
        %v937 = vpop.f32.mrf.mxu0
        %v938 = vadd.f32 %v849, %v937
        %v939 = vpop.f32.mrf.mxu0
        %v940 = vadd.f32 %v851, %v939
        %941 = vmatmul.bf16.gmra.mxu0 %v667
        %v942 = vpop.f32.mrf.mxu0
        %v943 = vadd.f32 %v854, %v942
        %v944 = vpop.f32.mrf.mxu0
        %v945 = vadd.f32 %v856, %v944
        %946 = vmatmul.bf16.gmra.mxu0 %v669
        %v947 = vpop.f32.mrf.mxu0
        %v948 = vadd.f32 %v859, %v947
        %v949 = vpop.f32.mrf.mxu0
        %v950 = vadd.f32 %v861, %v949
        %951 = vmatmul.bf16.gmra.mxu0 %v671
        %v952 = vpop.f32.mrf.mxu0
        %v953 = vadd.f32 %v864, %v952
        %v954 = vpop.f32.mrf.mxu0
        %v955 = vadd.f32 %v866, %v954
        %956 = vmatmul.bf16.gmra.mxu0 %v673
        %v957 = vpop.f32.mrf.mxu0
        %v958 = vadd.f32 %v869, %v957
        %v959 = vpop.f32.mrf.mxu0
        %v960 = vadd.f32 %v871, %v959
        %961 = vmatmul.bf16.gmra.mxu0 %v675
        %v962 = vpop.f32.mrf.mxu0
        %v963 = vadd.f32 %v874, %v962
        %v964 = vpop.f32.mrf.mxu0
        %v965 = vadd.f32 %v876, %v964
        %966 = vmatmul.bf16.gmra.mxu0 %v677
        %v967 = vpop.f32.mrf.mxu0
        %v968 = vadd.f32 %v879, %v967
        %v969 = vpop.f32.mrf.mxu0
        %v970 = vadd.f32 %v881, %v969
        %971 = vmatmul.bf16.gmra.mxu0 %v679
        %v972 = vpop.f32.mrf.mxu0
        %v973 = vadd.f32 %v884, %v972
        %v974 = vpop.f32.mrf.mxu0
        %v975 = vadd.f32 %v886, %v974
        %976 = vmatmul.bf16.gmra.mxu0 %v681
        %v977 = vpop.f32.mrf.mxu0
        %v978 = vadd.f32 %v889, %v977
        %v979 = vpop.f32.mrf.mxu0
        %v980 = vadd.f32 %v891, %v979
        %981 = vmatmul.bf16.gmra.mxu0 %v683
        %v982 = vpop.f32.mrf.mxu0
        %v983 = vadd.f32 %v894, %v982
        %v984 = vpop.f32.mrf.mxu0
        %v985 = vadd.f32 %v896, %v984
        %986 = vmatmul.bf16.gmra.mxu0 %v685
        %v987 = vpop.f32.mrf.mxu0
        %v988 = vadd.f32 %v899, %v987
        %v989 = vpop.f32.mrf.mxu0
        %v990 = vadd.f32 %v901, %v989
        %991 = vdwg.mxu0
        %v992 = vpack.c.bf16 %v915, %v913
        %v993 = vpack.c.bf16 %v920, %v918
        %v994 = vpack.c.bf16 %v925, %v923
        %v995 = vpack.c.bf16 %v930, %v928
        %v996 = vpack.c.bf16 %v935, %v933
        %v997 = vpack.c.bf16 %v940, %v938
        %v998 = vpack.c.bf16 %v945, %v943
        %v999 = vpack.c.bf16 %v950, %v948
        %v1000 = vpack.c.bf16 %v955, %v953
        %v1001 = vpack.c.bf16 %v960, %v958
        %v1002 = vpack.c.bf16 %v965, %v963
        %v1003 = vpack.c.bf16 %v970, %v968
        %v1004 = vpack.c.bf16 %v975, %v973
        %v1005 = vpack.c.bf16 %v980, %v978
        %v1006 = vpack.c.bf16 %v985, %v983
        %v1007 = vpack.c.bf16 %v990, %v988
        %v1008 = vld [vmem:[#allocation7] sm:$0xf]
        %v1009 = vld [vmem:[#allocation7 + $0x4] sm:$0xf]
        %v1010 = vld [vmem:[#allocation7 + $0x8] sm:$0xf]
        %v1011 = vld [vmem:[#allocation7 + $0xc] sm:$0xf]
        %v1012 = vld [vmem:[#allocation7 + $0x10] sm:$0xf]
        %v1013 = vld [vmem:[#allocation7 + $0x14] sm:$0xf]
        %v1014 = vld [vmem:[#allocation7 + $0x18] sm:$0xf]
        %v1015 = vld [vmem:[#allocation7 + $0x1c] sm:$0xf]
        %v1016 = vld [vmem:[#allocation7 + $0x20] sm:$0xf]
        %v1017 = vld [vmem:[#allocation7 + $0x24] sm:$0xf]
        %v1018 = vld [vmem:[#allocation7 + $0x28] sm:$0xf]
        %v1019 = vld [vmem:[#allocation7 + $0x2c] sm:$0xf]
        %v1020 = vld [vmem:[#allocation7 + $0x30] sm:$0xf]
        %v1021 = vld [vmem:[#allocation7 + $0x34] sm:$0xf]
        %v1022 = vld [vmem:[#allocation7 + $0x38] sm:$0xf]
        %v1023 = vld [vmem:[#allocation7 + $0x3c] sm:$0xf]
        %v1024 = vld [vmem:[%s5] sm:$0x1]
        %v1026 = vperm.slane %v1024, 0
        %v1044 = vunpack.c.l.b16 %v1008
        %v1045 = vunpack.c.l.b16 %v1009
        %v1046 = vunpack.c.l.b16 %v1010
        %v1047 = vunpack.c.l.b16 %v1011
        %v1048 = vunpack.c.l.b16 %v1012
        %v1049 = vunpack.c.l.b16 %v1013
        %v1050 = vunpack.c.l.b16 %v1014
        %v1051 = vunpack.c.l.b16 %v1015
        %v1052 = vunpack.c.l.b16 %v1016
        %v1053 = vunpack.c.l.b16 %v1017
        %v1054 = vunpack.c.l.b16 %v1018
        %v1055 = vunpack.c.l.b16 %v1019
        %v1056 = vunpack.c.l.b16 %v1020
        %v1057 = vunpack.c.l.b16 %v1021
        %v1058 = vunpack.c.l.b16 %v1022
        %v1059 = vunpack.c.l.b16 %v1023
        %v1060 = vpack.c.b16 %v1045, %v1044
        %v1061 = vpack.c.b16 %v1047, %v1046
        %v1062 = vpack.c.b16 %v1049, %v1048
        %v1063 = vpack.c.b16 %v1051, %v1050
        %v1064 = vpack.c.b16 %v1053, %v1052
        %v1065 = vpack.c.b16 %v1055, %v1054
        %v1066 = vpack.c.b16 %v1057, %v1056
        %v1067 = vpack.c.b16 %v1059, %v1058
        %1076 = vmatpush.bf16.msra.mxu0 %v1067
        %1077 = vmatpush.bf16.msra.mxu0 %v1066
        %1078 = vmatpush.bf16.msra.mxu0 %v1065
        %1079 = vmatpush.bf16.msra.mxu0 %v1064
        %1080 = vmatpush.bf16.msra.mxu0 %v1063
        %1081 = vmatpush.bf16.msra.mxu0 %v1062
        %1082 = vmatpush.bf16.msra.mxu0 %v1061
        %1083 = vmatpush.bf16.msra.mxu0 %v1060
        %1084 = vmatmul.bf16.gmra.mxu0 %v992
        %v1085 = vpop.f32.mrf.mxu0
        %v1086 = vadd.f32 %v1026, %v1085
        %v1087 = vpop.f32.mrf.mxu0
        %v1088 = vadd.f32 %v1026, %v1087
        %1089 = vmatmul.bf16.gmra.mxu0 %v993
        %v1090 = vpop.f32.mrf.mxu0
        %v1091 = vadd.f32 %v1026, %v1090
        %v1092 = vpop.f32.mrf.mxu0
        %v1093 = vadd.f32 %v1026, %v1092
        %1094 = vmatmul.bf16.gmra.mxu0 %v994
        %v1095 = vpop.f32.mrf.mxu0
        %v1096 = vadd.f32 %v1026, %v1095
        %v1097 = vpop.f32.mrf.mxu0
        %v1098 = vadd.f32 %v1026, %v1097
        %1099 = vmatmul.bf16.gmra.mxu0 %v995
        %v1100 = vpop.f32.mrf.mxu0
        %v1101 = vadd.f32 %v1026, %v1100
        %v1102 = vpop.f32.mrf.mxu0
        %v1103 = vadd.f32 %v1026, %v1102
        %1104 = vmatmul.bf16.gmra.mxu0 %v996
        %v1105 = vpop.f32.mrf.mxu0
        %v1106 = vadd.f32 %v1026, %v1105
        %v1107 = vpop.f32.mrf.mxu0
        %v1108 = vadd.f32 %v1026, %v1107
        %1109 = vmatmul.bf16.gmra.mxu0 %v997
        %v1110 = vpop.f32.mrf.mxu0
        %v1111 = vadd.f32 %v1026, %v1110
        %v1112 = vpop.f32.mrf.mxu0
        %v1113 = vadd.f32 %v1026, %v1112
        %1114 = vmatmul.bf16.gmra.mxu0 %v998
        %v1115 = vpop.f32.mrf.mxu0
        %v1116 = vadd.f32 %v1026, %v1115
        %v1117 = vpop.f32.mrf.mxu0
        %v1118 = vadd.f32 %v1026, %v1117
        %1119 = vmatmul.bf16.gmra.mxu0 %v999
        %v1120 = vpop.f32.mrf.mxu0
        %v1121 = vadd.f32 %v1026, %v1120
        %v1122 = vpop.f32.mrf.mxu0
        %v1123 = vadd.f32 %v1026, %v1122
        %1124 = vmatmul.bf16.gmra.mxu0 %v1000
        %v1125 = vpop.f32.mrf.mxu0
        %v1126 = vadd.f32 %v1026, %v1125
        %v1127 = vpop.f32.mrf.mxu0
        %v1128 = vadd.f32 %v1026, %v1127
        %1129 = vmatmul.bf16.gmra.mxu0 %v1001
        %v1130 = vpop.f32.mrf.mxu0
        %v1131 = vadd.f32 %v1026, %v1130
        %v1132 = vpop.f32.mrf.mxu0
        %v1133 = vadd.f32 %v1026, %v1132
        %1134 = vmatmul.bf16.gmra.mxu0 %v1002
        %v1135 = vpop.f32.mrf.mxu0
        %v1136 = vadd.f32 %v1026, %v1135
        %v1137 = vpop.f32.mrf.mxu0
        %v1138 = vadd.f32 %v1026, %v1137
        %1139 = vmatmul.bf16.gmra.mxu0 %v1003
        %v1140 = vpop.f32.mrf.mxu0
        %v1141 = vadd.f32 %v1026, %v1140
        %v1142 = vpop.f32.mrf.mxu0
        %v1143 = vadd.f32 %v1026, %v1142
        %1144 = vmatmul.bf16.gmra.mxu0 %v1004
        %v1145 = vpop.f32.mrf.mxu0
        %v1146 = vadd.f32 %v1026, %v1145
        %v1147 = vpop.f32.mrf.mxu0
        %v1148 = vadd.f32 %v1026, %v1147
        %1149 = vmatmul.bf16.gmra.mxu0 %v1005
        %v1150 = vpop.f32.mrf.mxu0
        %v1151 = vadd.f32 %v1026, %v1150
        %v1152 = vpop.f32.mrf.mxu0
        %v1153 = vadd.f32 %v1026, %v1152
        %1154 = vmatmul.bf16.gmra.mxu0 %v1006
        %v1155 = vpop.f32.mrf.mxu0
        %v1156 = vadd.f32 %v1026, %v1155
        %v1157 = vpop.f32.mrf.mxu0
        %v1158 = vadd.f32 %v1026, %v1157
        %1159 = vmatmul.bf16.gmra.mxu0 %v1007
        %v1160 = vpop.f32.mrf.mxu0
        %v1161 = vadd.f32 %v1026, %v1160
        %v1162 = vpop.f32.mrf.mxu0
        %v1163 = vadd.f32 %v1026, %v1162
        %1164 = vdwg.mxu0
        %v1165 = vmul.f32 %v1086, 0.01
        %v1166 = vmul.f32 %v1088, 0.01
        %v1167 = vmul.f32 %v1091, 0.01
        %v1168 = vmul.f32 %v1093, 0.01
        %v1169 = vmul.f32 %v1096, 0.01
        %v1170 = vmul.f32 %v1098, 0.01
        %v1171 = vmul.f32 %v1101, 0.01
        %v1172 = vmul.f32 %v1103, 0.01
        %v1173 = vmul.f32 %v1106, 0.01
        %v1174 = vmul.f32 %v1108, 0.01
        %v1175 = vmul.f32 %v1111, 0.01
        %v1176 = vmul.f32 %v1113, 0.01
        %v1177 = vmul.f32 %v1116, 0.01
        %v1178 = vmul.f32 %v1118, 0.01
        %v1179 = vmul.f32 %v1121, 0.01
        %v1180 = vmul.f32 %v1123, 0.01
        %v1181 = vmul.f32 %v1126, 0.01
        %v1182 = vmul.f32 %v1128, 0.01
        %v1183 = vmul.f32 %v1131, 0.01
        %v1184 = vmul.f32 %v1133, 0.01
        %v1185 = vmul.f32 %v1136, 0.01
        %v1186 = vmul.f32 %v1138, 0.01
        %v1187 = vmul.f32 %v1141, 0.01
        %v1188 = vmul.f32 %v1143, 0.01
        %v1189 = vmul.f32 %v1146, 0.01
        %v1190 = vmul.f32 %v1148, 0.01
        %v1191 = vmul.f32 %v1151, 0.01
        %v1192 = vmul.f32 %v1153, 0.01
        %v1193 = vmul.f32 %v1156, 0.01
        %v1194 = vmul.f32 %v1158, 0.01
        %v1195 = vmul.f32 %v1161, 0.01
        %v1196 = vmul.f32 %v1163, 0.01
        %v1197 = vmax.f32 %v1086, %v1165
        %v1198 = vmax.f32 %v1088, %v1166
        %v1199 = vmax.f32 %v1091, %v1167
        %v1200 = vmax.f32 %v1093, %v1168
        %v1201 = vmax.f32 %v1096, %v1169
        %v1202 = vmax.f32 %v1098, %v1170
        %v1203 = vmax.f32 %v1101, %v1171
        %v1204 = vmax.f32 %v1103, %v1172
        %v1205 = vmax.f32 %v1106, %v1173
        %v1206 = vmax.f32 %v1108, %v1174
        %v1207 = vmax.f32 %v1111, %v1175
        %v1208 = vmax.f32 %v1113, %v1176
        %v1209 = vmax.f32 %v1116, %v1177
        %v1210 = vmax.f32 %v1118, %v1178
        %v1211 = vmax.f32 %v1121, %v1179
        %v1212 = vmax.f32 %v1123, %v1180
        %v1213 = vmax.f32 %v1126, %v1181
        %v1214 = vmax.f32 %v1128, %v1182
        %v1215 = vmax.f32 %v1131, %v1183
        %v1216 = vmax.f32 %v1133, %v1184
        %v1217 = vmax.f32 %v1136, %v1185
        %v1218 = vmax.f32 %v1138, %v1186
        %v1219 = vmax.f32 %v1141, %v1187
        %v1220 = vmax.f32 %v1143, %v1188
        %v1221 = vmax.f32 %v1146, %v1189
        %v1222 = vmax.f32 %v1148, %v1190
        %v1223 = vmax.f32 %v1151, %v1191
        %v1224 = vmax.f32 %v1153, %v1192
        %v1225 = vmax.f32 %v1156, %v1193
        %v1226 = vmax.f32 %v1158, %v1194
        %v1227 = vmax.f32 %v1161, %v1195
        %v1228 = vmax.f32 %v1163, %v1196
        %v1229 = vpack.c.bf16 %v1198, %v1197
        %v1230 = vpack.c.bf16 %v1200, %v1199
        %v1231 = vpack.c.bf16 %v1202, %v1201
        %v1232 = vpack.c.bf16 %v1204, %v1203
        %v1233 = vpack.c.bf16 %v1206, %v1205
        %v1234 = vpack.c.bf16 %v1208, %v1207
        %v1235 = vpack.c.bf16 %v1210, %v1209
        %v1236 = vpack.c.bf16 %v1212, %v1211
        %v1237 = vpack.c.bf16 %v1214, %v1213
        %v1238 = vpack.c.bf16 %v1216, %v1215
        %v1239 = vpack.c.bf16 %v1218, %v1217
        %v1240 = vpack.c.bf16 %v1220, %v1219
        %v1241 = vpack.c.bf16 %v1222, %v1221
        %v1242 = vpack.c.bf16 %v1224, %v1223
        %v1243 = vpack.c.bf16 %v1226, %v1225
        %v1244 = vpack.c.bf16 %v1228, %v1227
        %1245 = vmatpush.bf16.msra.mxu0 %v1236
        %1246 = vmatpush.bf16.msra.mxu0 %v1235
        %1247 = vmatpush.bf16.msra.mxu0 %v1234
        %1248 = vmatpush.bf16.msra.mxu0 %v1233
        %1249 = vmatpush.bf16.msra.mxu0 %v1232
        %1250 = vmatpush.bf16.msra.mxu0 %v1231
        %1251 = vmatpush.bf16.msra.mxu0 %v1230
        %1252 = vmatpush.bf16.msra.mxu0 %v1229
        %1253 = vmatmul.bf16.gmra.mxu0 %v654
        %v1254 = vpop.f32.mrf.mxu0
        %v1255 = vadd.f32 0.0, %v1254
        %v1256 = vpop.f32.mrf.mxu0
        %v1257 = vadd.f32 0.0, %v1256
        %1258 = vmatmul.bf16.gmra.mxu0 %v656
        %v1259 = vpop.f32.mrf.mxu0
        %v1260 = vadd.f32 0.0, %v1259
        %v1261 = vpop.f32.mrf.mxu0
        %v1262 = vadd.f32 0.0, %v1261
        %1263 = vmatmul.bf16.gmra.mxu0 %v658
        %v1264 = vpop.f32.mrf.mxu0
        %v1265 = vadd.f32 0.0, %v1264
        %v1266 = vpop.f32.mrf.mxu0
        %v1267 = vadd.f32 0.0, %v1266
        %1268 = vmatmul.bf16.gmra.mxu0 %v660
        %v1269 = vpop.f32.mrf.mxu0
        %v1270 = vadd.f32 0.0, %v1269
        %v1271 = vpop.f32.mrf.mxu0
        %v1272 = vadd.f32 0.0, %v1271
        %1273 = vmatmul.bf16.gmra.mxu0 %v662
        %v1274 = vpop.f32.mrf.mxu0
        %v1275 = vadd.f32 0.0, %v1274
        %v1276 = vpop.f32.mrf.mxu0
        %v1277 = vadd.f32 0.0, %v1276
        %1278 = vmatmul.bf16.gmra.mxu0 %v664
        %v1279 = vpop.f32.mrf.mxu0
        %v1280 = vadd.f32 0.0, %v1279
        %v1281 = vpop.f32.mrf.mxu0
        %v1282 = vadd.f32 0.0, %v1281
        %1283 = vmatmul.bf16.gmra.mxu0 %v666
        %v1284 = vpop.f32.mrf.mxu0
        %v1285 = vadd.f32 0.0, %v1284
        %v1286 = vpop.f32.mrf.mxu0
        %v1287 = vadd.f32 0.0, %v1286
        %1288 = vmatmul.bf16.gmra.mxu0 %v668
        %v1289 = vpop.f32.mrf.mxu0
        %v1290 = vadd.f32 0.0, %v1289
        %v1291 = vpop.f32.mrf.mxu0
        %v1292 = vadd.f32 0.0, %v1291
        %1293 = vmatmul.bf16.gmra.mxu0 %v670
        %v1294 = vpop.f32.mrf.mxu0
        %v1295 = vadd.f32 0.0, %v1294
        %v1296 = vpop.f32.mrf.mxu0
        %v1297 = vadd.f32 0.0, %v1296
        %1298 = vmatmul.bf16.gmra.mxu0 %v672
        %v1299 = vpop.f32.mrf.mxu0
        %v1300 = vadd.f32 0.0, %v1299
        %v1301 = vpop.f32.mrf.mxu0
        %v1302 = vadd.f32 0.0, %v1301
        %1303 = vmatmul.bf16.gmra.mxu0 %v674
        %v1304 = vpop.f32.mrf.mxu0
        %v1305 = vadd.f32 0.0, %v1304
        %v1306 = vpop.f32.mrf.mxu0
        %v1307 = vadd.f32 0.0, %v1306
        %1308 = vmatmul.bf16.gmra.mxu0 %v676
        %v1309 = vpop.f32.mrf.mxu0
        %v1310 = vadd.f32 0.0, %v1309
        %v1311 = vpop.f32.mrf.mxu0
        %v1312 = vadd.f32 0.0, %v1311
        %1313 = vmatmul.bf16.gmra.mxu0 %v678
        %v1314 = vpop.f32.mrf.mxu0
        %v1315 = vadd.f32 0.0, %v1314
        %v1316 = vpop.f32.mrf.mxu0
        %v1317 = vadd.f32 0.0, %v1316
        %1318 = vmatmul.bf16.gmra.mxu0 %v680
        %v1319 = vpop.f32.mrf.mxu0
        %v1320 = vadd.f32 0.0, %v1319
        %v1321 = vpop.f32.mrf.mxu0
        %v1322 = vadd.f32 0.0, %v1321
        %1323 = vmatmul.bf16.gmra.mxu0 %v682
        %v1324 = vpop.f32.mrf.mxu0
        %v1325 = vadd.f32 0.0, %v1324
        %v1326 = vpop.f32.mrf.mxu0
        %v1327 = vadd.f32 0.0, %v1326
        %1328 = vmatmul.bf16.gmra.mxu0 %v684
        %v1329 = vpop.f32.mrf.mxu0
        %v1330 = vadd.f32 0.0, %v1329
        %v1331 = vpop.f32.mrf.mxu0
        %v1332 = vadd.f32 0.0, %v1331
        %1333 = vdwg.mxu0
        %1334 = vmatpush.bf16.msra.mxu0 %v1244
        %1335 = vmatpush.bf16.msra.mxu0 %v1243
        %1336 = vmatpush.bf16.msra.mxu0 %v1242
        %1337 = vmatpush.bf16.msra.mxu0 %v1241
        %1338 = vmatpush.bf16.msra.mxu0 %v1240
        %1339 = vmatpush.bf16.msra.mxu0 %v1239
        %1340 = vmatpush.bf16.msra.mxu0 %v1238
        %1341 = vmatpush.bf16.msra.mxu0 %v1237
        %1342 = vmatmul.bf16.gmra.mxu0 %v655
        %v1343 = vpop.f32.mrf.mxu0
        %v1344 = vadd.f32 %v1255, %v1343
        %v1345 = vpop.f32.mrf.mxu0
        %v1346 = vadd.f32 %v1257, %v1345
        %1347 = vmatmul.bf16.gmra.mxu0 %v657
        %v1348 = vpop.f32.mrf.mxu0
        %v1349 = vadd.f32 %v1260, %v1348
        %v1350 = vpop.f32.mrf.mxu0
        %v1351 = vadd.f32 %v1262, %v1350
        %1352 = vmatmul.bf16.gmra.mxu0 %v659
        %v1353 = vpop.f32.mrf.mxu0
        %v1354 = vadd.f32 %v1265, %v1353
        %v1355 = vpop.f32.mrf.mxu0
        %v1356 = vadd.f32 %v1267, %v1355
        %1357 = vmatmul.bf16.gmra.mxu0 %v661
        %v1358 = vpop.f32.mrf.mxu0
        %v1359 = vadd.f32 %v1270, %v1358
        %v1360 = vpop.f32.mrf.mxu0
        %v1361 = vadd.f32 %v1272, %v1360
        %1362 = vmatmul.bf16.gmra.mxu0 %v663
        %v1363 = vpop.f32.mrf.mxu0
        %v1364 = vadd.f32 %v1275, %v1363
        %v1365 = vpop.f32.mrf.mxu0
        %v1366 = vadd.f32 %v1277, %v1365
        %1367 = vmatmul.bf16.gmra.mxu0 %v665
        %v1368 = vpop.f32.mrf.mxu0
        %v1369 = vadd.f32 %v1280, %v1368
        %v1370 = vpop.f32.mrf.mxu0
        %v1371 = vadd.f32 %v1282, %v1370
        %1372 = vmatmul.bf16.gmra.mxu0 %v667
        %v1373 = vpop.f32.mrf.mxu0
        %v1374 = vadd.f32 %v1285, %v1373
        %v1375 = vpop.f32.mrf.mxu0
        %v1376 = vadd.f32 %v1287, %v1375
        %1377 = vmatmul.bf16.gmra.mxu0 %v669
        %v1378 = vpop.f32.mrf.mxu0
        %v1379 = vadd.f32 %v1290, %v1378
        %v1380 = vpop.f32.mrf.mxu0
        %v1381 = vadd.f32 %v1292, %v1380
        %1382 = vmatmul.bf16.gmra.mxu0 %v671
        %v1383 = vpop.f32.mrf.mxu0
        %v1384 = vadd.f32 %v1295, %v1383
        %v1385 = vpop.f32.mrf.mxu0
        %v1386 = vadd.f32 %v1297, %v1385
        %1387 = vmatmul.bf16.gmra.mxu0 %v673
        %v1388 = vpop.f32.mrf.mxu0
        %v1389 = vadd.f32 %v1300, %v1388
        %v1390 = vpop.f32.mrf.mxu0
        %v1391 = vadd.f32 %v1302, %v1390
        %1392 = vmatmul.bf16.gmra.mxu0 %v675
        %v1393 = vpop.f32.mrf.mxu0
        %v1394 = vadd.f32 %v1305, %v1393
        %v1395 = vpop.f32.mrf.mxu0
        %v1396 = vadd.f32 %v1307, %v1395
        %1397 = vmatmul.bf16.gmra.mxu0 %v677
        %v1398 = vpop.f32.mrf.mxu0
        %v1399 = vadd.f32 %v1310, %v1398
        %v1400 = vpop.f32.mrf.mxu0
        %v1401 = vadd.f32 %v1312, %v1400
        %1402 = vmatmul.bf16.gmra.mxu0 %v679
        %v1403 = vpop.f32.mrf.mxu0
        %v1404 = vadd.f32 %v1315, %v1403
        %v1405 = vpop.f32.mrf.mxu0
        %v1406 = vadd.f32 %v1317, %v1405
        %1407 = vmatmul.bf16.gmra.mxu0 %v681
        %v1408 = vpop.f32.mrf.mxu0
        %v1409 = vadd.f32 %v1320, %v1408
        %v1410 = vpop.f32.mrf.mxu0
        %v1411 = vadd.f32 %v1322, %v1410
        %1412 = vmatmul.bf16.gmra.mxu0 %v683
        %v1413 = vpop.f32.mrf.mxu0
        %v1414 = vadd.f32 %v1325, %v1413
        %v1415 = vpop.f32.mrf.mxu0
        %v1416 = vadd.f32 %v1327, %v1415
        %1417 = vmatmul.bf16.gmra.mxu0 %v685
        %v1418 = vpop.f32.mrf.mxu0
        %v1419 = vadd.f32 %v1330, %v1418
        %v1420 = vpop.f32.mrf.mxu0
        %v1421 = vadd.f32 %v1332, %v1420
        %1422 = vdwg.mxu0
        %v1423 = vpack.c.bf16 %v1346, %v1344
        %v1424 = vpack.c.bf16 %v1351, %v1349
        %v1425 = vpack.c.bf16 %v1356, %v1354
        %v1426 = vpack.c.bf16 %v1361, %v1359
        %v1427 = vpack.c.bf16 %v1366, %v1364
        %v1428 = vpack.c.bf16 %v1371, %v1369
        %v1429 = vpack.c.bf16 %v1376, %v1374
        %v1430 = vpack.c.bf16 %v1381, %v1379
        %v1431 = vpack.c.bf16 %v1386, %v1384
        %v1432 = vpack.c.bf16 %v1391, %v1389
        %v1433 = vpack.c.bf16 %v1396, %v1394
        %v1434 = vpack.c.bf16 %v1401, %v1399
        %v1435 = vpack.c.bf16 %v1406, %v1404
        %v1436 = vpack.c.bf16 %v1411, %v1409
        %v1437 = vpack.c.bf16 %v1416, %v1414
        %v1438 = vpack.c.bf16 %v1421, %v1419
        %v1439 = vld [vmem:[#allocation8] sm:$0xf]
        %v1440 = vld [vmem:[#allocation8 + $0x4] sm:$0xf]
        %v1441 = vld [vmem:[#allocation8 + $0x8] sm:$0xf]
        %v1442 = vld [vmem:[#allocation8 + $0xc] sm:$0xf]
        %v1443 = vld [vmem:[#allocation8 + $0x10] sm:$0xf]
        %v1444 = vld [vmem:[#allocation8 + $0x14] sm:$0xf]
        %v1445 = vld [vmem:[#allocation8 + $0x18] sm:$0xf]
        %v1446 = vld [vmem:[#allocation8 + $0x1c] sm:$0xf]
        %v1447 = vld [vmem:[#allocation8 + $0x20] sm:$0xf]
        %v1448 = vld [vmem:[#allocation8 + $0x24] sm:$0xf]
        %v1449 = vld [vmem:[#allocation8 + $0x28] sm:$0xf]
        %v1450 = vld [vmem:[#allocation8 + $0x2c] sm:$0xf]
        %v1451 = vld [vmem:[#allocation8 + $0x30] sm:$0xf]
        %v1452 = vld [vmem:[#allocation8 + $0x34] sm:$0xf]
        %v1453 = vld [vmem:[#allocation8 + $0x38] sm:$0xf]
        %v1454 = vld [vmem:[#allocation8 + $0x3c] sm:$0xf]
        %v1455 = vld [vmem:[%s7] sm:$0x1]
        %v1457 = vperm.slane %v1455, 0
        %v1475 = vunpack.c.l.b16 %v1439
        %v1476 = vunpack.c.l.b16 %v1440
        %v1477 = vunpack.c.l.b16 %v1441
        %v1478 = vunpack.c.l.b16 %v1442
        %v1479 = vunpack.c.l.b16 %v1443
        %v1480 = vunpack.c.l.b16 %v1444
        %v1481 = vunpack.c.l.b16 %v1445
        %v1482 = vunpack.c.l.b16 %v1446
        %v1483 = vunpack.c.l.b16 %v1447
        %v1484 = vunpack.c.l.b16 %v1448
        %v1485 = vunpack.c.l.b16 %v1449
        %v1486 = vunpack.c.l.b16 %v1450
        %v1487 = vunpack.c.l.b16 %v1451
        %v1488 = vunpack.c.l.b16 %v1452
        %v1489 = vunpack.c.l.b16 %v1453
        %v1490 = vunpack.c.l.b16 %v1454
        %v1491 = vpack.c.b16 %v1476, %v1475
        %v1492 = vpack.c.b16 %v1478, %v1477
        %v1493 = vpack.c.b16 %v1480, %v1479
        %v1494 = vpack.c.b16 %v1482, %v1481
        %v1495 = vpack.c.b16 %v1484, %v1483
        %v1496 = vpack.c.b16 %v1486, %v1485
        %v1497 = vpack.c.b16 %v1488, %v1487
        %v1498 = vpack.c.b16 %v1490, %v1489
        %1507 = vmatpush.bf16.msra.mxu0 %v1498
        %1508 = vmatpush.bf16.msra.mxu0 %v1497
        %1509 = vmatpush.bf16.msra.mxu0 %v1496
        %1510 = vmatpush.bf16.msra.mxu0 %v1495
        %1511 = vmatpush.bf16.msra.mxu0 %v1494
        %1512 = vmatpush.bf16.msra.mxu0 %v1493
        %1513 = vmatpush.bf16.msra.mxu0 %v1492
        %1514 = vmatpush.bf16.msra.mxu0 %v1491
        %1515 = vmatmul.bf16.gmra.mxu0 %v1423
        %v1516 = vpop.f32.mrf.mxu0
        %v1517 = vadd.f32 %v1457, %v1516
        %v1518 = vpop.f32.mrf.mxu0
        %v1519 = vadd.f32 %v1457, %v1518
        %1520 = vmatmul.bf16.gmra.mxu0 %v1424
        %v1521 = vpop.f32.mrf.mxu0
        %v1522 = vadd.f32 %v1457, %v1521
        %v1523 = vpop.f32.mrf.mxu0
        %v1524 = vadd.f32 %v1457, %v1523
        %1525 = vmatmul.bf16.gmra.mxu0 %v1425
        %v1526 = vpop.f32.mrf.mxu0
        %v1527 = vadd.f32 %v1457, %v1526
        %v1528 = vpop.f32.mrf.mxu0
        %v1529 = vadd.f32 %v1457, %v1528
        %1530 = vmatmul.bf16.gmra.mxu0 %v1426
        %v1531 = vpop.f32.mrf.mxu0
        %v1532 = vadd.f32 %v1457, %v1531
        %v1533 = vpop.f32.mrf.mxu0
        %v1534 = vadd.f32 %v1457, %v1533
        %1535 = vmatmul.bf16.gmra.mxu0 %v1427
        %v1536 = vpop.f32.mrf.mxu0
        %v1537 = vadd.f32 %v1457, %v1536
        %v1538 = vpop.f32.mrf.mxu0
        %v1539 = vadd.f32 %v1457, %v1538
        %1540 = vmatmul.bf16.gmra.mxu0 %v1428
        %v1541 = vpop.f32.mrf.mxu0
        %v1542 = vadd.f32 %v1457, %v1541
        %v1543 = vpop.f32.mrf.mxu0
        %v1544 = vadd.f32 %v1457, %v1543
        %1545 = vmatmul.bf16.gmra.mxu0 %v1429
        %v1546 = vpop.f32.mrf.mxu0
        %v1547 = vadd.f32 %v1457, %v1546
        %v1548 = vpop.f32.mrf.mxu0
        %v1549 = vadd.f32 %v1457, %v1548
        %1550 = vmatmul.bf16.gmra.mxu0 %v1430
        %v1551 = vpop.f32.mrf.mxu0
        %v1552 = vadd.f32 %v1457, %v1551
        %v1553 = vpop.f32.mrf.mxu0
        %v1554 = vadd.f32 %v1457, %v1553
        %1555 = vmatmul.bf16.gmra.mxu0 %v1431
        %v1556 = vpop.f32.mrf.mxu0
        %v1557 = vadd.f32 %v1457, %v1556
        %v1558 = vpop.f32.mrf.mxu0
        %v1559 = vadd.f32 %v1457, %v1558
        %1560 = vmatmul.bf16.gmra.mxu0 %v1432
        %v1561 = vpop.f32.mrf.mxu0
        %v1562 = vadd.f32 %v1457, %v1561
        %v1563 = vpop.f32.mrf.mxu0
        %v1564 = vadd.f32 %v1457, %v1563
        %1565 = vmatmul.bf16.gmra.mxu0 %v1433
        %v1566 = vpop.f32.mrf.mxu0
        %v1567 = vadd.f32 %v1457, %v1566
        %v1568 = vpop.f32.mrf.mxu0
        %v1569 = vadd.f32 %v1457, %v1568
        %1570 = vmatmul.bf16.gmra.mxu0 %v1434
        %v1571 = vpop.f32.mrf.mxu0
        %v1572 = vadd.f32 %v1457, %v1571
        %v1573 = vpop.f32.mrf.mxu0
        %v1574 = vadd.f32 %v1457, %v1573
        %1575 = vmatmul.bf16.gmra.mxu0 %v1435
        %v1576 = vpop.f32.mrf.mxu0
        %v1577 = vadd.f32 %v1457, %v1576
        %v1578 = vpop.f32.mrf.mxu0
        %v1579 = vadd.f32 %v1457, %v1578
        %1580 = vmatmul.bf16.gmra.mxu0 %v1436
        %v1581 = vpop.f32.mrf.mxu0
        %v1582 = vadd.f32 %v1457, %v1581
        %v1583 = vpop.f32.mrf.mxu0
        %v1584 = vadd.f32 %v1457, %v1583
        %1585 = vmatmul.bf16.gmra.mxu0 %v1437
        %v1586 = vpop.f32.mrf.mxu0
        %v1587 = vadd.f32 %v1457, %v1586
        %v1588 = vpop.f32.mrf.mxu0
        %v1589 = vadd.f32 %v1457, %v1588
        %1590 = vmatmul.bf16.gmra.mxu0 %v1438
        %v1591 = vpop.f32.mrf.mxu0
        %v1592 = vadd.f32 %v1457, %v1591
        %v1593 = vpop.f32.mrf.mxu0
        %v1594 = vadd.f32 %v1457, %v1593
        %1595 = vdwg.mxu0
        %v1596 = vmul.f32 %v1517, 0.01
        %v1597 = vmul.f32 %v1519, 0.01
        %v1598 = vmul.f32 %v1522, 0.01
        %v1599 = vmul.f32 %v1524, 0.01
        %v1600 = vmul.f32 %v1527, 0.01
        %v1601 = vmul.f32 %v1529, 0.01
        %v1602 = vmul.f32 %v1532, 0.01
        %v1603 = vmul.f32 %v1534, 0.01
        %v1604 = vmul.f32 %v1537, 0.01
        %v1605 = vmul.f32 %v1539, 0.01
        %v1606 = vmul.f32 %v1542, 0.01
        %v1607 = vmul.f32 %v1544, 0.01
        %v1608 = vmul.f32 %v1547, 0.01
        %v1609 = vmul.f32 %v1549, 0.01
        %v1610 = vmul.f32 %v1552, 0.01
        %v1611 = vmul.f32 %v1554, 0.01
        %v1612 = vmul.f32 %v1557, 0.01
        %v1613 = vmul.f32 %v1559, 0.01
        %v1614 = vmul.f32 %v1562, 0.01
        %v1615 = vmul.f32 %v1564, 0.01
        %v1616 = vmul.f32 %v1567, 0.01
        %v1617 = vmul.f32 %v1569, 0.01
        %v1618 = vmul.f32 %v1572, 0.01
        %v1619 = vmul.f32 %v1574, 0.01
        %v1620 = vmul.f32 %v1577, 0.01
        %v1621 = vmul.f32 %v1579, 0.01
        %v1622 = vmul.f32 %v1582, 0.01
        %v1623 = vmul.f32 %v1584, 0.01
        %v1624 = vmul.f32 %v1587, 0.01
        %v1625 = vmul.f32 %v1589, 0.01
        %v1626 = vmul.f32 %v1592, 0.01
        %v1627 = vmul.f32 %v1594, 0.01
        %v1628 = vmax.f32 %v1517, %v1596
        %v1629 = vmax.f32 %v1519, %v1597
        %v1630 = vmax.f32 %v1522, %v1598
        %v1631 = vmax.f32 %v1524, %v1599
        %v1632 = vmax.f32 %v1527, %v1600
        %v1633 = vmax.f32 %v1529, %v1601
        %v1634 = vmax.f32 %v1532, %v1602
        %v1635 = vmax.f32 %v1534, %v1603
        %v1636 = vmax.f32 %v1537, %v1604
        %v1637 = vmax.f32 %v1539, %v1605
        %v1638 = vmax.f32 %v1542, %v1606
        %v1639 = vmax.f32 %v1544, %v1607
        %v1640 = vmax.f32 %v1547, %v1608
        %v1641 = vmax.f32 %v1549, %v1609
        %v1642 = vmax.f32 %v1552, %v1610
        %v1643 = vmax.f32 %v1554, %v1611
        %v1644 = vmax.f32 %v1557, %v1612
        %v1645 = vmax.f32 %v1559, %v1613
        %v1646 = vmax.f32 %v1562, %v1614
        %v1647 = vmax.f32 %v1564, %v1615
        %v1648 = vmax.f32 %v1567, %v1616
        %v1649 = vmax.f32 %v1569, %v1617
        %v1650 = vmax.f32 %v1572, %v1618
        %v1651 = vmax.f32 %v1574, %v1619
        %v1652 = vmax.f32 %v1577, %v1620
        %v1653 = vmax.f32 %v1579, %v1621
        %v1654 = vmax.f32 %v1582, %v1622
        %v1655 = vmax.f32 %v1584, %v1623
        %v1656 = vmax.f32 %v1587, %v1624
        %v1657 = vmax.f32 %v1589, %v1625
        %v1658 = vmax.f32 %v1592, %v1626
        %v1659 = vmax.f32 %v1594, %v1627
        %v1660 = vpack.c.bf16 %v1629, %v1628
        %v1661 = vpack.c.bf16 %v1631, %v1630
        %v1662 = vpack.c.bf16 %v1633, %v1632
        %v1663 = vpack.c.bf16 %v1635, %v1634
        %v1664 = vpack.c.bf16 %v1637, %v1636
        %v1665 = vpack.c.bf16 %v1639, %v1638
        %v1666 = vpack.c.bf16 %v1641, %v1640
        %v1667 = vpack.c.bf16 %v1643, %v1642
        %v1668 = vpack.c.bf16 %v1645, %v1644
        %v1669 = vpack.c.bf16 %v1647, %v1646
        %v1670 = vpack.c.bf16 %v1649, %v1648
        %v1671 = vpack.c.bf16 %v1651, %v1650
        %v1672 = vpack.c.bf16 %v1653, %v1652
        %v1673 = vpack.c.bf16 %v1655, %v1654
        %v1674 = vpack.c.bf16 %v1657, %v1656
        %v1675 = vpack.c.bf16 %v1659, %v1658
        %v1676 = vld [vmem:[#allocation10] sm:$0xf]
        %v1677 = vld [vmem:[#allocation10 + $0x4] sm:$0xf]
        %v1678 = vld [vmem:[#allocation10 + $0x8] sm:$0xf]
        %v1679 = vld [vmem:[#allocation10 + $0xc] sm:$0xf]
        %v1680 = vld [vmem:[#allocation10 + $0x10] sm:$0xf]
        %v1681 = vld [vmem:[#allocation10 + $0x14] sm:$0xf]
        %v1682 = vld [vmem:[#allocation10 + $0x18] sm:$0xf]
        %v1683 = vld [vmem:[#allocation10 + $0x1c] sm:$0xf]
        %v1684 = vld [vmem:[#allocation10 + $0x20] sm:$0xf]
        %v1685 = vld [vmem:[#allocation10 + $0x24] sm:$0xf]
        %v1686 = vld [vmem:[#allocation10 + $0x28] sm:$0xf]
        %v1687 = vld [vmem:[#allocation10 + $0x2c] sm:$0xf]
        %v1688 = vld [vmem:[#allocation10 + $0x30] sm:$0xf]
        %v1689 = vld [vmem:[#allocation10 + $0x34] sm:$0xf]
        %v1690 = vld [vmem:[#allocation10 + $0x38] sm:$0xf]
        %v1691 = vld [vmem:[#allocation10 + $0x3c] sm:$0xf]
        %v1692 = vld [vmem:[%s9] sm:$0x1]
        %v1694 = vperm.slane %v1692, 0
        %v1712 = vunpack.c.l.b16 %v1676
        %v1713 = vunpack.c.l.b16 %v1677
        %v1714 = vunpack.c.l.b16 %v1678
        %v1715 = vunpack.c.l.b16 %v1679
        %v1716 = vunpack.c.l.b16 %v1680
        %v1717 = vunpack.c.l.b16 %v1681
        %v1718 = vunpack.c.l.b16 %v1682
        %v1719 = vunpack.c.l.b16 %v1683
        %v1720 = vunpack.c.l.b16 %v1684
        %v1721 = vunpack.c.l.b16 %v1685
        %v1722 = vunpack.c.l.b16 %v1686
        %v1723 = vunpack.c.l.b16 %v1687
        %v1724 = vunpack.c.l.b16 %v1688
        %v1725 = vunpack.c.l.b16 %v1689
        %v1726 = vunpack.c.l.b16 %v1690
        %v1727 = vunpack.c.l.b16 %v1691
        %v1728 = vpack.c.b16 %v1713, %v1712
        %v1729 = vpack.c.b16 %v1715, %v1714
        %v1730 = vpack.c.b16 %v1717, %v1716
        %v1731 = vpack.c.b16 %v1719, %v1718
        %v1732 = vpack.c.b16 %v1721, %v1720
        %v1733 = vpack.c.b16 %v1723, %v1722
        %v1734 = vpack.c.b16 %v1725, %v1724
        %v1735 = vpack.c.b16 %v1727, %v1726
        %1744 = vmatpush.bf16.msra.mxu0 %v1735
        %1745 = vmatpush.bf16.msra.mxu0 %v1734
        %1746 = vmatpush.bf16.msra.mxu0 %v1733
        %1747 = vmatpush.bf16.msra.mxu0 %v1732
        %1748 = vmatpush.bf16.msra.mxu0 %v1731
        %1749 = vmatpush.bf16.msra.mxu0 %v1730
        %1750 = vmatpush.bf16.msra.mxu0 %v1729
        %1751 = vmatpush.bf16.msra.mxu0 %v1728
        %1752 = vmatmul.bf16.gmra.mxu0 %v1660
        %v1753 = vpop.f32.mrf.mxu0
        %v1754 = vadd.f32 %v1694, %v1753
        %v1755 = vpop.f32.mrf.mxu0
        %v1756 = vadd.f32 %v1694, %v1755
        %1757 = vmatmul.bf16.gmra.mxu0 %v1661
        %v1758 = vpop.f32.mrf.mxu0
        %v1759 = vadd.f32 %v1694, %v1758
        %v1760 = vpop.f32.mrf.mxu0
        %v1761 = vadd.f32 %v1694, %v1760
        %1762 = vmatmul.bf16.gmra.mxu0 %v1662
        %v1763 = vpop.f32.mrf.mxu0
        %v1764 = vadd.f32 %v1694, %v1763
        %v1765 = vpop.f32.mrf.mxu0
        %v1766 = vadd.f32 %v1694, %v1765
        %1767 = vmatmul.bf16.gmra.mxu0 %v1663
        %v1768 = vpop.f32.mrf.mxu0
        %v1769 = vadd.f32 %v1694, %v1768
        %v1770 = vpop.f32.mrf.mxu0
        %v1771 = vadd.f32 %v1694, %v1770
        %1772 = vmatmul.bf16.gmra.mxu0 %v1664
        %v1773 = vpop.f32.mrf.mxu0
        %v1774 = vadd.f32 %v1694, %v1773
        %v1775 = vpop.f32.mrf.mxu0
        %v1776 = vadd.f32 %v1694, %v1775
        %1777 = vmatmul.bf16.gmra.mxu0 %v1665
        %v1778 = vpop.f32.mrf.mxu0
        %v1779 = vadd.f32 %v1694, %v1778
        %v1780 = vpop.f32.mrf.mxu0
        %v1781 = vadd.f32 %v1694, %v1780
        %1782 = vmatmul.bf16.gmra.mxu0 %v1666
        %v1783 = vpop.f32.mrf.mxu0
        %v1784 = vadd.f32 %v1694, %v1783
        %v1785 = vpop.f32.mrf.mxu0
        %v1786 = vadd.f32 %v1694, %v1785
        %1787 = vmatmul.bf16.gmra.mxu0 %v1667
        %v1788 = vpop.f32.mrf.mxu0
        %v1789 = vadd.f32 %v1694, %v1788
        %v1790 = vpop.f32.mrf.mxu0
        %v1791 = vadd.f32 %v1694, %v1790
        %1792 = vmatmul.bf16.gmra.mxu0 %v1668
        %v1793 = vpop.f32.mrf.mxu0
        %v1794 = vadd.f32 %v1694, %v1793
        %v1795 = vpop.f32.mrf.mxu0
        %v1796 = vadd.f32 %v1694, %v1795
        %1797 = vmatmul.bf16.gmra.mxu0 %v1669
        %v1798 = vpop.f32.mrf.mxu0
        %v1799 = vadd.f32 %v1694, %v1798
        %v1800 = vpop.f32.mrf.mxu0
        %v1801 = vadd.f32 %v1694, %v1800
        %1802 = vmatmul.bf16.gmra.mxu0 %v1670
        %v1803 = vpop.f32.mrf.mxu0
        %v1804 = vadd.f32 %v1694, %v1803
        %v1805 = vpop.f32.mrf.mxu0
        %v1806 = vadd.f32 %v1694, %v1805
        %1807 = vmatmul.bf16.gmra.mxu0 %v1671
        %v1808 = vpop.f32.mrf.mxu0
        %v1809 = vadd.f32 %v1694, %v1808
        %v1810 = vpop.f32.mrf.mxu0
        %v1811 = vadd.f32 %v1694, %v1810
        %1812 = vmatmul.bf16.gmra.mxu0 %v1672
        %v1813 = vpop.f32.mrf.mxu0
        %v1814 = vadd.f32 %v1694, %v1813
        %v1815 = vpop.f32.mrf.mxu0
        %v1816 = vadd.f32 %v1694, %v1815
        %1817 = vmatmul.bf16.gmra.mxu0 %v1673
        %v1818 = vpop.f32.mrf.mxu0
        %v1819 = vadd.f32 %v1694, %v1818
        %v1820 = vpop.f32.mrf.mxu0
        %v1821 = vadd.f32 %v1694, %v1820
        %1822 = vmatmul.bf16.gmra.mxu0 %v1674
        %v1823 = vpop.f32.mrf.mxu0
        %v1824 = vadd.f32 %v1694, %v1823
        %v1825 = vpop.f32.mrf.mxu0
        %v1826 = vadd.f32 %v1694, %v1825
        %1827 = vmatmul.bf16.gmra.mxu0 %v1675
        %v1828 = vpop.f32.mrf.mxu0
        %v1829 = vadd.f32 %v1694, %v1828
        %v1830 = vpop.f32.mrf.mxu0
        %v1831 = vadd.f32 %v1694, %v1830
        %1832 = vdwg.mxu0
        %v1833 = vmul.f32 %v1754, 0.01
        %v1834 = vmul.f32 %v1756, 0.01
        %v1835 = vmul.f32 %v1759, 0.01
        %v1836 = vmul.f32 %v1761, 0.01
        %v1837 = vmul.f32 %v1764, 0.01
        %v1838 = vmul.f32 %v1766, 0.01
        %v1839 = vmul.f32 %v1769, 0.01
        %v1840 = vmul.f32 %v1771, 0.01
        %v1841 = vmul.f32 %v1774, 0.01
        %v1842 = vmul.f32 %v1776, 0.01
        %v1843 = vmul.f32 %v1779, 0.01
        %v1844 = vmul.f32 %v1781, 0.01
        %v1845 = vmul.f32 %v1784, 0.01
        %v1846 = vmul.f32 %v1786, 0.01
        %v1847 = vmul.f32 %v1789, 0.01
        %v1848 = vmul.f32 %v1791, 0.01
        %v1849 = vmul.f32 %v1794, 0.01
        %v1850 = vmul.f32 %v1796, 0.01
        %v1851 = vmul.f32 %v1799, 0.01
        %v1852 = vmul.f32 %v1801, 0.01
        %v1853 = vmul.f32 %v1804, 0.01
        %v1854 = vmul.f32 %v1806, 0.01
        %v1855 = vmul.f32 %v1809, 0.01
        %v1856 = vmul.f32 %v1811, 0.01
        %v1857 = vmul.f32 %v1814, 0.01
        %v1858 = vmul.f32 %v1816, 0.01
        %v1859 = vmul.f32 %v1819, 0.01
        %v1860 = vmul.f32 %v1821, 0.01
        %v1861 = vmul.f32 %v1824, 0.01
        %v1862 = vmul.f32 %v1826, 0.01
        %v1863 = vmul.f32 %v1829, 0.01
        %v1864 = vmul.f32 %v1831, 0.01
        %v1865 = vmax.f32 %v1754, %v1833
        %v1866 = vmax.f32 %v1756, %v1834
        %v1867 = vmax.f32 %v1759, %v1835
        %v1868 = vmax.f32 %v1761, %v1836
        %v1869 = vmax.f32 %v1764, %v1837
        %v1870 = vmax.f32 %v1766, %v1838
        %v1871 = vmax.f32 %v1769, %v1839
        %v1872 = vmax.f32 %v1771, %v1840
        %v1873 = vmax.f32 %v1774, %v1841
        %v1874 = vmax.f32 %v1776, %v1842
        %v1875 = vmax.f32 %v1779, %v1843
        %v1876 = vmax.f32 %v1781, %v1844
        %v1877 = vmax.f32 %v1784, %v1845
        %v1878 = vmax.f32 %v1786, %v1846
        %v1879 = vmax.f32 %v1789, %v1847
        %v1880 = vmax.f32 %v1791, %v1848
        %v1881 = vmax.f32 %v1794, %v1849
        %v1882 = vmax.f32 %v1796, %v1850
        %v1883 = vmax.f32 %v1799, %v1851
        %v1884 = vmax.f32 %v1801, %v1852
        %v1885 = vmax.f32 %v1804, %v1853
        %v1886 = vmax.f32 %v1806, %v1854
        %v1887 = vmax.f32 %v1809, %v1855
        %v1888 = vmax.f32 %v1811, %v1856
        %v1889 = vmax.f32 %v1814, %v1857
        %v1890 = vmax.f32 %v1816, %v1858
        %v1891 = vmax.f32 %v1819, %v1859
        %v1892 = vmax.f32 %v1821, %v1860
        %v1893 = vmax.f32 %v1824, %v1861
        %v1894 = vmax.f32 %v1826, %v1862
        %v1895 = vmax.f32 %v1829, %v1863
        %v1896 = vmax.f32 %v1831, %v1864
        %v1897 = vld [vmem:[%s2] sm:$0xff]
        %v1898 = vld [vmem:[%s2 + $0x8] sm:$0xff]
        %v1899 = vpack.c.bf16 %v1866, %v1865
        %v1900 = vpack.c.bf16 %v1868, %v1867
        %v1901 = vpack.c.bf16 %v1870, %v1869
        %v1902 = vpack.c.bf16 %v1872, %v1871
        %v1903 = vpack.c.bf16 %v1874, %v1873
        %v1904 = vpack.c.bf16 %v1876, %v1875
        %v1905 = vpack.c.bf16 %v1878, %v1877
        %v1906 = vpack.c.bf16 %v1880, %v1879
        %v1907 = vpack.c.bf16 %v1882, %v1881
        %v1908 = vpack.c.bf16 %v1884, %v1883
        %v1909 = vpack.c.bf16 %v1886, %v1885
        %v1910 = vpack.c.bf16 %v1888, %v1887
        %v1911 = vpack.c.bf16 %v1890, %v1889
        %v1912 = vpack.c.bf16 %v1892, %v1891
        %v1913 = vpack.c.bf16 %v1894, %v1893
        %v1914 = vpack.c.bf16 %v1896, %v1895
        %v1917 = vunpack.c.l.b16 %v1897
        %v1918 = vunpack.c.h.b16 %v1897
        %v1919 = vunpack.c.l.b16 %v1898
        %v1920 = vunpack.c.h.b16 %v1898
        %v1921 = vpack.c.b16 %v1919, %v1917
        %v1922 = vpack.c.b16 %v1920, %v1918
        %1925 = vmatpush.bf16.msra.mxu0 %v1906
        %1926 = vmatpush.bf16.msra.mxu0 %v1905
        %1927 = vmatpush.bf16.msra.mxu0 %v1904
        %1928 = vmatpush.bf16.msra.mxu0 %v1903
        %1929 = vmatpush.bf16.msra.mxu0 %v1902
        %1930 = vmatpush.bf16.msra.mxu0 %v1901
        %1931 = vmatpush.bf16.msra.mxu0 %v1900
        %1932 = vmatpush.bf16.msra.mxu0 %v1899
        %1933 = vmatmul.bf16.gmra.mxu0 %v1921
        %v1934 = vpop.f32.mrf.mxu0
        %v1935 = vadd.f32 0.0, %v1934
        %v1936 = vpop.f32.mrf.mxu0
        %v1937 = vadd.f32 0.0, %v1936
        %1938 = vdwg.mxu0
        %1939 = vmatpush.bf16.msra.mxu0 %v1914
        %1940 = vmatpush.bf16.msra.mxu0 %v1913
        %1941 = vmatpush.bf16.msra.mxu0 %v1912
        %1942 = vmatpush.bf16.msra.mxu0 %v1911
        %1943 = vmatpush.bf16.msra.mxu0 %v1910
        %1944 = vmatpush.bf16.msra.mxu0 %v1909
        %1945 = vmatpush.bf16.msra.mxu0 %v1908
        %1946 = vmatpush.bf16.msra.mxu0 %v1907
        %1947 = vmatmul.bf16.gmra.mxu0 %v1922
        %v1948 = vpop.f32.mrf.mxu0
        %v1949 = vadd.f32 %v1935, %v1948
        %v1950 = vpop.f32.mrf.mxu0
        %v1951 = vadd.f32 %v1937, %v1950
        %1952 = vdwg.mxu0
        %v1953 = vld [vmem:[%s491] sm:$0xff]
        %v1954 = vld [vmem:[%s491 + $0x8] sm:$0xff]
        %1956 = vset.pattern.permute.xlu0 0
        %1957 = vperm.xlu0 %1956, %v1953
        %v1958 = vpop.permute.xlu0 %1957
        %1961 = vset.pattern.permute.xlu0 0
        %1962 = vperm.xlu0 %1961, %v1954
        %v1963 = vpop.permute.xlu0 %1962
        %v1965 = vmul.f32 %v1949, %v1958
        %v1966 = vmul.f32 %v1951, %v1963
        %1967 = vst [vmem:[%s486] sm:$0xff] %v1965
        %1968 = vst [vmem:[%s486 + $0x8] sm:$0xff] %v1966
        %s1969 = sand.u32 %s264, 1
        %s1970 = scalar_lea.sflag [#allocation4], %s1969
        %s1971 = sand.u32 %s264, 1
        %s1972 = smul.addr %s1971, 16
        %s1973 = scalar_lea.vmem [#allocation11], %s1972
        // Predicated region
        $region81: #{tpu_custom_call.1} parent=59 // pred_check
          %p1974 = pneg %p274
        $region82: #{tpu_custom_call.1} parent=59 // pred_check_branch
          %1976 = sbr.rel (%p1974) target = $region84
        $region83: #{tpu_custom_call.1} parent=59 // pred_region
          %s1977 = smul.u32 2, %s31
          %1979 = vsyncadd %s1970, 0
          %s1980 = smul.addr %s1977, 8
          %s1981 = scalar_lea.hbm %s10, %s1980
          %s1982 = sshll.u32 %s1973, 4
          %s1983 = int_to_ptr.vmem [resolvable:$true] %s1982
          %s1984 = sshll.u32 %s1981, 4
          %s1985 = int_to_ptr.hbm [resolvable:$true] %s1984
          %1990 = dma.vmem_to_hbm [thread:$0]  %s1983, 256, %s1985, %s1970, 128, 128, 8
        $region84: #{tpu_custom_call.1} parent=59 // pred_fallthru
          _
      $region60: #{tpu_custom_call.1} parent=5 // pred_fallthru
        _
      %p1991 = scmp.le.s32.totalorder 2, %s26
      // Predicated region
      $region85: #{tpu_custom_call.1} parent=5 // pred_check
        %p1992 = pneg %p1991
      $region86: #{tpu_custom_call.1} parent=5 // pred_check_branch
        %1994 = sbr.rel (%p1992) target = $region88
      $region87: #{tpu_custom_call.1} parent=5 // pred_region
        %s1995 = ssub.s32 %s26, 2
        // Predicated region
        $region89: #{tpu_custom_call.1} parent=87 // pred_check
          %p1996 = pneg %p280
        $region90: #{tpu_custom_call.1} parent=87 // pred_check_branch
          %1998 = sbr.rel (%p1996) target = $region92
        $region91: #{tpu_custom_call.1} parent=87 // pred_region
          %s1999 = sand.u32 %s265, 1
          %s2000 = scalar_lea.sflag [#allocation4], %s1999
          %s2001 = sand.u32 %s265, 1
          %s2002 = smul.addr %s2001, 16
          %s2003 = scalar_lea.vmem [#allocation11], %s2002
          %2005 = dma.done %s2000, 256
        $region92: #{tpu_custom_call.1} parent=87 // pred_fallthru
          _
      $region88: #{tpu_custom_call.1} parent=5 // pred_fallthru
        _
    $region6: #{tpu_custom_call.1} parent=1 // loop_footer
      %s30 = sadd.s32 1, %s26
    $region7: #{tpu_custom_call.1} parent=1 // loop_footer_branch
      %25 = sbr.rel target = $region3
    $region8: #{tpu_custom_call.1} parent=1 // loop_exit
      _
    %2006 = vsyncpa [#allocation3], 1
    %s2007 = scalar_lea.sflag [#allocation3], 1
    %2008 = vsyncpa %s2007, 1
    %2009 = vsyncpa [#allocation6], 1
    %s2010 = scalar_lea.sflag [#allocation6], 1
    %2011 = vsyncpa %s2010, 1
    %2012 = vsyncpa [#allocation9], 1
    %2013 = vsyncpa [#allocation4], 1
    %s2014 = scalar_lea.sflag [#allocation4], 1
    %2015 = vsyncpa %s2014, 1

</llo_original>
